<compile_context>
chip_gen: v7x
topology: tpu7x:2x2x1
jax: 0.10.0
libtpu: 0.0.40
codegen_flags: <defaults>
</compile_context>

<pallas_src>
import functools

import jax
import jax.numpy as jnp
from jax.experimental import pallas as pl
from jax.experimental.pallas import tpu as pltpu


def deepfm_kernel(pack_ref, rexp_ref, vpat_ref, tab_ref, ssum_ref,
                  w1_ref, b1_ref, w2_ref, b2_ref,
                  wcf_ref, wcs_ref, wcd_ref, bc_ref,
                  out_ref, *, F, FE):
    pack = pack_ref[...]                          # [T, 2F]
    vals = pack[:, :F]                            # [T, F]  feature values
    idxf = pack[:, F:]                            # [T, F]  indices (f32-encoded)

    # Expand per-field scalars across the (field, vocab) lane axis with tiny
    # static 0/1 matmuls (keeps everything lane-dense, runs on the MXU).
    rexp = rexp_ref[...]                          # [F, F*FS]
    idx_exp = jnp.dot(idxf, rexp, preferred_element_type=jnp.float32)
    val_exp = jnp.dot(vals, rexp, preferred_element_type=jnp.float32)

    # Value-scaled one-hot: ohv[t, f*FS+v] = vals[t,f] * [idx[t,f] == v]
    sel = jnp.abs(idx_exp - vpat_ref[...]) < 0.5  # exact small ints -> robust
    ohv = jnp.where(sel, val_exp, 0.0)            # [T, F*FS]

    # One MXU matmul fuses: embedding gather*value | first-order gather*value
    # | FM field-sum.
    res = jnp.dot(ohv, tab_ref[...], preferred_element_type=jnp.float32)
    x = res[:, :FE]                               # [T, F*E] value-scaled embeddings
    first = res[:, FE:FE + F]                     # [T, F]
    sum_f = res[:, FE + F:]                       # [T, E]

    # FM second order
    sum_sq = jnp.dot(x * x, ssum_ref[...], preferred_element_type=jnp.float32)
    second = 0.5 * (sum_f * sum_f - sum_sq)       # [T, E]

    # Deep MLP (eval-mode BN already folded into W/b)
    h1 = jnp.maximum(
        jnp.dot(x, w1_ref[...], preferred_element_type=jnp.float32) + b1_ref[...], 0.0)
    h2 = jnp.maximum(
        jnp.dot(h1, w2_ref[...], preferred_element_type=jnp.float32) + b2_ref[...], 0.0)

    # concat([first, second, deep]) @ Wc + bc  as VPU multiply + lane reduce
    logit = (jnp.sum(first * wcf_ref[...], axis=-1, keepdims=True)
             + jnp.sum(second * wcs_ref[...], axis=-1, keepdims=True)
             + jnp.sum(h2 * wcd_ref[...], axis=-1, keepdims=True)
             + bc_ref[...])
    out_ref[...] = logit.astype(out_ref.dtype)


def deepfm_forward(feature_idx, feature_values, p, *, tile_b=1024):
    """feature_idx [B,F] int32, feature_values [B,F] f32, p: dict of arrays."""
    B, F = feature_values.shape
    FS, E = p['w_emb'].shape              # vocab size, embedding size (static)
    FE = F * E
    H1 = p['W1'].shape[1]
    H2 = p['W2'].shape[1]

    # ---- static helper matrices for the fused gather / FM math -------------
    eyeF = jnp.eye(F, dtype=jnp.float32)
    rexp = jnp.repeat(eyeF, FS, axis=1)                           # [F, F*FS]
    vpat = jnp.tile(jnp.arange(FS, dtype=jnp.float32), F).reshape(1, F * FS)

    # TAB[f*FS+v, :]: block-diag w_emb | block-diag w_first | tiled w_emb
    tab_x = jnp.einsum('fg,ve->fvge', eyeF, p['w_emb']).reshape(F * FS, FE)
    tab_first = jnp.einsum('fg,v->fvg', eyeF, p['w_first'][:, 0]).reshape(F * FS, F)
    tab_sumf = jnp.tile(p['w_emb'], (F, 1))                       # [F*FS, E]
    tab = jnp.concatenate([tab_x, tab_first, tab_sumf], axis=1)   # [F*FS, FE+F+E]

    ssum = jnp.tile(jnp.eye(E, dtype=jnp.float32), (F, 1))        # [FE, E]

    # ---- fold eval-mode BatchNorm into the MLP weights/biases --------------
    eps = 1e-5
    s1 = p['bn1_gamma'] * jax.lax.rsqrt(p['bn1_var'] + eps)
    W1f = p['W1'] * s1[None, :]
    b1f = ((p['b1'] - p['bn1_mean']) * s1 + p['bn1_beta']).reshape(1, H1)
    s2 = p['bn2_gamma'] * jax.lax.rsqrt(p['bn2_var'] + eps)
    W2f = p['W2'] * s2[None, :]
    b2f = ((p['b2'] - p['bn2_mean']) * s2 + p['bn2_beta']).reshape(1, H2)

    # ---- split concat-layer weight so the kernel never slices Wc rows ------
    Wc = p['Wc']
    wcf = Wc[0:F, 0].reshape(1, F)
    wcs = Wc[F:F + E, 0].reshape(1, E)
    wcd = Wc[F + E:, 0].reshape(1, H2)
    bc = p['bc'].reshape(1, 1)

    # ---- batch tiling: big tiles, but keep >= 2 grid steps (v7x megacore) --
    def _rup(x, m):
        return ((x + m - 1) // m) * m

    max_tile = _rup(B, 8) if B < 16 else _rup(pl.cdiv(B, 2), 8)
    tile_b = max(8, min(tile_b, max_tile))
    n_tiles = pl.cdiv(B, tile_b)
    Bp = n_tiles * tile_b

    # single packed lane-dense per-batch stream: [values | indices-as-f32]
    pack = jnp.concatenate([feature_values.astype(jnp.float32),
                            feature_idx.astype(jnp.float32)], axis=1)  # [B, 2F]
    if Bp != B:
        pack = jnp.pad(pack, ((0, Bp - B), (0, 0)))

    weights = (rexp, vpat, tab, ssum, W1f, b1f, W2f, b2f, wcf, wcs, wcd, bc)

    in_specs = [pl.BlockSpec((tile_b, 2 * F), lambda i: (i, 0))]
    in_specs += [pl.BlockSpec(w.shape, lambda i: (0, 0)) for w in weights]

    # advisory cost estimate (scheduling hint only)
    flops = Bp * (2 * 2 * F * F * FS               # idx/val expand matmuls
                  + 2 * F * FS * (FE + F + E)      # fused gather matmul
                  + 2 * FE * E                     # sum_sq matmul
                  + 2 * FE * H1 + 2 * H1 * H2      # deep MLP
                  + 8 * (F * FS + FE + E + H1 + H2 + F))
    bytes_accessed = 4 * (Bp * (2 * F + 1) + sum(int(w.size) for w in weights))
    cost = pl.CostEstimate(flops=int(flops), transcendentals=0,
                           bytes_accessed=int(bytes_accessed))

    kernel = functools.partial(deepfm_kernel, F=F, FE=FE)
    out = pl.pallas_call(
        kernel,
        out_shape=jax.ShapeDtypeStruct((Bp, 1), jnp.float32),
        grid=(n_tiles,),
        in_specs=in_specs,
        out_specs=pl.BlockSpec((tile_b, 1), lambda i: (i, 0)),
        compiler_params=pltpu.CompilerParams(
            dimension_semantics=("parallel",),
            vmem_limit_bytes=32 * 1024 * 1024),
        cost_estimate=cost,
    )(pack, *weights)
    return out[:B]


def deepfm_reference(feature_idx, feature_values, p):
    """Pure-JAX reference reproducing the PyTorch forward (eval mode)."""
    w1 = jnp.take(p['w_first'], feature_idx, axis=0)[..., 0] * feature_values
    emb = jnp.take(p['w_emb'], feature_idx, axis=0) * feature_values[..., None]
    second = 0.5 * (jnp.sum(emb, 1) ** 2 - jnp.sum(emb * emb, 1))
    x = emb.reshape(emb.shape[0], -1)
    eps = 1e-5
    h = x @ p['W1'] + p['b1']
    h = p['bn1_gamma'] * (h - p['bn1_mean']) / jnp.sqrt(p['bn1_var'] + eps) + p['bn1_beta']
    h = jnp.maximum(h, 0.0)
    h = h @ p['W2'] + p['b2']
    h = p['bn2_gamma'] * (h - p['bn2_mean']) / jnp.sqrt(p['bn2_var'] + eps) + p['bn2_beta']
    h = jnp.maximum(h, 0.0)
    concat = jnp.concatenate([w1, second, h], axis=1)
    return concat @ p['Wc'] + p['bc']


def init_params(key, *, feature_size, field_size, embedding_size, hidden_dims):
    ks = jax.random.split(key, 8)
    H1, H2 = hidden_dims
    F, E = field_size, embedding_size
    # NOTE: arrays only (no Python ints) so the dict can be a jit argument.
    return {
        'w_first': 0.1 * jax.random.normal(ks[0], (feature_size, 1), jnp.float32),
        'w_emb':   0.1 * jax.random.normal(ks[1], (feature_size, E), jnp.float32),
        'W1': 0.1 * jax.random.normal(ks[2], (F * E, H1), jnp.float32),
        'b1': 0.1 * jax.random.normal(ks[3], (H1,), jnp.float32),
        'bn1_gamma': jnp.ones((H1,), jnp.float32),
        'bn1_beta': jnp.zeros((H1,), jnp.float32),
        'bn1_mean': jnp.zeros((H1,), jnp.float32),
        'bn1_var': jnp.ones((H1,), jnp.float32),
        'W2': 0.1 * jax.random.normal(ks[4], (H1, H2), jnp.float32),
        'b2': 0.1 * jax.random.normal(ks[5], (H2,), jnp.float32),
        'bn2_gamma': jnp.ones((H2,), jnp.float32),
        'bn2_beta': jnp.zeros((H2,), jnp.float32),
        'bn2_mean': jnp.zeros((H2,), jnp.float32),
        'bn2_var': jnp.ones((H2,), jnp.float32),
        'Wc': 0.1 * jax.random.normal(ks[6], (F + E + H2, 1), jnp.float32),
        'bc': 0.1 * jax.random.normal(ks[7], (1,), jnp.float32),
    }


if __name__ == "__main__":
    B, F, E = 256, 8, 8            # clamps to 2 batch tiles -> exercises the grid
    hidden_dims = [32, 16]
    feature_size = 64

    key = jax.random.PRNGKey(0)
    k_idx, k_val, k_par = jax.random.split(key, 3)
    feature_idx = jax.random.randint(k_idx, (B, F), 0, feature_size, jnp.int32)
    feature_values = jax.random.uniform(k_val, (B, F), jnp.float32)

    params = init_params(k_par, feature_size=feature_size, field_size=F,
                         embedding_size=E, hidden_dims=hidden_dims)

    fwd = jax.jit(functools.partial(deepfm_forward, tile_b=1024))
    logits = fwd(feature_idx, feature_values, params)
    jax.block_until_ready(logits)

    ref = deepfm_reference(feature_idx, feature_values, params)
    assert logits.shape == (B, 1)
    assert jnp.allclose(logits, ref, atol=1e-3, rtol=1e-3), (
        float(jnp.max(jnp.abs(logits - ref))))

    print("KERNEL_OK")
</pallas_src>

<mosaic_0001>
module attributes {stable_mosaic.version = 11 : i64} {
  func.func @deepfm_kernel(%arg0: i32, %arg1: memref<128x16xf32, #tpu.memory_space<vmem>>, %arg2: memref<8x512xf32, #tpu.memory_space<vmem>>, %arg3: memref<1x512xf32, #tpu.memory_space<vmem>>, %arg4: memref<512x80xf32, #tpu.memory_space<vmem>>, %arg5: memref<64x8xf32, #tpu.memory_space<vmem>>, %arg6: memref<64x32xf32, #tpu.memory_space<vmem>>, %arg7: memref<1x32xf32, #tpu.memory_space<vmem>>, %arg8: memref<32x16xf32, #tpu.memory_space<vmem>>, %arg9: memref<1x16xf32, #tpu.memory_space<vmem>>, %arg10: memref<1x8xf32, #tpu.memory_space<vmem>>, %arg11: memref<1x8xf32, #tpu.memory_space<vmem>>, %arg12: memref<1x16xf32, #tpu.memory_space<vmem>>, %arg13: memref<1x1xf32, #tpu.memory_space<vmem>>, %arg14: memref<128x1xf32, #tpu.memory_space<vmem>>) attributes {dimension_semantics = [#tpu.dimension_semantics<parallel>], iteration_bounds = array<i64: 2>, scalar_prefetch = 0 : i64, scratch_operands = 0 : i64, tpu.core_type = #tpu.core_type<tc>, window_params = [{transform_indices = @transform_0, window_bounds = array<i64: 128, 16>}, {pipeline_mode = #tpu.pipeline_mode<synchronous>, transform_indices = @transform_1, window_bounds = array<i64: 8, 512>}, {pipeline_mode = #tpu.pipeline_mode<synchronous>, transform_indices = @transform_2, window_bounds = array<i64: 1, 512>}, {pipeline_mode = #tpu.pipeline_mode<synchronous>, transform_indices = @transform_3, window_bounds = array<i64: 512, 80>}, {pipeline_mode = #tpu.pipeline_mode<synchronous>, transform_indices = @transform_4, window_bounds = array<i64: 64, 8>}, {pipeline_mode = #tpu.pipeline_mode<synchronous>, transform_indices = @transform_5, window_bounds = array<i64: 64, 32>}, {pipeline_mode = #tpu.pipeline_mode<synchronous>, transform_indices = @transform_6, window_bounds = array<i64: 1, 32>}, {pipeline_mode = #tpu.pipeline_mode<synchronous>, transform_indices = @transform_7, window_bounds = array<i64: 32, 16>}, {pipeline_mode = #tpu.pipeline_mode<synchronous>, transform_indices = @transform_8, window_bounds = array<i64: 1, 16>}, {pipeline_mode = #tpu.pipeline_mode<synchronous>, transform_indices = @transform_9, window_bounds = array<i64: 1, 8>}, {pipeline_mode = #tpu.pipeline_mode<synchronous>, transform_indices = @transform_10, window_bounds = array<i64: 1, 8>}, {pipeline_mode = #tpu.pipeline_mode<synchronous>, transform_indices = @transform_11, window_bounds = array<i64: 1, 16>}, {pipeline_mode = #tpu.pipeline_mode<synchronous>, transform_indices = @transform_12, window_bounds = array<i64: 1, 1>}, {transform_indices = @transform_13, window_bounds = array<i64: 128, 1>}]} {
    %c0 = arith.constant 0 : index
    %c0_0 = arith.constant 0 : index
    %0 = vector.load %arg1[%c0, %c0_0] : memref<128x16xf32, #tpu.memory_space<vmem>>, vector<128x16xf32>
    %1 = vector.extract_strided_slice %0 {offsets = [0, 0], sizes = [128, 8], strides = [1, 1]} : vector<128x16xf32> to vector<128x8xf32>
    %2 = vector.extract_strided_slice %0 {offsets = [0, 8], sizes = [128, 8], strides = [1, 1]} : vector<128x16xf32> to vector<128x8xf32>
    %c0_1 = arith.constant 0 : index
    %c0_2 = arith.constant 0 : index
    %3 = vector.load %arg2[%c0_1, %c0_2] : memref<8x512xf32, #tpu.memory_space<vmem>>, vector<8x512xf32>
    %cst = arith.constant dense<0.000000e+00> : vector<128x512xf32>
    %4 = tpu.matmul %2, %3, %cst {dimension_numbers = #tpu.dot_dimension_numbers<[1], [0], [0], [1], [0, 0, 1, 1], [], []>} : vector<128x8xf32>, vector<8x512xf32>, vector<128x512xf32> -> vector<128x512xf32>
    %cst_3 = arith.constant dense<0.000000e+00> : vector<128x512xf32>
    %5 = tpu.matmul %1, %3, %cst_3 {dimension_numbers = #tpu.dot_dimension_numbers<[1], [0], [0], [1], [0, 0, 1, 1], [], []>} : vector<128x8xf32>, vector<8x512xf32>, vector<128x512xf32> -> vector<128x512xf32>
    %c0_4 = arith.constant 0 : index
    %c0_5 = arith.constant 0 : index
    %6 = vector.load %arg3[%c0_4, %c0_5] : memref<1x512xf32, #tpu.memory_space<vmem>>, vector<1x512xf32>
    %7 = vector.broadcast %6 : vector<1x512xf32> to vector<128x512xf32>
    %8 = arith.subf %4, %7 : vector<128x512xf32>
    %9 = math.absf %8 : vector<128x512xf32>
    %cst_6 = arith.constant 5.000000e-01 : f32
    %10 = vector.broadcast %cst_6 : f32 to vector<128x512xf32>
    %11 = arith.cmpf olt, %9, %10 : vector<128x512xf32>
    %cst_7 = arith.constant 0.000000e+00 : f32
    %12 = vector.broadcast %cst_7 : f32 to vector<128x512xf32>
    %13 = arith.select %11, %5, %12 : vector<128x512xi1>, vector<128x512xf32>
    %c0_8 = arith.constant 0 : index
    %c0_9 = arith.constant 0 : index
    %14 = vector.load %arg4[%c0_8, %c0_9] : memref<512x80xf32, #tpu.memory_space<vmem>>, vector<512x80xf32>
    %cst_10 = arith.constant dense<0.000000e+00> : vector<128x80xf32>
    %15 = tpu.matmul %13, %14, %cst_10 {dimension_numbers = #tpu.dot_dimension_numbers<[1], [0], [0], [1], [0, 0, 1, 1], [], []>} : vector<128x512xf32>, vector<512x80xf32>, vector<128x80xf32> -> vector<128x80xf32>
    %16 = vector.extract_strided_slice %15 {offsets = [0, 0], sizes = [128, 64], strides = [1, 1]} : vector<128x80xf32> to vector<128x64xf32>
    %17 = vector.extract_strided_slice %15 {offsets = [0, 64], sizes = [128, 8], strides = [1, 1]} : vector<128x80xf32> to vector<128x8xf32>
    %18 = vector.extract_strided_slice %15 {offsets = [0, 72], sizes = [128, 8], strides = [1, 1]} : vector<128x80xf32> to vector<128x8xf32>
    %19 = arith.mulf %16, %16 : vector<128x64xf32>
    %c0_11 = arith.constant 0 : index
    %c0_12 = arith.constant 0 : index
    %20 = vector.load %arg5[%c0_11, %c0_12] : memref<64x8xf32, #tpu.memory_space<vmem>>, vector<64x8xf32>
    %cst_13 = arith.constant dense<0.000000e+00> : vector<128x8xf32>
    %21 = tpu.matmul %19, %20, %cst_13 {dimension_numbers = #tpu.dot_dimension_numbers<[1], [0], [0], [1], [0, 0, 1, 1], [], []>} : vector<128x64xf32>, vector<64x8xf32>, vector<128x8xf32> -> vector<128x8xf32>
    %22 = arith.mulf %18, %18 : vector<128x8xf32>
    %23 = arith.subf %22, %21 : vector<128x8xf32>
    %cst_14 = arith.constant 5.000000e-01 : f32
    %24 = vector.broadcast %cst_14 : f32 to vector<128x8xf32>
    %25 = arith.mulf %24, %23 : vector<128x8xf32>
    %c0_15 = arith.constant 0 : index
    %c0_16 = arith.constant 0 : index
    %26 = vector.load %arg6[%c0_15, %c0_16] : memref<64x32xf32, #tpu.memory_space<vmem>>, vector<64x32xf32>
    %cst_17 = arith.constant dense<0.000000e+00> : vector<128x32xf32>
    %27 = tpu.matmul %16, %26, %cst_17 {dimension_numbers = #tpu.dot_dimension_numbers<[1], [0], [0], [1], [0, 0, 1, 1], [], []>} : vector<128x64xf32>, vector<64x32xf32>, vector<128x32xf32> -> vector<128x32xf32>
    %c0_18 = arith.constant 0 : index
    %c0_19 = arith.constant 0 : index
    %28 = vector.load %arg7[%c0_18, %c0_19] : memref<1x32xf32, #tpu.memory_space<vmem>>, vector<1x32xf32>
    %29 = vector.broadcast %28 : vector<1x32xf32> to vector<128x32xf32>
    %30 = arith.addf %27, %29 : vector<128x32xf32>
    %cst_20 = arith.constant 0.000000e+00 : f32
    %31 = vector.broadcast %cst_20 : f32 to vector<128x32xf32>
    %32 = arith.maximumf %30, %31 : vector<128x32xf32>
    %c0_21 = arith.constant 0 : index
    %c0_22 = arith.constant 0 : index
    %33 = vector.load %arg8[%c0_21, %c0_22] : memref<32x16xf32, #tpu.memory_space<vmem>>, vector<32x16xf32>
    %cst_23 = arith.constant dense<0.000000e+00> : vector<128x16xf32>
    %34 = tpu.matmul %32, %33, %cst_23 {dimension_numbers = #tpu.dot_dimension_numbers<[1], [0], [0], [1], [0, 0, 1, 1], [], []>} : vector<128x32xf32>, vector<32x16xf32>, vector<128x16xf32> -> vector<128x16xf32>
    %c0_24 = arith.constant 0 : index
    %c0_25 = arith.constant 0 : index
    %35 = vector.load %arg9[%c0_24, %c0_25] : memref<1x16xf32, #tpu.memory_space<vmem>>, vector<1x16xf32>
    %36 = vector.broadcast %35 : vector<1x16xf32> to vector<128x16xf32>
    %37 = arith.addf %34, %36 : vector<128x16xf32>
    %cst_26 = arith.constant 0.000000e+00 : f32
    %38 = vector.broadcast %cst_26 : f32 to vector<128x16xf32>
    %39 = arith.maximumf %37, %38 : vector<128x16xf32>
    %c0_27 = arith.constant 0 : index
    %c0_28 = arith.constant 0 : index
    %40 = vector.load %arg10[%c0_27, %c0_28] : memref<1x8xf32, #tpu.memory_space<vmem>>, vector<1x8xf32>
    %41 = vector.broadcast %40 : vector<1x8xf32> to vector<128x8xf32>
    %42 = arith.mulf %17, %41 : vector<128x8xf32>
    %cst_29 = arith.constant dense<0.000000e+00> : vector<128xf32>
    %43 = vector.multi_reduction <add>, %42, %cst_29 [1] : vector<128x8xf32> to vector<128xf32>
    %44 = vector.shape_cast %43 : vector<128xf32> to vector<128x1xf32>
    %c0_30 = arith.constant 0 : index
    %c0_31 = arith.constant 0 : index
    %45 = vector.load %arg11[%c0_30, %c0_31] : memref<1x8xf32, #tpu.memory_space<vmem>>, vector<1x8xf32>
    %46 = vector.broadcast %45 : vector<1x8xf32> to vector<128x8xf32>
    %47 = arith.mulf %25, %46 : vector<128x8xf32>
    %cst_32 = arith.constant dense<0.000000e+00> : vector<128xf32>
    %48 = vector.multi_reduction <add>, %47, %cst_32 [1] : vector<128x8xf32> to vector<128xf32>
    %49 = vector.shape_cast %48 : vector<128xf32> to vector<128x1xf32>
    %50 = arith.addf %44, %49 : vector<128x1xf32>
    %c0_33 = arith.constant 0 : index
    %c0_34 = arith.constant 0 : index
    %51 = vector.load %arg12[%c0_33, %c0_34] : memref<1x16xf32, #tpu.memory_space<vmem>>, vector<1x16xf32>
    %52 = vector.broadcast %51 : vector<1x16xf32> to vector<128x16xf32>
    %53 = arith.mulf %39, %52 : vector<128x16xf32>
    %cst_35 = arith.constant dense<0.000000e+00> : vector<128xf32>
    %54 = vector.multi_reduction <add>, %53, %cst_35 [1] : vector<128x16xf32> to vector<128xf32>
    %55 = vector.shape_cast %54 : vector<128xf32> to vector<128x1xf32>
    %56 = arith.addf %50, %55 : vector<128x1xf32>
    %c0_36 = arith.constant 0 : index
    %c0_37 = arith.constant 0 : index
    %57 = vector.load %arg13[%c0_36, %c0_37] : memref<1x1xf32, #tpu.memory_space<vmem>>, vector<1x1xf32>
    %58 = vector.broadcast %57 : vector<1x1xf32> to vector<128x1xf32>
    %59 = arith.addf %56, %58 : vector<128x1xf32>
    %c0_38 = arith.constant 0 : index
    %c0_39 = arith.constant 0 : index
    %60 = vector.load %arg14[%c0_38, %c0_39] : memref<128x1xf32, #tpu.memory_space<vmem>>, vector<128x1xf32>
    tpu.vector_store %arg14[%c0_38, %c0_39], %59 {strides = array<i32>} : memref<128x1xf32, #tpu.memory_space<vmem>>, vector<128x1xf32>,
    return
  }
  func.func @transform_0(%arg0: i32) -> (i32, i32) {
    %c0_i32 = arith.constant 0 : i32
    %c0_i32_0 = arith.constant 0 : i32
    return %arg0, %c0_i32 : i32, i32
  }
  func.func @transform_1(%arg0: i32) -> (i32, i32) {
    %c0_i32 = arith.constant 0 : i32
    %c0_i32_0 = arith.constant 0 : i32
    %c0_i32_1 = arith.constant 0 : i32
    return %c0_i32, %c0_i32_0 : i32, i32
  }
  func.func @transform_2(%arg0: i32) -> (i32, i32) {
    %c0_i32 = arith.constant 0 : i32
    %c0_i32_0 = arith.constant 0 : i32
    %c0_i32_1 = arith.constant 0 : i32
    return %c0_i32, %c0_i32_0 : i32, i32
  }
  func.func @transform_3(%arg0: i32) -> (i32, i32) {
    %c0_i32 = arith.constant 0 : i32
    %c0_i32_0 = arith.constant 0 : i32
    %c0_i32_1 = arith.constant 0 : i32
    return %c0_i32, %c0_i32_0 : i32, i32
  }
  func.func @transform_4(%arg0: i32) -> (i32, i32) {
    %c0_i32 = arith.constant 0 : i32
    %c0_i32_0 = arith.constant 0 : i32
    %c0_i32_1 = arith.constant 0 : i32
    return %c0_i32, %c0_i32_0 : i32, i32
  }
  func.func @transform_5(%arg0: i32) -> (i32, i32) {
    %c0_i32 = arith.constant 0 : i32
    %c0_i32_0 = arith.constant 0 : i32
    %c0_i32_1 = arith.constant 0 : i32
    return %c0_i32, %c0_i32_0 : i32, i32
  }
  func.func @transform_6(%arg0: i32) -> (i32, i32) {
    %c0_i32 = arith.constant 0 : i32
    %c0_i32_0 = arith.constant 0 : i32
    %c0_i32_1 = arith.constant 0 : i32
    return %c0_i32, %c0_i32_0 : i32, i32
  }
  func.func @transform_7(%arg0: i32) -> (i32, i32) {
    %c0_i32 = arith.constant 0 : i32
    %c0_i32_0 = arith.constant 0 : i32
    %c0_i32_1 = arith.constant 0 : i32
    return %c0_i32, %c0_i32_0 : i32, i32
  }
  func.func @transform_8(%arg0: i32) -> (i32, i32) {
    %c0_i32 = arith.constant 0 : i32
    %c0_i32_0 = arith.constant 0 : i32
    %c0_i32_1 = arith.constant 0 : i32
    return %c0_i32, %c0_i32_0 : i32, i32
  }
  func.func @transform_9(%arg0: i32) -> (i32, i32) {
    %c0_i32 = arith.constant 0 : i32
    %c0_i32_0 = arith.constant 0 : i32
    %c0_i32_1 = arith.constant 0 : i32
    return %c0_i32, %c0_i32_0 : i32, i32
  }
  func.func @transform_10(%arg0: i32) -> (i32, i32) {
    %c0_i32 = arith.constant 0 : i32
    %c0_i32_0 = arith.constant 0 : i32
    %c0_i32_1 = arith.constant 0 : i32
    return %c0_i32, %c0_i32_0 : i32, i32
  }
  func.func @transform_11(%arg0: i32) -> (i32, i32) {
    %c0_i32 = arith.constant 0 : i32
    %c0_i32_0 = arith.constant 0 : i32
    %c0_i32_1 = arith.constant 0 : i32
    return %c0_i32, %c0_i32_0 : i32, i32
  }
  func.func @transform_12(%arg0: i32) -> (i32, i32) {
    %c0_i32 = arith.constant 0 : i32
    %c0_i32_0 = arith.constant 0 : i32
    %c0_i32_1 = arith.constant 0 : i32
    return %c0_i32, %c0_i32_0 : i32, i32
  }
  func.func @transform_13(%arg0: i32) -> (i32, i32) {
    %c0_i32 = arith.constant 0 : i32
    %c0_i32_0 = arith.constant 0 : i32
    return %arg0, %c0_i32 : i32, i32
  }
}

</mosaic_0001>

<llo_original>
// kernel: tile.19
$region0: #{tile.19}
  %s0 = inlined_call_operand.vmem [shape: f32[8,64], index: 0, kind: input, shape index: {}]
  %s1 = inlined_call_operand.vmem [shape: f32[1,512], index: 1, kind: output, shape index: {}]
  $region1: #{tile.19} parent=0
    #allocation0 [shape = 'u8[16384]{0}', space=vmem, size = 0x4000, scoped, tag = 'scoped mem for output reshape']
    %v2 = vld [vmem:[%s0] ss:$2 sm:$0xf]
    %vm3 = vcmask 523264
    %4 = vst.msk [vmem:[#allocation0] ss:$8 sm:$0xf] %vm3, %v2
    %s5 = scalar_lea.vmem %s0, 1
    %v6 = vld [vmem:[%s5] ss:$2 sm:$0xf]
    %7 = vrot.lane.b32.xlu0 %v6, 64
    %v8 = vpop.permute.xlu0 %7
    %vm9 = vcmask 1048064
    %10 = vst.msk [vmem:[#allocation0] ss:$8 sm:$0xf] %vm9, %v8
    %s12 = sshllo.u32 0, 1
    %v14 = vld [vmem:[#allocation0] sm:%s12]
    %s15 = sshllo.u32 0, 1
    %16 = vst [vmem:[%s1] sm:%s15] %v14
    %s17 = scalar_lea.vmem [#allocation0], 8
    %v18 = vld [vmem:[%s17] sm:%s12]
    %s19 = sshllo.u32 0, 1
    %s20 = scalar_lea.vmem %s1, 1
    %21 = vst [vmem:[%s20] sm:%s19] %v18
    %s22 = scalar_lea.vmem [#allocation0], 16
    %v23 = vld [vmem:[%s22] sm:%s12]
    %s24 = sshllo.u32 0, 1
    %s25 = smul.addr 1, 2
    %s26 = scalar_lea.vmem %s1, %s25
    %27 = vst [vmem:[%s26] sm:%s24] %v23
    %s28 = scalar_lea.vmem [#allocation0], 24
    %v29 = vld [vmem:[%s28] sm:%s12]
    %s30 = sshllo.u32 0, 1
    %s31 = smul.addr 1, 3
    %s32 = scalar_lea.vmem %s1, %s31
    %33 = vst [vmem:[%s32] sm:%s30] %v29

// kernel: deepfm_forward.1
$region0: #{deepfm_forward.1}
  #allocation0 [shape = 'u32[]', space=smem, size = 0x4, offset = 0x4, fixed_abs, tag = 'smem constant byte address 0x4 - core index']
  #allocation1 [shape = 'u32[144,128]{1,0:T(1,128)}', space=vmem, size = 0x12000, scoped, tag = 'internal scratch']
  #allocation2 [shape = 'f32[1,1]{1,0:T(1,128)S(1)}', space=vmem, size = 0x200, scoped, tag = 'scoped memory for deepfm_forward.1']
  %s0 = inlined_call_operand.vmem [shape: f32[256,16], index: 0, kind: input, shape index: {}]
  %s1 = inlined_call_operand.vmem [shape: f32[8,512], index: 1, kind: input, shape index: {}]
  %s2 = inlined_call_operand.vmem [shape: f32[1,512], index: 2, kind: input, shape index: {}]
  %s3 = inlined_call_operand.vmem [shape: f32[512,80], index: 3, kind: input, shape index: {}]
  %s4 = inlined_call_operand.vmem [shape: f32[64,8], index: 4, kind: input, shape index: {}]
  %s5 = inlined_call_operand.vmem [shape: f32[64,32], index: 5, kind: input, shape index: {}]
  %s6 = inlined_call_operand.vmem [shape: f32[1,32], index: 6, kind: input, shape index: {}]
  %s7 = inlined_call_operand.vmem [shape: f32[32,16], index: 7, kind: input, shape index: {}]
  %s8 = inlined_call_operand.vmem [shape: f32[1,16], index: 8, kind: input, shape index: {}]
  %s9 = inlined_call_operand.vmem [shape: f32[1,8], index: 9, kind: input, shape index: {}]
  %s10 = inlined_call_operand.vmem [shape: f32[1,8], index: 10, kind: input, shape index: {}]
  %s11 = inlined_call_operand.vmem [shape: f32[1,16], index: 11, kind: input, shape index: {}]
  %s12 = inlined_call_operand.<no memory space> [shape: f32[1,1], index: 12, kind: input, shape index: {}]
  %s13 = inlined_call_operand.vmem [shape: f32[256,1], index: 13, kind: output, shape index: {}]
  %s14 = sld [smem:[#allocation0]]
  $region85: #{deepfm_forward.1} parent=0
    _
  %s16 = ssub.s32 1, %s14
  %s17 = scalar_select 0, %s16, %s14
  %v18 = vstv %s12
  %19 = vst [vmem:[#allocation2] sm:$0x1] %v18
  loop: start=0, step=1, limit=4
  $region2: #{deepfm_forward.1} parent=0 // loop_pre_header
    _
  $region3: #{deepfm_forward.1} parent=0 // loop_header
    %s21 = sphi 0, %s25
    %p22 = scmp.ge.s32.totalorder %s21, 4
    %s31 = sphi 0, %s33
    %s34 = sphi 0, %s31
    %s35 = sphi 0, %s34
    %s51 = sphi 0, %s35
    %s55 = sphi 0, %s55
    %s57 = sphi 0, %s55
    %s58 = sphi 0, %s57
    %s72 = sphi 0, %s58
    %s76 = sphi 0, %s76
    %s78 = sphi 0, %s76
    %s79 = sphi 0, %s78
    %s93 = sphi 0, %s79
    %s97 = sphi 0, %s97
    %s99 = sphi 0, %s97
    %s100 = sphi 0, %s99
    %s114 = sphi 0, %s100
    %s118 = sphi 0, %s118
    %s120 = sphi 0, %s118
    %s121 = sphi 0, %s120
    %s135 = sphi 0, %s121
    %s139 = sphi 0, %s139
    %s141 = sphi 0, %s139
    %s142 = sphi 0, %s141
    %s156 = sphi 0, %s142
    %s160 = sphi 0, %s160
    %s162 = sphi 0, %s160
    %s163 = sphi 0, %s162
    %s177 = sphi 0, %s163
    %s181 = sphi 0, %s181
    %s183 = sphi 0, %s181
    %s184 = sphi 0, %s183
    %s198 = sphi 0, %s184
    %s202 = sphi 0, %s202
    %s204 = sphi 0, %s202
    %s205 = sphi 0, %s204
    %s219 = sphi 0, %s205
    %s223 = sphi 0, %s223
    %s225 = sphi 0, %s223
    %s226 = sphi 0, %s225
    %s240 = sphi 0, %s226
    %s244 = sphi 0, %s244
    %s246 = sphi 0, %s244
    %s247 = sphi 0, %s246
    %s261 = sphi 0, %s247
    %s265 = sphi 0, %s265
    %s267 = sphi 0, %s265
    %s268 = sphi 0, %s267
    %s282 = sphi 0, %s268
    %s286 = sphi 0, %s286
    %s288 = sphi 0, %s286
    %s289 = sphi 0, %s288
    %s303 = sphi 0, %s289
    %s309 = sphi 0, %s311
    %s312 = sphi 0, %s309
    %s313 = sphi 0, %s312
    %s329 = sphi 0, %s313
  $region4: #{deepfm_forward.1} parent=0 // loop_header_branch
    %24 = sbr.rel (%p22) target = $region8
  $region5: #{deepfm_forward.1} parent=0 // loop_body
    %s26 = ssub.s32 %s21, 1
    %s27 = ssub.s32 %s21, 2
    %s28 = sadd.s32 %s21, 1
    %s29 = ssub.s32 %s21, %s28
    %p30 = scmp.eq.s32.totalorder %s29, 0
    %s32 = sadd.s32 %s31, 1
    %s33 = scalar_select %p30, %s31, %s32
    %p36 = pneg %p30
    %p37 = scmp.eq.s32.totalorder %s21, 1
    %p38 = por %p36, %p37
    %p39 = scmp.ne.s32.totalorder %s31, %s34
    %p40 = scmp.eq.s32.totalorder %s21, 0
    %p41 = por %p39, %p40
    %p42 = scmp.ne.s32.totalorder %s31, %s34
    %p43 = scmp.eq.s32.totalorder %s26, 1
    %p44 = por %p42, %p43
    %p45 = scmp.ne.s32.totalorder %s34, %s35
    %p46 = scmp.eq.s32.totalorder %s26, 0
    %p47 = por %p45, %p46
    %p48 = scmp.ne.s32.totalorder %s34, %s35
    %p49 = scmp.eq.s32.totalorder %s27, 1
    %p50 = por %p48, %p49
    %p52 = scmp.ne.s32.totalorder %s35, %s51
    %p53 = scmp.eq.s32.totalorder %s27, 0
    %p54 = por %p52, %p53
    %s56 = sadd.s32 %s55, 1
    %p59 = scmp.eq.s32.totalorder %s21, 1
    %p60 = scmp.ne.s32.totalorder %s55, %s57
    %p61 = scmp.eq.s32.totalorder %s21, 0
    %p62 = por %p60, %p61
    %p63 = scmp.ne.s32.totalorder %s55, %s57
    %p64 = scmp.eq.s32.totalorder %s26, 1
    %p65 = por %p63, %p64
    %p66 = scmp.ne.s32.totalorder %s57, %s58
    %p67 = scmp.eq.s32.totalorder %s26, 0
    %p68 = por %p66, %p67
    %p69 = scmp.ne.s32.totalorder %s57, %s58
    %p70 = scmp.eq.s32.totalorder %s27, 1
    %p71 = por %p69, %p70
    %p73 = scmp.ne.s32.totalorder %s58, %s72
    %p74 = scmp.eq.s32.totalorder %s27, 0
    %p75 = por %p73, %p74
    %s77 = sadd.s32 %s76, 1
    %p80 = scmp.eq.s32.totalorder %s21, 1
    %p81 = scmp.ne.s32.totalorder %s76, %s78
    %p82 = scmp.eq.s32.totalorder %s21, 0
    %p83 = por %p81, %p82
    %p84 = scmp.ne.s32.totalorder %s76, %s78
    %p85 = scmp.eq.s32.totalorder %s26, 1
    %p86 = por %p84, %p85
    %p87 = scmp.ne.s32.totalorder %s78, %s79
    %p88 = scmp.eq.s32.totalorder %s26, 0
    %p89 = por %p87, %p88
    %p90 = scmp.ne.s32.totalorder %s78, %s79
    %p91 = scmp.eq.s32.totalorder %s27, 1
    %p92 = por %p90, %p91
    %p94 = scmp.ne.s32.totalorder %s79, %s93
    %p95 = scmp.eq.s32.totalorder %s27, 0
    %p96 = por %p94, %p95
    %s98 = sadd.s32 %s97, 1
    %p101 = scmp.eq.s32.totalorder %s21, 1
    %p102 = scmp.ne.s32.totalorder %s97, %s99
    %p103 = scmp.eq.s32.totalorder %s21, 0
    %p104 = por %p102, %p103
    %p105 = scmp.ne.s32.totalorder %s97, %s99
    %p106 = scmp.eq.s32.totalorder %s26, 1
    %p107 = por %p105, %p106
    %p108 = scmp.ne.s32.totalorder %s99, %s100
    %p109 = scmp.eq.s32.totalorder %s26, 0
    %p110 = por %p108, %p109
    %p111 = scmp.ne.s32.totalorder %s99, %s100
    %p112 = scmp.eq.s32.totalorder %s27, 1
    %p113 = por %p111, %p112
    %p115 = scmp.ne.s32.totalorder %s100, %s114
    %p116 = scmp.eq.s32.totalorder %s27, 0
    %p117 = por %p115, %p116
    %s119 = sadd.s32 %s118, 1
    %p122 = scmp.eq.s32.totalorder %s21, 1
    %p123 = scmp.ne.s32.totalorder %s118, %s120
    %p124 = scmp.eq.s32.totalorder %s21, 0
    %p125 = por %p123, %p124
    %p126 = scmp.ne.s32.totalorder %s118, %s120
    %p127 = scmp.eq.s32.totalorder %s26, 1
    %p128 = por %p126, %p127
    %p129 = scmp.ne.s32.totalorder %s120, %s121
    %p130 = scmp.eq.s32.totalorder %s26, 0
    %p131 = por %p129, %p130
    %p132 = scmp.ne.s32.totalorder %s120, %s121
    %p133 = scmp.eq.s32.totalorder %s27, 1
    %p134 = por %p132, %p133
    %p136 = scmp.ne.s32.totalorder %s121, %s135
    %p137 = scmp.eq.s32.totalorder %s27, 0
    %p138 = por %p136, %p137
    %s140 = sadd.s32 %s139, 1
    %p143 = scmp.eq.s32.totalorder %s21, 1
    %p144 = scmp.ne.s32.totalorder %s139, %s141
    %p145 = scmp.eq.s32.totalorder %s21, 0
    %p146 = por %p144, %p145
    %p147 = scmp.ne.s32.totalorder %s139, %s141
    %p148 = scmp.eq.s32.totalorder %s26, 1
    %p149 = por %p147, %p148
    %p150 = scmp.ne.s32.totalorder %s141, %s142
    %p151 = scmp.eq.s32.totalorder %s26, 0
    %p152 = por %p150, %p151
    %p153 = scmp.ne.s32.totalorder %s141, %s142
    %p154 = scmp.eq.s32.totalorder %s27, 1
    %p155 = por %p153, %p154
    %p157 = scmp.ne.s32.totalorder %s142, %s156
    %p158 = scmp.eq.s32.totalorder %s27, 0
    %p159 = por %p157, %p158
    %s161 = sadd.s32 %s160, 1
    %p164 = scmp.eq.s32.totalorder %s21, 1
    %p165 = scmp.ne.s32.totalorder %s160, %s162
    %p166 = scmp.eq.s32.totalorder %s21, 0
    %p167 = por %p165, %p166
    %p168 = scmp.ne.s32.totalorder %s160, %s162
    %p169 = scmp.eq.s32.totalorder %s26, 1
    %p170 = por %p168, %p169
    %p171 = scmp.ne.s32.totalorder %s162, %s163
    %p172 = scmp.eq.s32.totalorder %s26, 0
    %p173 = por %p171, %p172
    %p174 = scmp.ne.s32.totalorder %s162, %s163
    %p175 = scmp.eq.s32.totalorder %s27, 1
    %p176 = por %p174, %p175
    %p178 = scmp.ne.s32.totalorder %s163, %s177
    %p179 = scmp.eq.s32.totalorder %s27, 0
    %p180 = por %p178, %p179
    %s182 = sadd.s32 %s181, 1
    %p185 = scmp.eq.s32.totalorder %s21, 1
    %p186 = scmp.ne.s32.totalorder %s181, %s183
    %p187 = scmp.eq.s32.totalorder %s21, 0
    %p188 = por %p186, %p187
    %p189 = scmp.ne.s32.totalorder %s181, %s183
    %p190 = scmp.eq.s32.totalorder %s26, 1
    %p191 = por %p189, %p190
    %p192 = scmp.ne.s32.totalorder %s183, %s184
    %p193 = scmp.eq.s32.totalorder %s26, 0
    %p194 = por %p192, %p193
    %p195 = scmp.ne.s32.totalorder %s183, %s184
    %p196 = scmp.eq.s32.totalorder %s27, 1
    %p197 = por %p195, %p196
    %p199 = scmp.ne.s32.totalorder %s184, %s198
    %p200 = scmp.eq.s32.totalorder %s27, 0
    %p201 = por %p199, %p200
    %s203 = sadd.s32 %s202, 1
    %p206 = scmp.eq.s32.totalorder %s21, 1
    %p207 = scmp.ne.s32.totalorder %s202, %s204
    %p208 = scmp.eq.s32.totalorder %s21, 0
    %p209 = por %p207, %p208
    %p210 = scmp.ne.s32.totalorder %s202, %s204
    %p211 = scmp.eq.s32.totalorder %s26, 1
    %p212 = por %p210, %p211
    %p213 = scmp.ne.s32.totalorder %s204, %s205
    %p214 = scmp.eq.s32.totalorder %s26, 0
    %p215 = por %p213, %p214
    %p216 = scmp.ne.s32.totalorder %s204, %s205
    %p217 = scmp.eq.s32.totalorder %s27, 1
    %p218 = por %p216, %p217
    %p220 = scmp.ne.s32.totalorder %s205, %s219
    %p221 = scmp.eq.s32.totalorder %s27, 0
    %p222 = por %p220, %p221
    %s224 = sadd.s32 %s223, 1
    %p227 = scmp.eq.s32.totalorder %s21, 1
    %p228 = scmp.ne.s32.totalorder %s223, %s225
    %p229 = scmp.eq.s32.totalorder %s21, 0
    %p230 = por %p228, %p229
    %p231 = scmp.ne.s32.totalorder %s223, %s225
    %p232 = scmp.eq.s32.totalorder %s26, 1
    %p233 = por %p231, %p232
    %p234 = scmp.ne.s32.totalorder %s225, %s226
    %p235 = scmp.eq.s32.totalorder %s26, 0
    %p236 = por %p234, %p235
    %p237 = scmp.ne.s32.totalorder %s225, %s226
    %p238 = scmp.eq.s32.totalorder %s27, 1
    %p239 = por %p237, %p238
    %p241 = scmp.ne.s32.totalorder %s226, %s240
    %p242 = scmp.eq.s32.totalorder %s27, 0
    %p243 = por %p241, %p242
    %s245 = sadd.s32 %s244, 1
    %p248 = scmp.eq.s32.totalorder %s21, 1
    %p249 = scmp.ne.s32.totalorder %s244, %s246
    %p250 = scmp.eq.s32.totalorder %s21, 0
    %p251 = por %p249, %p250
    %p252 = scmp.ne.s32.totalorder %s244, %s246
    %p253 = scmp.eq.s32.totalorder %s26, 1
    %p254 = por %p252, %p253
    %p255 = scmp.ne.s32.totalorder %s246, %s247
    %p256 = scmp.eq.s32.totalorder %s26, 0
    %p257 = por %p255, %p256
    %p258 = scmp.ne.s32.totalorder %s246, %s247
    %p259 = scmp.eq.s32.totalorder %s27, 1
    %p260 = por %p258, %p259
    %p262 = scmp.ne.s32.totalorder %s247, %s261
    %p263 = scmp.eq.s32.totalorder %s27, 0
    %p264 = por %p262, %p263
    %s266 = sadd.s32 %s265, 1
    %p269 = scmp.eq.s32.totalorder %s21, 1
    %p270 = scmp.ne.s32.totalorder %s265, %s267
    %p271 = scmp.eq.s32.totalorder %s21, 0
    %p272 = por %p270, %p271
    %p273 = scmp.ne.s32.totalorder %s265, %s267
    %p274 = scmp.eq.s32.totalorder %s26, 1
    %p275 = por %p273, %p274
    %p276 = scmp.ne.s32.totalorder %s267, %s268
    %p277 = scmp.eq.s32.totalorder %s26, 0
    %p278 = por %p276, %p277
    %p279 = scmp.ne.s32.totalorder %s267, %s268
    %p280 = scmp.eq.s32.totalorder %s27, 1
    %p281 = por %p279, %p280
    %p283 = scmp.ne.s32.totalorder %s268, %s282
    %p284 = scmp.eq.s32.totalorder %s27, 0
    %p285 = por %p283, %p284
    %s287 = sadd.s32 %s286, 1
    %p290 = scmp.eq.s32.totalorder %s21, 1
    %p291 = scmp.ne.s32.totalorder %s286, %s288
    %p292 = scmp.eq.s32.totalorder %s21, 0
    %p293 = por %p291, %p292
    %p294 = scmp.ne.s32.totalorder %s286, %s288
    %p295 = scmp.eq.s32.totalorder %s26, 1
    %p296 = por %p294, %p295
    %p297 = scmp.ne.s32.totalorder %s288, %s289
    %p298 = scmp.eq.s32.totalorder %s26, 0
    %p299 = por %p297, %p298
    %p300 = scmp.ne.s32.totalorder %s288, %s289
    %p301 = scmp.eq.s32.totalorder %s27, 1
    %p302 = por %p300, %p301
    %p304 = scmp.ne.s32.totalorder %s289, %s303
    %p305 = scmp.eq.s32.totalorder %s27, 0
    %p306 = por %p304, %p305
    %s307 = ssub.s32 %s21, %s28
    %p308 = scmp.eq.s32.totalorder %s307, 0
    %s310 = sadd.s32 %s309, 1
    %s311 = scalar_select %p308, %s309, %s310
    %p314 = pneg %p308
    %p315 = scmp.eq.s32.totalorder %s21, 1
    %p316 = por %p314, %p315
    %p317 = scmp.ne.s32.totalorder %s309, %s312
    %p318 = scmp.eq.s32.totalorder %s21, 0
    %p319 = por %p317, %p318
    %p320 = scmp.ne.s32.totalorder %s309, %s312
    %p321 = scmp.eq.s32.totalorder %s26, 1
    %p322 = por %p320, %p321
    %p323 = scmp.ne.s32.totalorder %s312, %s313
    %p324 = scmp.eq.s32.totalorder %s26, 0
    %p325 = por %p323, %p324
    %p326 = scmp.ne.s32.totalorder %s312, %s313
    %p327 = scmp.eq.s32.totalorder %s27, 1
    %p328 = por %p326, %p327
    %p330 = scmp.ne.s32.totalorder %s313, %s329
    %p331 = scmp.eq.s32.totalorder %s27, 0
    %p332 = por %p330, %p331
    %p333 = scmp.le.s32.totalorder 1, %s21
    %p334 = scmp.lt.s32.totalorder %s21, 3
    %p335 = pnand %p333, %p334
    %p336 = pneg %p335
    // Predicated region
    $region9: #{deepfm_forward.1} parent=5 // pred_check
      _
    $region10: #{deepfm_forward.1} parent=5 // pred_check_branch
      %338 = sbr.rel (%p335) target = $region12
    $region11: #{deepfm_forward.1} parent=5 // pred_region
      %s339 = ssub.s32 %s21, 1
      // Predicated region
      $region13: #{deepfm_forward.1} parent=11 // pred_check
        %p340 = pneg %p68
      $region14: #{deepfm_forward.1} parent=11 // pred_check_branch
        %342 = sbr.rel (%p340) target = $region16
      $region15: #{deepfm_forward.1} parent=11 // pred_region
        _
      $region16: #{deepfm_forward.1} parent=11 // pred_fallthru
        _
      // Predicated region
      $region17: #{deepfm_forward.1} parent=11 // pred_check
        %p343 = pneg %p89
      $region18: #{deepfm_forward.1} parent=11 // pred_check_branch
        %345 = sbr.rel (%p343) target = $region20
      $region19: #{deepfm_forward.1} parent=11 // pred_region
        _
      $region20: #{deepfm_forward.1} parent=11 // pred_fallthru
        _
      // Predicated region
      $region21: #{deepfm_forward.1} parent=11 // pred_check
        %p346 = pneg %p110
      $region22: #{deepfm_forward.1} parent=11 // pred_check_branch
        %348 = sbr.rel (%p346) target = $region24
      $region23: #{deepfm_forward.1} parent=11 // pred_region
        _
      $region24: #{deepfm_forward.1} parent=11 // pred_fallthru
        _
      // Predicated region
      $region25: #{deepfm_forward.1} parent=11 // pred_check
        %p349 = pneg %p131
      $region26: #{deepfm_forward.1} parent=11 // pred_check_branch
        %351 = sbr.rel (%p349) target = $region28
      $region27: #{deepfm_forward.1} parent=11 // pred_region
        _
      $region28: #{deepfm_forward.1} parent=11 // pred_fallthru
        _
      // Predicated region
      $region29: #{deepfm_forward.1} parent=11 // pred_check
        %p352 = pneg %p152
      $region30: #{deepfm_forward.1} parent=11 // pred_check_branch
        %354 = sbr.rel (%p352) target = $region32
      $region31: #{deepfm_forward.1} parent=11 // pred_region
        _
      $region32: #{deepfm_forward.1} parent=11 // pred_fallthru
        _
      // Predicated region
      $region33: #{deepfm_forward.1} parent=11 // pred_check
        %p355 = pneg %p173
      $region34: #{deepfm_forward.1} parent=11 // pred_check_branch
        %357 = sbr.rel (%p355) target = $region36
      $region35: #{deepfm_forward.1} parent=11 // pred_region
        _
      $region36: #{deepfm_forward.1} parent=11 // pred_fallthru
        _
      // Predicated region
      $region37: #{deepfm_forward.1} parent=11 // pred_check
        %p358 = pneg %p194
      $region38: #{deepfm_forward.1} parent=11 // pred_check_branch
        %360 = sbr.rel (%p358) target = $region40
      $region39: #{deepfm_forward.1} parent=11 // pred_region
        _
      $region40: #{deepfm_forward.1} parent=11 // pred_fallthru
        _
      // Predicated region
      $region41: #{deepfm_forward.1} parent=11 // pred_check
        %p361 = pneg %p215
      $region42: #{deepfm_forward.1} parent=11 // pred_check_branch
        %363 = sbr.rel (%p361) target = $region44
      $region43: #{deepfm_forward.1} parent=11 // pred_region
        _
      $region44: #{deepfm_forward.1} parent=11 // pred_fallthru
        _
      // Predicated region
      $region45: #{deepfm_forward.1} parent=11 // pred_check
        %p364 = pneg %p236
      $region46: #{deepfm_forward.1} parent=11 // pred_check_branch
        %366 = sbr.rel (%p364) target = $region48
      $region47: #{deepfm_forward.1} parent=11 // pred_region
        _
      $region48: #{deepfm_forward.1} parent=11 // pred_fallthru
        _
      // Predicated region
      $region49: #{deepfm_forward.1} parent=11 // pred_check
        %p367 = pneg %p257
      $region50: #{deepfm_forward.1} parent=11 // pred_check_branch
        %369 = sbr.rel (%p367) target = $region52
      $region51: #{deepfm_forward.1} parent=11 // pred_region
        _
      $region52: #{deepfm_forward.1} parent=11 // pred_fallthru
        _
      // Predicated region
      $region53: #{deepfm_forward.1} parent=11 // pred_check
        %p370 = pneg %p278
      $region54: #{deepfm_forward.1} parent=11 // pred_check_branch
        %372 = sbr.rel (%p370) target = $region56
      $region55: #{deepfm_forward.1} parent=11 // pred_region
        _
      $region56: #{deepfm_forward.1} parent=11 // pred_fallthru
        _
      // Predicated region
      $region57: #{deepfm_forward.1} parent=11 // pred_check
        %p373 = pneg %p299
      $region58: #{deepfm_forward.1} parent=11 // pred_check_branch
        %375 = sbr.rel (%p373) target = $region60
      $region59: #{deepfm_forward.1} parent=11 // pred_region
        _
      $region60: #{deepfm_forward.1} parent=11 // pred_fallthru
        _
    $region12: #{deepfm_forward.1} parent=5 // pred_fallthru
      _
    %p376 = scmp.lt.s32.totalorder %s21, 2
    // Predicated region
    $region61: #{deepfm_forward.1} parent=5 // pred_check
      %p377 = pneg %p376
    $region62: #{deepfm_forward.1} parent=5 // pred_check_branch
      %379 = sbr.rel (%p377) target = $region64
    $region63: #{deepfm_forward.1} parent=5 // pred_region
      // Predicated region
      $region65: #{deepfm_forward.1} parent=63 // pred_check
        %p380 = pneg %p41
      $region66: #{deepfm_forward.1} parent=63 // pred_check_branch
        %382 = sbr.rel (%p380) target = $region68
      $region67: #{deepfm_forward.1} parent=63 // pred_region
        %s383 = smul.u32 16, %s21
        %p384 = scmp.lt.s32.totalorder %s383, 31
        %s385 = scalar_select %p384, %s383, 31
        %s386 = smul.addr %s385, 8
        %s387 = scalar_lea.vmem %s0, %s386
        %s388 = smul.u32 16, %s21
      $region68: #{deepfm_forward.1} parent=63 // pred_fallthru
        _
    $region64: #{deepfm_forward.1} parent=5 // pred_fallthru
      _
    %p389 = scmp.le.s32.totalorder 1, %s21
    %p390 = scmp.lt.s32.totalorder %s21, 3
    %p391 = pnand %p389, %p390
    %p392 = pneg %p391
    // Predicated region
    $region69: #{deepfm_forward.1} parent=5 // pred_check
      _
    $region70: #{deepfm_forward.1} parent=5 // pred_check_branch
      %394 = sbr.rel (%p391) target = $region72
    $region71: #{deepfm_forward.1} parent=5 // pred_region
      %s395 = ssub.s32 %s21, 1
      %s396 = smul.u32 16, %s26
      %p397 = scmp.lt.s32.totalorder %s396, 31
      %s398 = scalar_select %p397, %s396, 31
      %s399 = smul.addr %s398, 8
      %s400 = scalar_lea.vmem %s0, %s399
      %p401 = pneg %p47
      %p402 = pneg %p44
      %p403 = pneg %p68
      %p404 = pneg %p65
      %p405 = pneg %p89
      %p406 = pneg %p86
      %p407 = pneg %p110
      %p408 = pneg %p107
      %p409 = pneg %p131
      %p410 = pneg %p128
      %p411 = pneg %p152
      %p412 = pneg %p149
      %p413 = pneg %p173
      %p414 = pneg %p170
      %p415 = pneg %p194
      %p416 = pneg %p191
      %p417 = pneg %p215
      %p418 = pneg %p212
      %p419 = pneg %p236
      %p420 = pneg %p233
      %p421 = pneg %p257
      %p422 = pneg %p254
      %p423 = pneg %p278
      %p424 = pneg %p275
      %p425 = pneg %p299
      %p426 = pneg %p296
      %p427 = pneg %p325
      %p428 = pneg %p322
      %s429 = smul.u32 16, %s26
      %p430 = scmp.lt.s32.totalorder %s429, 31
      %s431 = scalar_select %p430, %s429, 31
      %s432 = smul.addr %s431, 8
      %s433 = scalar_lea.vmem %s13, %s432
      %s434 = smul.u32 16, %s26
      %p435 = scmp.lt.s32.totalorder %s434, 31
      %s436 = scalar_select %p435, %s434, 31
      %s437 = smul.addr %s436, 8
      %s438 = scalar_lea.vmem %s0, %s437
      %s439 = smul.u32 16, %s26
      %s440 = smul.u32 16, %s26
      %p441 = scmp.lt.s32.totalorder %s440, 31
      %s442 = scalar_select %p441, %s440, 31
      %s443 = smul.addr %s442, 8
      %s444 = scalar_lea.vmem %s13, %s443
      %s445 = smul.u32 16, %s26
      %v446 = vld [vmem:[%s438] sm:$0xff]
      %v447 = vld [vmem:[%s438 + $0x8] sm:$0xff]
      %v448 = vld [vmem:[%s438 + $0x10] sm:$0xff]
      %v449 = vld [vmem:[%s438 + $0x18] sm:$0xff]
      %v450 = vld [vmem:[%s438 + $0x20] sm:$0xff]
      %v451 = vld [vmem:[%s438 + $0x28] sm:$0xff]
      %v452 = vld [vmem:[%s438 + $0x30] sm:$0xff]
      %v453 = vld [vmem:[%s438 + $0x38] sm:$0xff]
      %v454 = vld [vmem:[%s438 + $0x40] sm:$0xff]
      %v455 = vld [vmem:[%s438 + $0x48] sm:$0xff]
      %v456 = vld [vmem:[%s438 + $0x50] sm:$0xff]
      %v457 = vld [vmem:[%s438 + $0x58] sm:$0xff]
      %v458 = vld [vmem:[%s438 + $0x60] sm:$0xff]
      %v459 = vld [vmem:[%s438 + $0x68] sm:$0xff]
      %v460 = vld [vmem:[%s438 + $0x70] sm:$0xff]
      %v461 = vld [vmem:[%s438 + $0x78] sm:$0xff]
      %v462 = vld [vmem:[%s1] sm:$0xff]
      %v463 = vld [vmem:[%s1 + $0x8] sm:$0xff]
      %v464 = vld [vmem:[%s1 + $0x10] sm:$0xff]
      %v465 = vld [vmem:[%s1 + $0x18] sm:$0xff]
      %482 = vrot.lane.b32.xlu0 %v446, 120
      %v483 = vpop.permute.xlu0 %482
      %484 = vrot.lane.b32.xlu0 %v447, 120
      %v485 = vpop.permute.xlu0 %484
      %486 = vrot.lane.b32.xlu0 %v448, 120
      %v487 = vpop.permute.xlu0 %486
      %488 = vrot.lane.b32.xlu0 %v449, 120
      %v489 = vpop.permute.xlu0 %488
      %490 = vrot.lane.b32.xlu0 %v450, 120
      %v491 = vpop.permute.xlu0 %490
      %492 = vrot.lane.b32.xlu0 %v451, 120
      %v493 = vpop.permute.xlu0 %492
      %494 = vrot.lane.b32.xlu0 %v452, 120
      %v495 = vpop.permute.xlu0 %494
      %496 = vrot.lane.b32.xlu0 %v453, 120
      %v497 = vpop.permute.xlu0 %496
      %498 = vrot.lane.b32.xlu0 %v454, 120
      %v499 = vpop.permute.xlu0 %498
      %500 = vrot.lane.b32.xlu0 %v455, 120
      %v501 = vpop.permute.xlu0 %500
      %502 = vrot.lane.b32.xlu0 %v456, 120
      %v503 = vpop.permute.xlu0 %502
      %504 = vrot.lane.b32.xlu0 %v457, 120
      %v505 = vpop.permute.xlu0 %504
      %506 = vrot.lane.b32.xlu0 %v458, 120
      %v507 = vpop.permute.xlu0 %506
      %508 = vrot.lane.b32.xlu0 %v459, 120
      %v509 = vpop.permute.xlu0 %508
      %510 = vrot.lane.b32.xlu0 %v460, 120
      %v511 = vpop.permute.xlu0 %510
      %512 = vrot.lane.b32.xlu0 %v461, 120
      %v513 = vpop.permute.xlu0 %512
      %vm514 = vcmask 64512
      %v515 = vsel %vm514, %v483, 0
      %v517 = vsel %vm514, %v485, 0
      %v519 = vsel %vm514, %v487, 0
      %v521 = vsel %vm514, %v489, 0
      %v523 = vsel %vm514, %v491, 0
      %v525 = vsel %vm514, %v493, 0
      %v527 = vsel %vm514, %v495, 0
      %v529 = vsel %vm514, %v497, 0
      %v531 = vsel %vm514, %v499, 0
      %v533 = vsel %vm514, %v501, 0
      %v535 = vsel %vm514, %v503, 0
      %v537 = vsel %vm514, %v505, 0
      %v539 = vsel %vm514, %v507, 0
      %v541 = vsel %vm514, %v509, 0
      %v543 = vsel %vm514, %v511, 0
      %v545 = vsel %vm514, %v513, 0
      %547 = vmatprep.subr.mxu0 %v463
      %548 = vmatpush1.msra.mxu0 %v462
      %549 = vmatprep.subr.mxu0 0.0
      %550 = vmatpush1.msra.mxu0 0.0
      %551 = vmatprep.subr.mxu0 0.0
      %552 = vmatpush1.msra.mxu0 0.0
      %553 = vmatprep.subr.mxu0 0.0
      %554 = vmatpush1.msra.mxu0 0.0
      %555 = vmatprep.subr.mxu0 0.0
      %556 = vmatpush1.msra.mxu0 0.0
      %557 = vmatprep.subr.mxu0 0.0
      %558 = vmatpush1.msra.mxu0 0.0
      %559 = vmatprep.subr.mxu0 0.0
      %560 = vmatpush1.msra.mxu0 0.0
      %561 = vmatprep.subr.mxu0 0.0
      %562 = vmatpush1.msra.mxu0 0.0
      %563 = vmatprep.subr.mxu0 0.0
      %564 = vmatpush1.msra.mxu0 0.0
      %565 = vmatprep.subr.mxu0 0.0
      %566 = vmatpush1.msra.mxu0 0.0
      %567 = vmatprep.subr.mxu0 0.0
      %568 = vmatpush1.msra.mxu0 0.0
      %569 = vmatprep.subr.mxu0 0.0
      %570 = vmatpush1.msra.mxu0 0.0
      %571 = vmatprep.subr.mxu0 0.0
      %572 = vmatpush1.msra.mxu0 0.0
      %573 = vmatprep.subr.mxu0 0.0
      %574 = vmatpush1.msra.mxu0 0.0
      %575 = vmatprep.subr.mxu0 0.0
      %576 = vmatpush1.msra.mxu0 0.0
      %577 = vmatprep.subr.mxu0 0.0
      %578 = vmatpush1.msra.mxu0 0.0
      %579 = vmatprep.subr.mxu0 0.0
      %580 = vmatpush1.msra.mxu0 0.0
      %581 = vmatprep.subr.mxu0 0.0
      %582 = vmatpush1.msra.mxu0 0.0
      %583 = vmatprep.subr.mxu0 0.0
      %584 = vmatpush1.msra.mxu0 0.0
      %585 = vmatprep.subr.mxu0 0.0
      %586 = vmatpush1.msra.mxu0 0.0
      %587 = vmatprep.subr.mxu0 0.0
      %588 = vmatpush1.msra.mxu0 0.0
      %589 = vmatprep.subr.mxu0 0.0
      %590 = vmatpush1.msra.mxu0 0.0
      %591 = vmatprep.subr.mxu0 0.0
      %592 = vmatpush1.msra.mxu0 0.0
      %593 = vmatprep.subr.mxu0 0.0
      %594 = vmatpush1.msra.mxu0 0.0
      %595 = vmatprep.subr.mxu0 0.0
      %596 = vmatpush1.msra.mxu0 0.0
      %597 = vmatprep.subr.mxu0 0.0
      %598 = vmatpush1.msra.mxu0 0.0
      %599 = vmatprep.subr.mxu0 0.0
      %600 = vmatpush1.msra.mxu0 0.0
      %601 = vmatprep.subr.mxu0 0.0
      %602 = vmatpush1.msra.mxu0 0.0
      %603 = vmatprep.subr.mxu0 0.0
      %604 = vmatpush1.msra.mxu0 0.0
      %605 = vmatprep.subr.mxu0 0.0
      %606 = vmatpush1.msra.mxu0 0.0
      %607 = vmatprep.subr.mxu0 0.0
      %608 = vmatpush1.msra.mxu0 0.0
      %609 = vmatprep.subr.mxu0 0.0
      %610 = vmatpush1.msra.mxu0 0.0
      %611 = vmatprep.mubr.f32.mxu0 0.0
      %612 = vmatmul.mubr.f32.gmra.mrb[0].mxu0 %v515
      %v613 = vpop.f32.mrb[0].mxu0
      %v614 = vadd.f32 0.0, %v613
      %v615 = vpop.f32.mrb[0].mxu0
      %v616 = vadd.f32 0.0, %v615
      %617 = vmatprep.mubr.f32.mxu0 0.0
      %618 = vmatmul.mubr.f32.gmra.mrb[0].mxu0 %v517
      %v619 = vpop.f32.mrb[0].mxu0
      %v620 = vadd.f32 0.0, %v619
      %v621 = vpop.f32.mrb[0].mxu0
      %v622 = vadd.f32 0.0, %v621
      %623 = vmatprep.mubr.f32.mxu0 0.0
      %624 = vmatmul.mubr.f32.gmra.mrb[0].mxu0 %v519
      %v625 = vpop.f32.mrb[0].mxu0
      %v626 = vadd.f32 0.0, %v625
      %v627 = vpop.f32.mrb[0].mxu0
      %v628 = vadd.f32 0.0, %v627
      %629 = vmatprep.mubr.f32.mxu0 0.0
      %630 = vmatmul.mubr.f32.gmra.mrb[0].mxu0 %v521
      %v631 = vpop.f32.mrb[0].mxu0
      %v632 = vadd.f32 0.0, %v631
      %v633 = vpop.f32.mrb[0].mxu0
      %v634 = vadd.f32 0.0, %v633
      %635 = vmatprep.mubr.f32.mxu0 0.0
      %636 = vmatmul.mubr.f32.gmra.mrb[0].mxu0 %v523
      %v637 = vpop.f32.mrb[0].mxu0
      %v638 = vadd.f32 0.0, %v637
      %v639 = vpop.f32.mrb[0].mxu0
      %v640 = vadd.f32 0.0, %v639
      %641 = vmatprep.mubr.f32.mxu0 0.0
      %642 = vmatmul.mubr.f32.gmra.mrb[0].mxu0 %v525
      %v643 = vpop.f32.mrb[0].mxu0
      %v644 = vadd.f32 0.0, %v643
      %v645 = vpop.f32.mrb[0].mxu0
      %v646 = vadd.f32 0.0, %v645
      %647 = vmatprep.mubr.f32.mxu0 0.0
      %648 = vmatmul.mubr.f32.gmra.mrb[0].mxu0 %v527
      %v649 = vpop.f32.mrb[0].mxu0
      %v650 = vadd.f32 0.0, %v649
      %v651 = vpop.f32.mrb[0].mxu0
      %v652 = vadd.f32 0.0, %v651
      %653 = vmatprep.mubr.f32.mxu0 0.0
      %654 = vmatmul.mubr.f32.gmra.mrb[0].mxu0 %v529
      %v655 = vpop.f32.mrb[0].mxu0
      %v656 = vadd.f32 0.0, %v655
      %v657 = vpop.f32.mrb[0].mxu0
      %v658 = vadd.f32 0.0, %v657
      %659 = vmatprep.mubr.f32.mxu0 0.0
      %660 = vmatmul.mubr.f32.gmra.mrb[0].mxu0 %v531
      %v661 = vpop.f32.mrb[0].mxu0
      %v662 = vadd.f32 0.0, %v661
      %v663 = vpop.f32.mrb[0].mxu0
      %v664 = vadd.f32 0.0, %v663
      %665 = vmatprep.mubr.f32.mxu0 0.0
      %666 = vmatmul.mubr.f32.gmra.mrb[0].mxu0 %v533
      %v667 = vpop.f32.mrb[0].mxu0
      %v668 = vadd.f32 0.0, %v667
      %v669 = vpop.f32.mrb[0].mxu0
      %v670 = vadd.f32 0.0, %v669
      %671 = vmatprep.mubr.f32.mxu0 0.0
      %672 = vmatmul.mubr.f32.gmra.mrb[0].mxu0 %v535
      %v673 = vpop.f32.mrb[0].mxu0
      %v674 = vadd.f32 0.0, %v673
      %v675 = vpop.f32.mrb[0].mxu0
      %v676 = vadd.f32 0.0, %v675
      %677 = vmatprep.mubr.f32.mxu0 0.0
      %678 = vmatmul.mubr.f32.gmra.mrb[0].mxu0 %v537
      %v679 = vpop.f32.mrb[0].mxu0
      %v680 = vadd.f32 0.0, %v679
      %v681 = vpop.f32.mrb[0].mxu0
      %v682 = vadd.f32 0.0, %v681
      %683 = vmatprep.mubr.f32.mxu0 0.0
      %684 = vmatmul.mubr.f32.gmra.mrb[0].mxu0 %v539
      %v685 = vpop.f32.mrb[0].mxu0
      %v686 = vadd.f32 0.0, %v685
      %v687 = vpop.f32.mrb[0].mxu0
      %v688 = vadd.f32 0.0, %v687
      %689 = vmatprep.mubr.f32.mxu0 0.0
      %690 = vmatmul.mubr.f32.gmra.mrb[0].mxu0 %v541
      %v691 = vpop.f32.mrb[0].mxu0
      %v692 = vadd.f32 0.0, %v691
      %v693 = vpop.f32.mrb[0].mxu0
      %v694 = vadd.f32 0.0, %v693
      %695 = vmatprep.mubr.f32.mxu0 0.0
      %696 = vmatmul.mubr.f32.gmra.mrb[0].mxu0 %v543
      %v697 = vpop.f32.mrb[0].mxu0
      %v698 = vadd.f32 0.0, %v697
      %v699 = vpop.f32.mrb[0].mxu0
      %v700 = vadd.f32 0.0, %v699
      %701 = vmatprep.mubr.f32.mxu0 0.0
      %702 = vmatmul.mubr.f32.gmra.mrb[0].mxu0 %v545
      %v703 = vpop.f32.mrb[0].mxu0
      %v704 = vadd.f32 0.0, %v703
      %v705 = vpop.f32.mrb[0].mxu0
      %v706 = vadd.f32 0.0, %v705
      %707 = vdwg.mxu0
      %708 = vmatprep.subr.mxu0 %v465
      %709 = vmatpush1.msra.mxu0 %v464
      %710 = vmatprep.subr.mxu0 0.0
      %711 = vmatpush1.msra.mxu0 0.0
      %712 = vmatprep.subr.mxu0 0.0
      %713 = vmatpush1.msra.mxu0 0.0
      %714 = vmatprep.subr.mxu0 0.0
      %715 = vmatpush1.msra.mxu0 0.0
      %716 = vmatprep.subr.mxu0 0.0
      %717 = vmatpush1.msra.mxu0 0.0
      %718 = vmatprep.subr.mxu0 0.0
      %719 = vmatpush1.msra.mxu0 0.0
      %720 = vmatprep.subr.mxu0 0.0
      %721 = vmatpush1.msra.mxu0 0.0
      %722 = vmatprep.subr.mxu0 0.0
      %723 = vmatpush1.msra.mxu0 0.0
      %724 = vmatprep.subr.mxu0 0.0
      %725 = vmatpush1.msra.mxu0 0.0
      %726 = vmatprep.subr.mxu0 0.0
      %727 = vmatpush1.msra.mxu0 0.0
      %728 = vmatprep.subr.mxu0 0.0
      %729 = vmatpush1.msra.mxu0 0.0
      %730 = vmatprep.subr.mxu0 0.0
      %731 = vmatpush1.msra.mxu0 0.0
      %732 = vmatprep.subr.mxu0 0.0
      %733 = vmatpush1.msra.mxu0 0.0
      %734 = vmatprep.subr.mxu0 0.0
      %735 = vmatpush1.msra.mxu0 0.0
      %736 = vmatprep.subr.mxu0 0.0
      %737 = vmatpush1.msra.mxu0 0.0
      %738 = vmatprep.subr.mxu0 0.0
      %739 = vmatpush1.msra.mxu0 0.0
      %740 = vmatprep.subr.mxu0 0.0
      %741 = vmatpush1.msra.mxu0 0.0
      %742 = vmatprep.subr.mxu0 0.0
      %743 = vmatpush1.msra.mxu0 0.0
      %744 = vmatprep.subr.mxu0 0.0
      %745 = vmatpush1.msra.mxu0 0.0
      %746 = vmatprep.subr.mxu0 0.0
      %747 = vmatpush1.msra.mxu0 0.0
      %748 = vmatprep.subr.mxu0 0.0
      %749 = vmatpush1.msra.mxu0 0.0
      %750 = vmatprep.subr.mxu0 0.0
      %751 = vmatpush1.msra.mxu0 0.0
      %752 = vmatprep.subr.mxu0 0.0
      %753 = vmatpush1.msra.mxu0 0.0
      %754 = vmatprep.subr.mxu0 0.0
      %755 = vmatpush1.msra.mxu0 0.0
      %756 = vmatprep.subr.mxu0 0.0
      %757 = vmatpush1.msra.mxu0 0.0
      %758 = vmatprep.subr.mxu0 0.0
      %759 = vmatpush1.msra.mxu0 0.0
      %760 = vmatprep.subr.mxu0 0.0
      %761 = vmatpush1.msra.mxu0 0.0
      %762 = vmatprep.subr.mxu0 0.0
      %763 = vmatpush1.msra.mxu0 0.0
      %764 = vmatprep.subr.mxu0 0.0
      %765 = vmatpush1.msra.mxu0 0.0
      %766 = vmatprep.subr.mxu0 0.0
      %767 = vmatpush1.msra.mxu0 0.0
      %768 = vmatprep.subr.mxu0 0.0
      %769 = vmatpush1.msra.mxu0 0.0
      %770 = vmatprep.subr.mxu0 0.0
      %771 = vmatpush1.msra.mxu0 0.0
      %772 = vmatprep.mubr.f32.mxu0 0.0
      %773 = vmatmul.mubr.f32.gmra.mrb[0].mxu0 %v515
      %v774 = vpop.f32.mrb[0].mxu0
      %v775 = vadd.f32 0.0, %v774
      %v776 = vpop.f32.mrb[0].mxu0
      %v777 = vadd.f32 0.0, %v776
      %778 = vmatprep.mubr.f32.mxu0 0.0
      %779 = vmatmul.mubr.f32.gmra.mrb[0].mxu0 %v517
      %v780 = vpop.f32.mrb[0].mxu0
      %v781 = vadd.f32 0.0, %v780
      %v782 = vpop.f32.mrb[0].mxu0
      %v783 = vadd.f32 0.0, %v782
      %784 = vmatprep.mubr.f32.mxu0 0.0
      %785 = vmatmul.mubr.f32.gmra.mrb[0].mxu0 %v519
      %v786 = vpop.f32.mrb[0].mxu0
      %v787 = vadd.f32 0.0, %v786
      %v788 = vpop.f32.mrb[0].mxu0
      %v789 = vadd.f32 0.0, %v788
      %790 = vmatprep.mubr.f32.mxu0 0.0
      %791 = vmatmul.mubr.f32.gmra.mrb[0].mxu0 %v521
      %v792 = vpop.f32.mrb[0].mxu0
      %v793 = vadd.f32 0.0, %v792
      %v794 = vpop.f32.mrb[0].mxu0
      %v795 = vadd.f32 0.0, %v794
      %796 = vmatprep.mubr.f32.mxu0 0.0
      %797 = vmatmul.mubr.f32.gmra.mrb[0].mxu0 %v523
      %v798 = vpop.f32.mrb[0].mxu0
      %v799 = vadd.f32 0.0, %v798
      %v800 = vpop.f32.mrb[0].mxu0
      %v801 = vadd.f32 0.0, %v800
      %802 = vmatprep.mubr.f32.mxu0 0.0
      %803 = vmatmul.mubr.f32.gmra.mrb[0].mxu0 %v525
      %v804 = vpop.f32.mrb[0].mxu0
      %v805 = vadd.f32 0.0, %v804
      %v806 = vpop.f32.mrb[0].mxu0
      %v807 = vadd.f32 0.0, %v806
      %808 = vmatprep.mubr.f32.mxu0 0.0
      %809 = vmatmul.mubr.f32.gmra.mrb[0].mxu0 %v527
      %v810 = vpop.f32.mrb[0].mxu0
      %v811 = vadd.f32 0.0, %v810
      %v812 = vpop.f32.mrb[0].mxu0
      %v813 = vadd.f32 0.0, %v812
      %814 = vmatprep.mubr.f32.mxu0 0.0
      %815 = vmatmul.mubr.f32.gmra.mrb[0].mxu0 %v529
      %v816 = vpop.f32.mrb[0].mxu0
      %v817 = vadd.f32 0.0, %v816
      %v818 = vpop.f32.mrb[0].mxu0
      %v819 = vadd.f32 0.0, %v818
      %820 = vmatprep.mubr.f32.mxu0 0.0
      %821 = vmatmul.mubr.f32.gmra.mrb[0].mxu0 %v531
      %v822 = vpop.f32.mrb[0].mxu0
      %v823 = vadd.f32 0.0, %v822
      %v824 = vpop.f32.mrb[0].mxu0
      %v825 = vadd.f32 0.0, %v824
      %826 = vmatprep.mubr.f32.mxu0 0.0
      %827 = vmatmul.mubr.f32.gmra.mrb[0].mxu0 %v533
      %v828 = vpop.f32.mrb[0].mxu0
      %v829 = vadd.f32 0.0, %v828
      %v830 = vpop.f32.mrb[0].mxu0
      %v831 = vadd.f32 0.0, %v830
      %832 = vmatprep.mubr.f32.mxu0 0.0
      %833 = vmatmul.mubr.f32.gmra.mrb[0].mxu0 %v535
      %v834 = vpop.f32.mrb[0].mxu0
      %v835 = vadd.f32 0.0, %v834
      %v836 = vpop.f32.mrb[0].mxu0
      %v837 = vadd.f32 0.0, %v836
      %838 = vmatprep.mubr.f32.mxu0 0.0
      %839 = vmatmul.mubr.f32.gmra.mrb[0].mxu0 %v537
      %v840 = vpop.f32.mrb[0].mxu0
      %v841 = vadd.f32 0.0, %v840
      %v842 = vpop.f32.mrb[0].mxu0
      %v843 = vadd.f32 0.0, %v842
      %844 = vmatprep.mubr.f32.mxu0 0.0
      %845 = vmatmul.mubr.f32.gmra.mrb[0].mxu0 %v539
      %v846 = vpop.f32.mrb[0].mxu0
      %v847 = vadd.f32 0.0, %v846
      %v848 = vpop.f32.mrb[0].mxu0
      %v849 = vadd.f32 0.0, %v848
      %850 = vmatprep.mubr.f32.mxu0 0.0
      %851 = vmatmul.mubr.f32.gmra.mrb[0].mxu0 %v541
      %v852 = vpop.f32.mrb[0].mxu0
      %v853 = vadd.f32 0.0, %v852
      %v854 = vpop.f32.mrb[0].mxu0
      %v855 = vadd.f32 0.0, %v854
      %856 = vmatprep.mubr.f32.mxu0 0.0
      %857 = vmatmul.mubr.f32.gmra.mrb[0].mxu0 %v543
      %v858 = vpop.f32.mrb[0].mxu0
      %v859 = vadd.f32 0.0, %v858
      %v860 = vpop.f32.mrb[0].mxu0
      %v861 = vadd.f32 0.0, %v860
      %862 = vmatprep.mubr.f32.mxu0 0.0
      %863 = vmatmul.mubr.f32.gmra.mrb[0].mxu0 %v545
      %v864 = vpop.f32.mrb[0].mxu0
      %v865 = vadd.f32 0.0, %v864
      %v866 = vpop.f32.mrb[0].mxu0
      %v867 = vadd.f32 0.0, %v866
      %868 = vdwg.mxu0
      %v869 = vsel %vm514, %v446, 0
      %v871 = vsel %vm514, %v447, 0
      %v873 = vsel %vm514, %v448, 0
      %v875 = vsel %vm514, %v449, 0
      %v877 = vsel %vm514, %v450, 0
      %v879 = vsel %vm514, %v451, 0
      %v881 = vsel %vm514, %v452, 0
      %v883 = vsel %vm514, %v453, 0
      %v885 = vsel %vm514, %v454, 0
      %v887 = vsel %vm514, %v455, 0
      %v889 = vsel %vm514, %v456, 0
      %v891 = vsel %vm514, %v457, 0
      %v893 = vsel %vm514, %v458, 0
      %v895 = vsel %vm514, %v459, 0
      %v897 = vsel %vm514, %v460, 0
      %v899 = vsel %vm514, %v461, 0
      %901 = vmatprep.subr.mxu0 %v463
      %902 = vmatpush1.msra.mxu0 %v462
      %903 = vmatprep.subr.mxu0 0.0
      %904 = vmatpush1.msra.mxu0 0.0
      %905 = vmatprep.subr.mxu0 0.0
      %906 = vmatpush1.msra.mxu0 0.0
      %907 = vmatprep.subr.mxu0 0.0
      %908 = vmatpush1.msra.mxu0 0.0
      %909 = vmatprep.subr.mxu0 0.0
      %910 = vmatpush1.msra.mxu0 0.0
      %911 = vmatprep.subr.mxu0 0.0
      %912 = vmatpush1.msra.mxu0 0.0
      %913 = vmatprep.subr.mxu0 0.0
      %914 = vmatpush1.msra.mxu0 0.0
      %915 = vmatprep.subr.mxu0 0.0
      %916 = vmatpush1.msra.mxu0 0.0
      %917 = vmatprep.subr.mxu0 0.0
      %918 = vmatpush1.msra.mxu0 0.0
      %919 = vmatprep.subr.mxu0 0.0
      %920 = vmatpush1.msra.mxu0 0.0
      %921 = vmatprep.subr.mxu0 0.0
      %922 = vmatpush1.msra.mxu0 0.0
      %923 = vmatprep.subr.mxu0 0.0
      %924 = vmatpush1.msra.mxu0 0.0
      %925 = vmatprep.subr.mxu0 0.0
      %926 = vmatpush1.msra.mxu0 0.0
      %927 = vmatprep.subr.mxu0 0.0
      %928 = vmatpush1.msra.mxu0 0.0
      %929 = vmatprep.subr.mxu0 0.0
      %930 = vmatpush1.msra.mxu0 0.0
      %931 = vmatprep.subr.mxu0 0.0
      %932 = vmatpush1.msra.mxu0 0.0
      %933 = vmatprep.subr.mxu0 0.0
      %934 = vmatpush1.msra.mxu0 0.0
      %935 = vmatprep.subr.mxu0 0.0
      %936 = vmatpush1.msra.mxu0 0.0
      %937 = vmatprep.subr.mxu0 0.0
      %938 = vmatpush1.msra.mxu0 0.0
      %939 = vmatprep.subr.mxu0 0.0
      %940 = vmatpush1.msra.mxu0 0.0
      %941 = vmatprep.subr.mxu0 0.0
      %942 = vmatpush1.msra.mxu0 0.0
      %943 = vmatprep.subr.mxu0 0.0
      %944 = vmatpush1.msra.mxu0 0.0
      %945 = vmatprep.subr.mxu0 0.0
      %946 = vmatpush1.msra.mxu0 0.0
      %947 = vmatprep.subr.mxu0 0.0
      %948 = vmatpush1.msra.mxu0 0.0
      %949 = vmatprep.subr.mxu0 0.0
      %950 = vmatpush1.msra.mxu0 0.0
      %951 = vmatprep.subr.mxu0 0.0
      %952 = vmatpush1.msra.mxu0 0.0
      %953 = vmatprep.subr.mxu0 0.0
      %954 = vmatpush1.msra.mxu0 0.0
      %955 = vmatprep.subr.mxu0 0.0
      %956 = vmatpush1.msra.mxu0 0.0
      %957 = vmatprep.subr.mxu0 0.0
      %958 = vmatpush1.msra.mxu0 0.0
      %959 = vmatprep.subr.mxu0 0.0
      %960 = vmatpush1.msra.mxu0 0.0
      %961 = vmatprep.subr.mxu0 0.0
      %962 = vmatpush1.msra.mxu0 0.0
      %963 = vmatprep.subr.mxu0 0.0
      %964 = vmatpush1.msra.mxu0 0.0
      %965 = vmatprep.mubr.f32.mxu0 0.0
      %966 = vmatmul.mubr.f32.gmra.mrb[0].mxu0 %v869
      %v967 = vpop.f32.mrb[0].mxu0
      %v968 = vadd.f32 0.0, %v967
      %v969 = vpop.f32.mrb[0].mxu0
      %v970 = vadd.f32 0.0, %v969
      %971 = vmatprep.mubr.f32.mxu0 0.0
      %972 = vmatmul.mubr.f32.gmra.mrb[0].mxu0 %v871
      %v973 = vpop.f32.mrb[0].mxu0
      %v974 = vadd.f32 0.0, %v973
      %v975 = vpop.f32.mrb[0].mxu0
      %v976 = vadd.f32 0.0, %v975
      %977 = vmatprep.mubr.f32.mxu0 0.0
      %978 = vmatmul.mubr.f32.gmra.mrb[0].mxu0 %v873
      %v979 = vpop.f32.mrb[0].mxu0
      %v980 = vadd.f32 0.0, %v979
      %v981 = vpop.f32.mrb[0].mxu0
      %v982 = vadd.f32 0.0, %v981
      %983 = vmatprep.mubr.f32.mxu0 0.0
      %984 = vmatmul.mubr.f32.gmra.mrb[0].mxu0 %v875
      %v985 = vpop.f32.mrb[0].mxu0
      %v986 = vadd.f32 0.0, %v985
      %v987 = vpop.f32.mrb[0].mxu0
      %v988 = vadd.f32 0.0, %v987
      %989 = vmatprep.mubr.f32.mxu0 0.0
      %990 = vmatmul.mubr.f32.gmra.mrb[0].mxu0 %v877
      %v991 = vpop.f32.mrb[0].mxu0
      %v992 = vadd.f32 0.0, %v991
      %v993 = vpop.f32.mrb[0].mxu0
      %v994 = vadd.f32 0.0, %v993
      %995 = vmatprep.mubr.f32.mxu0 0.0
      %996 = vmatmul.mubr.f32.gmra.mrb[0].mxu0 %v879
      %v997 = vpop.f32.mrb[0].mxu0
      %v998 = vadd.f32 0.0, %v997
      %v999 = vpop.f32.mrb[0].mxu0
      %v1000 = vadd.f32 0.0, %v999
      %1001 = vmatprep.mubr.f32.mxu0 0.0
      %1002 = vmatmul.mubr.f32.gmra.mrb[0].mxu0 %v881
      %v1003 = vpop.f32.mrb[0].mxu0
      %v1004 = vadd.f32 0.0, %v1003
      %v1005 = vpop.f32.mrb[0].mxu0
      %v1006 = vadd.f32 0.0, %v1005
      %1007 = vmatprep.mubr.f32.mxu0 0.0
      %1008 = vmatmul.mubr.f32.gmra.mrb[0].mxu0 %v883
      %v1009 = vpop.f32.mrb[0].mxu0
      %v1010 = vadd.f32 0.0, %v1009
      %v1011 = vpop.f32.mrb[0].mxu0
      %v1012 = vadd.f32 0.0, %v1011
      %1013 = vmatprep.mubr.f32.mxu0 0.0
      %1014 = vmatmul.mubr.f32.gmra.mrb[0].mxu0 %v885
      %v1015 = vpop.f32.mrb[0].mxu0
      %v1016 = vadd.f32 0.0, %v1015
      %v1017 = vpop.f32.mrb[0].mxu0
      %v1018 = vadd.f32 0.0, %v1017
      %1019 = vmatprep.mubr.f32.mxu0 0.0
      %1020 = vmatmul.mubr.f32.gmra.mrb[0].mxu0 %v887
      %v1021 = vpop.f32.mrb[0].mxu0
      %v1022 = vadd.f32 0.0, %v1021
      %v1023 = vpop.f32.mrb[0].mxu0
      %v1024 = vadd.f32 0.0, %v1023
      %1025 = vmatprep.mubr.f32.mxu0 0.0
      %1026 = vmatmul.mubr.f32.gmra.mrb[0].mxu0 %v889
      %v1027 = vpop.f32.mrb[0].mxu0
      %v1028 = vadd.f32 0.0, %v1027
      %v1029 = vpop.f32.mrb[0].mxu0
      %v1030 = vadd.f32 0.0, %v1029
      %1031 = vmatprep.mubr.f32.mxu0 0.0
      %1032 = vmatmul.mubr.f32.gmra.mrb[0].mxu0 %v891
      %v1033 = vpop.f32.mrb[0].mxu0
      %v1034 = vadd.f32 0.0, %v1033
      %v1035 = vpop.f32.mrb[0].mxu0
      %v1036 = vadd.f32 0.0, %v1035
      %1037 = vmatprep.mubr.f32.mxu0 0.0
      %1038 = vmatmul.mubr.f32.gmra.mrb[0].mxu0 %v893
      %v1039 = vpop.f32.mrb[0].mxu0
      %v1040 = vadd.f32 0.0, %v1039
      %v1041 = vpop.f32.mrb[0].mxu0
      %v1042 = vadd.f32 0.0, %v1041
      %1043 = vmatprep.mubr.f32.mxu0 0.0
      %1044 = vmatmul.mubr.f32.gmra.mrb[0].mxu0 %v895
      %v1045 = vpop.f32.mrb[0].mxu0
      %v1046 = vadd.f32 0.0, %v1045
      %v1047 = vpop.f32.mrb[0].mxu0
      %v1048 = vadd.f32 0.0, %v1047
      %1049 = vmatprep.mubr.f32.mxu0 0.0
      %1050 = vmatmul.mubr.f32.gmra.mrb[0].mxu0 %v897
      %v1051 = vpop.f32.mrb[0].mxu0
      %v1052 = vadd.f32 0.0, %v1051
      %v1053 = vpop.f32.mrb[0].mxu0
      %v1054 = vadd.f32 0.0, %v1053
      %1055 = vmatprep.mubr.f32.mxu0 0.0
      %1056 = vmatmul.mubr.f32.gmra.mrb[0].mxu0 %v899
      %v1057 = vpop.f32.mrb[0].mxu0
      %v1058 = vadd.f32 0.0, %v1057
      %v1059 = vpop.f32.mrb[0].mxu0
      %v1060 = vadd.f32 0.0, %v1059
      %1061 = vdwg.mxu0
      %1062 = vmatprep.subr.mxu0 %v465
      %1063 = vmatpush1.msra.mxu0 %v464
      %1064 = vmatprep.subr.mxu0 0.0
      %1065 = vmatpush1.msra.mxu0 0.0
      %1066 = vmatprep.subr.mxu0 0.0
      %1067 = vmatpush1.msra.mxu0 0.0
      %1068 = vmatprep.subr.mxu0 0.0
      %1069 = vmatpush1.msra.mxu0 0.0
      %1070 = vmatprep.subr.mxu0 0.0
      %1071 = vmatpush1.msra.mxu0 0.0
      %1072 = vmatprep.subr.mxu0 0.0
      %1073 = vmatpush1.msra.mxu0 0.0
      %1074 = vmatprep.subr.mxu0 0.0
      %1075 = vmatpush1.msra.mxu0 0.0
      %1076 = vmatprep.subr.mxu0 0.0
      %1077 = vmatpush1.msra.mxu0 0.0
      %1078 = vmatprep.subr.mxu0 0.0
      %1079 = vmatpush1.msra.mxu0 0.0
      %1080 = vmatprep.subr.mxu0 0.0
      %1081 = vmatpush1.msra.mxu0 0.0
      %1082 = vmatprep.subr.mxu0 0.0
      %1083 = vmatpush1.msra.mxu0 0.0
      %1084 = vmatprep.subr.mxu0 0.0
      %1085 = vmatpush1.msra.mxu0 0.0
      %1086 = vmatprep.subr.mxu0 0.0
      %1087 = vmatpush1.msra.mxu0 0.0
      %1088 = vmatprep.subr.mxu0 0.0
      %1089 = vmatpush1.msra.mxu0 0.0
      %1090 = vmatprep.subr.mxu0 0.0
      %1091 = vmatpush1.msra.mxu0 0.0
      %1092 = vmatprep.subr.mxu0 0.0
      %1093 = vmatpush1.msra.mxu0 0.0
      %1094 = vmatprep.subr.mxu0 0.0
      %1095 = vmatpush1.msra.mxu0 0.0
      %1096 = vmatprep.subr.mxu0 0.0
      %1097 = vmatpush1.msra.mxu0 0.0
      %1098 = vmatprep.subr.mxu0 0.0
      %1099 = vmatpush1.msra.mxu0 0.0
      %1100 = vmatprep.subr.mxu0 0.0
      %1101 = vmatpush1.msra.mxu0 0.0
      %1102 = vmatprep.subr.mxu0 0.0
      %1103 = vmatpush1.msra.mxu0 0.0
      %1104 = vmatprep.subr.mxu0 0.0
      %1105 = vmatpush1.msra.mxu0 0.0
      %1106 = vmatprep.subr.mxu0 0.0
      %1107 = vmatpush1.msra.mxu0 0.0
      %1108 = vmatprep.subr.mxu0 0.0
      %1109 = vmatpush1.msra.mxu0 0.0
      %1110 = vmatprep.subr.mxu0 0.0
      %1111 = vmatpush1.msra.mxu0 0.0
      %1112 = vmatprep.subr.mxu0 0.0
      %1113 = vmatpush1.msra.mxu0 0.0
      %1114 = vmatprep.subr.mxu0 0.0
      %1115 = vmatpush1.msra.mxu0 0.0
      %1116 = vmatprep.subr.mxu0 0.0
      %1117 = vmatpush1.msra.mxu0 0.0
      %1118 = vmatprep.subr.mxu0 0.0
      %1119 = vmatpush1.msra.mxu0 0.0
      %1120 = vmatprep.subr.mxu0 0.0
      %1121 = vmatpush1.msra.mxu0 0.0
      %1122 = vmatprep.subr.mxu0 0.0
      %1123 = vmatpush1.msra.mxu0 0.0
      %1124 = vmatprep.subr.mxu0 0.0
      %1125 = vmatpush1.msra.mxu0 0.0
      %1126 = vmatprep.mubr.f32.mxu0 0.0
      %1127 = vmatmul.mubr.f32.gmra.mrb[0].mxu0 %v869
      %v1128 = vpop.f32.mrb[0].mxu0
      %v1129 = vadd.f32 0.0, %v1128
      %v1130 = vpop.f32.mrb[0].mxu0
      %v1131 = vadd.f32 0.0, %v1130
      %1132 = vmatprep.mubr.f32.mxu0 0.0
      %1133 = vmatmul.mubr.f32.gmra.mrb[0].mxu0 %v871
      %v1134 = vpop.f32.mrb[0].mxu0
      %v1135 = vadd.f32 0.0, %v1134
      %v1136 = vpop.f32.mrb[0].mxu0
      %v1137 = vadd.f32 0.0, %v1136
      %1138 = vmatprep.mubr.f32.mxu0 0.0
      %1139 = vmatmul.mubr.f32.gmra.mrb[0].mxu0 %v873
      %v1140 = vpop.f32.mrb[0].mxu0
      %v1141 = vadd.f32 0.0, %v1140
      %v1142 = vpop.f32.mrb[0].mxu0
      %v1143 = vadd.f32 0.0, %v1142
      %1144 = vmatprep.mubr.f32.mxu0 0.0
      %1145 = vmatmul.mubr.f32.gmra.mrb[0].mxu0 %v875
      %v1146 = vpop.f32.mrb[0].mxu0
      %v1147 = vadd.f32 0.0, %v1146
      %v1148 = vpop.f32.mrb[0].mxu0
      %v1149 = vadd.f32 0.0, %v1148
      %1150 = vmatprep.mubr.f32.mxu0 0.0
      %1151 = vmatmul.mubr.f32.gmra.mrb[0].mxu0 %v877
      %v1152 = vpop.f32.mrb[0].mxu0
      %v1153 = vadd.f32 0.0, %v1152
      %v1154 = vpop.f32.mrb[0].mxu0
      %v1155 = vadd.f32 0.0, %v1154
      %1156 = vmatprep.mubr.f32.mxu0 0.0
      %1157 = vmatmul.mubr.f32.gmra.mrb[0].mxu0 %v879
      %v1158 = vpop.f32.mrb[0].mxu0
      %v1159 = vadd.f32 0.0, %v1158
      %v1160 = vpop.f32.mrb[0].mxu0
      %v1161 = vadd.f32 0.0, %v1160
      %1162 = vmatprep.mubr.f32.mxu0 0.0
      %1163 = vmatmul.mubr.f32.gmra.mrb[0].mxu0 %v881
      %v1164 = vpop.f32.mrb[0].mxu0
      %v1165 = vadd.f32 0.0, %v1164
      %v1166 = vpop.f32.mrb[0].mxu0
      %v1167 = vadd.f32 0.0, %v1166
      %1168 = vmatprep.mubr.f32.mxu0 0.0
      %1169 = vmatmul.mubr.f32.gmra.mrb[0].mxu0 %v883
      %v1170 = vpop.f32.mrb[0].mxu0
      %v1171 = vadd.f32 0.0, %v1170
      %v1172 = vpop.f32.mrb[0].mxu0
      %v1173 = vadd.f32 0.0, %v1172
      %1174 = vmatprep.mubr.f32.mxu0 0.0
      %1175 = vmatmul.mubr.f32.gmra.mrb[0].mxu0 %v885
      %v1176 = vpop.f32.mrb[0].mxu0
      %v1177 = vadd.f32 0.0, %v1176
      %v1178 = vpop.f32.mrb[0].mxu0
      %v1179 = vadd.f32 0.0, %v1178
      %1180 = vmatprep.mubr.f32.mxu0 0.0
      %1181 = vmatmul.mubr.f32.gmra.mrb[0].mxu0 %v887
      %v1182 = vpop.f32.mrb[0].mxu0
      %v1183 = vadd.f32 0.0, %v1182
      %v1184 = vpop.f32.mrb[0].mxu0
      %v1185 = vadd.f32 0.0, %v1184
      %1186 = vmatprep.mubr.f32.mxu0 0.0
      %1187 = vmatmul.mubr.f32.gmra.mrb[0].mxu0 %v889
      %v1188 = vpop.f32.mrb[0].mxu0
      %v1189 = vadd.f32 0.0, %v1188
      %v1190 = vpop.f32.mrb[0].mxu0
      %v1191 = vadd.f32 0.0, %v1190
      %1192 = vmatprep.mubr.f32.mxu0 0.0
      %1193 = vmatmul.mubr.f32.gmra.mrb[0].mxu0 %v891
      %v1194 = vpop.f32.mrb[0].mxu0
      %v1195 = vadd.f32 0.0, %v1194
      %v1196 = vpop.f32.mrb[0].mxu0
      %v1197 = vadd.f32 0.0, %v1196
      %1198 = vmatprep.mubr.f32.mxu0 0.0
      %1199 = vmatmul.mubr.f32.gmra.mrb[0].mxu0 %v893
      %v1200 = vpop.f32.mrb[0].mxu0
      %v1201 = vadd.f32 0.0, %v1200
      %v1202 = vpop.f32.mrb[0].mxu0
      %v1203 = vadd.f32 0.0, %v1202
      %1204 = vmatprep.mubr.f32.mxu0 0.0
      %1205 = vmatmul.mubr.f32.gmra.mrb[0].mxu0 %v895
      %v1206 = vpop.f32.mrb[0].mxu0
      %v1207 = vadd.f32 0.0, %v1206
      %v1208 = vpop.f32.mrb[0].mxu0
      %v1209 = vadd.f32 0.0, %v1208
      %1210 = vmatprep.mubr.f32.mxu0 0.0
      %1211 = vmatmul.mubr.f32.gmra.mrb[0].mxu0 %v897
      %v1212 = vpop.f32.mrb[0].mxu0
      %v1213 = vadd.f32 0.0, %v1212
      %v1214 = vpop.f32.mrb[0].mxu0
      %v1215 = vadd.f32 0.0, %v1214
      %1216 = vmatprep.mubr.f32.mxu0 0.0
      %1217 = vmatmul.mubr.f32.gmra.mrb[0].mxu0 %v899
      %v1218 = vpop.f32.mrb[0].mxu0
      %v1219 = vadd.f32 0.0, %v1218
      %v1220 = vpop.f32.mrb[0].mxu0
      %v1221 = vadd.f32 0.0, %v1220
      %1222 = vdwg.mxu0
      %v1223 = vld [vmem:[%s2] sm:$0xf]
      %v1225 = vlaneseq
      %v1226 = vshrl.u32 %v1225, 7
      %v1227 = vsub.s32 0, %v1226
      %v1228 = vrot.slane %v1223, %v1227
      %v1229 = vlaneseq
      %v1230 = vshrl.u32 %v1229, 7
      %v1231 = vsub.s32 1, %v1230
      %v1232 = vrot.slane %v1223, %v1231
      %v1233 = vlaneseq
      %v1234 = vshrl.u32 %v1233, 7
      %v1235 = vsub.s32 2, %v1234
      %v1236 = vrot.slane %v1223, %v1235
      %v1237 = vlaneseq
      %v1238 = vshrl.u32 %v1237, 7
      %v1239 = vsub.s32 3, %v1238
      %v1240 = vrot.slane %v1223, %v1239
      %v1245 = vsub.f32 %v614, %v1228
      %v1246 = vsub.f32 %v616, %v1232
      %v1247 = vsub.f32 %v775, %v1236
      %v1248 = vsub.f32 %v777, %v1240
      %v1249 = vsub.f32 %v620, %v1228
      %v1250 = vsub.f32 %v622, %v1232
      %v1251 = vsub.f32 %v781, %v1236
      %v1252 = vsub.f32 %v783, %v1240
      %v1253 = vsub.f32 %v626, %v1228
      %v1254 = vsub.f32 %v628, %v1232
      %v1255 = vsub.f32 %v787, %v1236
      %v1256 = vsub.f32 %v789, %v1240
      %v1257 = vsub.f32 %v632, %v1228
      %v1258 = vsub.f32 %v634, %v1232
      %v1259 = vsub.f32 %v793, %v1236
      %v1260 = vsub.f32 %v795, %v1240
      %v1261 = vsub.f32 %v638, %v1228
      %v1262 = vsub.f32 %v640, %v1232
      %v1263 = vsub.f32 %v799, %v1236
      %v1264 = vsub.f32 %v801, %v1240
      %v1265 = vsub.f32 %v644, %v1228
      %v1266 = vsub.f32 %v646, %v1232
      %v1267 = vsub.f32 %v805, %v1236
      %v1268 = vsub.f32 %v807, %v1240
      %v1269 = vsub.f32 %v650, %v1228
      %v1270 = vsub.f32 %v652, %v1232
      %v1271 = vsub.f32 %v811, %v1236
      %v1272 = vsub.f32 %v813, %v1240
      %v1273 = vsub.f32 %v656, %v1228
      %v1274 = vsub.f32 %v658, %v1232
      %v1275 = vsub.f32 %v817, %v1236
      %v1276 = vsub.f32 %v819, %v1240
      %v1277 = vsub.f32 %v662, %v1228
      %v1278 = vsub.f32 %v664, %v1232
      %v1279 = vsub.f32 %v823, %v1236
      %v1280 = vsub.f32 %v825, %v1240
      %v1281 = vsub.f32 %v668, %v1228
      %v1282 = vsub.f32 %v670, %v1232
      %v1283 = vsub.f32 %v829, %v1236
      %v1284 = vsub.f32 %v831, %v1240
      %v1285 = vsub.f32 %v674, %v1228
      %v1286 = vsub.f32 %v676, %v1232
      %v1287 = vsub.f32 %v835, %v1236
      %v1288 = vsub.f32 %v837, %v1240
      %v1289 = vsub.f32 %v680, %v1228
      %v1290 = vsub.f32 %v682, %v1232
      %v1291 = vsub.f32 %v841, %v1236
      %v1292 = vsub.f32 %v843, %v1240
      %v1293 = vsub.f32 %v686, %v1228
      %v1294 = vsub.f32 %v688, %v1232
      %v1295 = vsub.f32 %v847, %v1236
      %v1296 = vsub.f32 %v849, %v1240
      %v1297 = vsub.f32 %v692, %v1228
      %v1298 = vsub.f32 %v694, %v1232
      %v1299 = vsub.f32 %v853, %v1236
      %v1300 = vsub.f32 %v855, %v1240
      %v1301 = vsub.f32 %v698, %v1228
      %v1302 = vsub.f32 %v700, %v1232
      %v1303 = vsub.f32 %v859, %v1236
      %v1304 = vsub.f32 %v861, %v1240
      %v1305 = vsub.f32 %v704, %v1228
      %v1306 = vsub.f32 %v706, %v1232
      %v1307 = vsub.f32 %v865, %v1236
      %v1308 = vsub.f32 %v867, %v1240
      %v1309 = vand.u32 2147483647, %v1245
      %v1310 = vand.u32 2147483647, %v1246
      %v1311 = vand.u32 2147483647, %v1247
      %v1312 = vand.u32 2147483647, %v1248
      %v1313 = vand.u32 2147483647, %v1249
      %v1314 = vand.u32 2147483647, %v1250
      %v1315 = vand.u32 2147483647, %v1251
      %v1316 = vand.u32 2147483647, %v1252
      %v1317 = vand.u32 2147483647, %v1253
      %v1318 = vand.u32 2147483647, %v1254
      %v1319 = vand.u32 2147483647, %v1255
      %v1320 = vand.u32 2147483647, %v1256
      %v1321 = vand.u32 2147483647, %v1257
      %v1322 = vand.u32 2147483647, %v1258
      %v1323 = vand.u32 2147483647, %v1259
      %v1324 = vand.u32 2147483647, %v1260
      %v1325 = vand.u32 2147483647, %v1261
      %v1326 = vand.u32 2147483647, %v1262
      %v1327 = vand.u32 2147483647, %v1263
      %v1328 = vand.u32 2147483647, %v1264
      %v1329 = vand.u32 2147483647, %v1265
      %v1330 = vand.u32 2147483647, %v1266
      %v1331 = vand.u32 2147483647, %v1267
      %v1332 = vand.u32 2147483647, %v1268
      %v1333 = vand.u32 2147483647, %v1269
      %v1334 = vand.u32 2147483647, %v1270
      %v1335 = vand.u32 2147483647, %v1271
      %v1336 = vand.u32 2147483647, %v1272
      %v1337 = vand.u32 2147483647, %v1273
      %v1338 = vand.u32 2147483647, %v1274
      %v1339 = vand.u32 2147483647, %v1275
      %v1340 = vand.u32 2147483647, %v1276
      %v1341 = vand.u32 2147483647, %v1277
      %v1342 = vand.u32 2147483647, %v1278
      %v1343 = vand.u32 2147483647, %v1279
      %v1344 = vand.u32 2147483647, %v1280
      %v1345 = vand.u32 2147483647, %v1281
      %v1346 = vand.u32 2147483647, %v1282
      %v1347 = vand.u32 2147483647, %v1283
      %v1348 = vand.u32 2147483647, %v1284
      %v1349 = vand.u32 2147483647, %v1285
      %v1350 = vand.u32 2147483647, %v1286
      %v1351 = vand.u32 2147483647, %v1287
      %v1352 = vand.u32 2147483647, %v1288
      %v1353 = vand.u32 2147483647, %v1289
      %v1354 = vand.u32 2147483647, %v1290
      %v1355 = vand.u32 2147483647, %v1291
      %v1356 = vand.u32 2147483647, %v1292
      %v1357 = vand.u32 2147483647, %v1293
      %v1358 = vand.u32 2147483647, %v1294
      %v1359 = vand.u32 2147483647, %v1295
      %v1360 = vand.u32 2147483647, %v1296
      %v1361 = vand.u32 2147483647, %v1297
      %v1362 = vand.u32 2147483647, %v1298
      %v1363 = vand.u32 2147483647, %v1299
      %v1364 = vand.u32 2147483647, %v1300
      %v1365 = vand.u32 2147483647, %v1301
      %v1366 = vand.u32 2147483647, %v1302
      %v1367 = vand.u32 2147483647, %v1303
      %v1368 = vand.u32 2147483647, %v1304
      %v1369 = vand.u32 2147483647, %v1305
      %v1370 = vand.u32 2147483647, %v1306
      %v1371 = vand.u32 2147483647, %v1307
      %v1372 = vand.u32 2147483647, %v1308
      %vm1373 = vcmp.lt.f32.partialorder %v1309, 0.5
      %vm1374 = vcmp.lt.f32.partialorder %v1310, 0.5
      %vm1375 = vcmp.lt.f32.partialorder %v1311, 0.5
      %vm1376 = vcmp.lt.f32.partialorder %v1312, 0.5
      %vm1377 = vcmp.lt.f32.partialorder %v1313, 0.5
      %vm1378 = vcmp.lt.f32.partialorder %v1314, 0.5
      %vm1379 = vcmp.lt.f32.partialorder %v1315, 0.5
      %vm1380 = vcmp.lt.f32.partialorder %v1316, 0.5
      %vm1381 = vcmp.lt.f32.partialorder %v1317, 0.5
      %vm1382 = vcmp.lt.f32.partialorder %v1318, 0.5
      %vm1383 = vcmp.lt.f32.partialorder %v1319, 0.5
      %vm1384 = vcmp.lt.f32.partialorder %v1320, 0.5
      %vm1385 = vcmp.lt.f32.partialorder %v1321, 0.5
      %vm1386 = vcmp.lt.f32.partialorder %v1322, 0.5
      %vm1387 = vcmp.lt.f32.partialorder %v1323, 0.5
      %vm1388 = vcmp.lt.f32.partialorder %v1324, 0.5
      %vm1389 = vcmp.lt.f32.partialorder %v1325, 0.5
      %vm1390 = vcmp.lt.f32.partialorder %v1326, 0.5
      %vm1391 = vcmp.lt.f32.partialorder %v1327, 0.5
      %vm1392 = vcmp.lt.f32.partialorder %v1328, 0.5
      %vm1393 = vcmp.lt.f32.partialorder %v1329, 0.5
      %vm1394 = vcmp.lt.f32.partialorder %v1330, 0.5
      %vm1395 = vcmp.lt.f32.partialorder %v1331, 0.5
      %vm1396 = vcmp.lt.f32.partialorder %v1332, 0.5
      %vm1397 = vcmp.lt.f32.partialorder %v1333, 0.5
      %vm1398 = vcmp.lt.f32.partialorder %v1334, 0.5
      %vm1399 = vcmp.lt.f32.partialorder %v1335, 0.5
      %vm1400 = vcmp.lt.f32.partialorder %v1336, 0.5
      %vm1401 = vcmp.lt.f32.partialorder %v1337, 0.5
      %vm1402 = vcmp.lt.f32.partialorder %v1338, 0.5
      %vm1403 = vcmp.lt.f32.partialorder %v1339, 0.5
      %vm1404 = vcmp.lt.f32.partialorder %v1340, 0.5
      %vm1405 = vcmp.lt.f32.partialorder %v1341, 0.5
      %vm1406 = vcmp.lt.f32.partialorder %v1342, 0.5
      %vm1407 = vcmp.lt.f32.partialorder %v1343, 0.5
      %vm1408 = vcmp.lt.f32.partialorder %v1344, 0.5
      %vm1409 = vcmp.lt.f32.partialorder %v1345, 0.5
      %vm1410 = vcmp.lt.f32.partialorder %v1346, 0.5
      %vm1411 = vcmp.lt.f32.partialorder %v1347, 0.5
      %vm1412 = vcmp.lt.f32.partialorder %v1348, 0.5
      %vm1413 = vcmp.lt.f32.partialorder %v1349, 0.5
      %vm1414 = vcmp.lt.f32.partialorder %v1350, 0.5
      %vm1415 = vcmp.lt.f32.partialorder %v1351, 0.5
      %vm1416 = vcmp.lt.f32.partialorder %v1352, 0.5
      %vm1417 = vcmp.lt.f32.partialorder %v1353, 0.5
      %vm1418 = vcmp.lt.f32.partialorder %v1354, 0.5
      %vm1419 = vcmp.lt.f32.partialorder %v1355, 0.5
      %vm1420 = vcmp.lt.f32.partialorder %v1356, 0.5
      %vm1421 = vcmp.lt.f32.partialorder %v1357, 0.5
      %vm1422 = vcmp.lt.f32.partialorder %v1358, 0.5
      %vm1423 = vcmp.lt.f32.partialorder %v1359, 0.5
      %vm1424 = vcmp.lt.f32.partialorder %v1360, 0.5
      %vm1425 = vcmp.lt.f32.partialorder %v1361, 0.5
      %vm1426 = vcmp.lt.f32.partialorder %v1362, 0.5
      %vm1427 = vcmp.lt.f32.partialorder %v1363, 0.5
      %vm1428 = vcmp.lt.f32.partialorder %v1364, 0.5
      %vm1429 = vcmp.lt.f32.partialorder %v1365, 0.5
      %vm1430 = vcmp.lt.f32.partialorder %v1366, 0.5
      %vm1431 = vcmp.lt.f32.partialorder %v1367, 0.5
      %vm1432 = vcmp.lt.f32.partialorder %v1368, 0.5
      %vm1433 = vcmp.lt.f32.partialorder %v1369, 0.5
      %vm1434 = vcmp.lt.f32.partialorder %v1370, 0.5
      %vm1435 = vcmp.lt.f32.partialorder %v1371, 0.5
      %vm1436 = vcmp.lt.f32.partialorder %v1372, 0.5
      %v1437 = vsel %vm1373, %v968, 0.0
      %v1438 = vsel %vm1374, %v970, 0.0
      %v1439 = vsel %vm1375, %v1129, 0.0
      %v1440 = vsel %vm1376, %v1131, 0.0
      %v1441 = vsel %vm1377, %v974, 0.0
      %v1442 = vsel %vm1378, %v976, 0.0
      %v1443 = vsel %vm1379, %v1135, 0.0
      %v1444 = vsel %vm1380, %v1137, 0.0
      %v1445 = vsel %vm1381, %v980, 0.0
      %v1446 = vsel %vm1382, %v982, 0.0
      %v1447 = vsel %vm1383, %v1141, 0.0
      %v1448 = vsel %vm1384, %v1143, 0.0
      %v1449 = vsel %vm1385, %v986, 0.0
      %v1450 = vsel %vm1386, %v988, 0.0
      %v1451 = vsel %vm1387, %v1147, 0.0
      %v1452 = vsel %vm1388, %v1149, 0.0
      %v1453 = vsel %vm1389, %v992, 0.0
      %v1454 = vsel %vm1390, %v994, 0.0
      %v1455 = vsel %vm1391, %v1153, 0.0
      %v1456 = vsel %vm1392, %v1155, 0.0
      %v1457 = vsel %vm1393, %v998, 0.0
      %v1458 = vsel %vm1394, %v1000, 0.0
      %v1459 = vsel %vm1395, %v1159, 0.0
      %v1460 = vsel %vm1396, %v1161, 0.0
      %v1461 = vsel %vm1397, %v1004, 0.0
      %v1462 = vsel %vm1398, %v1006, 0.0
      %v1463 = vsel %vm1399, %v1165, 0.0
      %v1464 = vsel %vm1400, %v1167, 0.0
      %v1465 = vsel %vm1401, %v1010, 0.0
      %v1466 = vsel %vm1402, %v1012, 0.0
      %v1467 = vsel %vm1403, %v1171, 0.0
      %v1468 = vsel %vm1404, %v1173, 0.0
      %v1469 = vsel %vm1405, %v1016, 0.0
      %v1470 = vsel %vm1406, %v1018, 0.0
      %v1471 = vsel %vm1407, %v1177, 0.0
      %v1472 = vsel %vm1408, %v1179, 0.0
      %v1473 = vsel %vm1409, %v1022, 0.0
      %v1474 = vsel %vm1410, %v1024, 0.0
      %v1475 = vsel %vm1411, %v1183, 0.0
      %v1476 = vsel %vm1412, %v1185, 0.0
      %v1477 = vsel %vm1413, %v1028, 0.0
      %v1478 = vsel %vm1414, %v1030, 0.0
      %v1479 = vsel %vm1415, %v1189, 0.0
      %v1480 = vsel %vm1416, %v1191, 0.0
      %v1481 = vsel %vm1417, %v1034, 0.0
      %v1482 = vsel %vm1418, %v1036, 0.0
      %v1483 = vsel %vm1419, %v1195, 0.0
      %v1484 = vsel %vm1420, %v1197, 0.0
      %v1485 = vsel %vm1421, %v1040, 0.0
      %v1486 = vsel %vm1422, %v1042, 0.0
      %v1487 = vsel %vm1423, %v1201, 0.0
      %v1488 = vsel %vm1424, %v1203, 0.0
      %v1489 = vsel %vm1425, %v1046, 0.0
      %v1490 = vsel %vm1426, %v1048, 0.0
      %v1491 = vsel %vm1427, %v1207, 0.0
      %v1492 = vsel %vm1428, %v1209, 0.0
      %v1493 = vsel %vm1429, %v1052, 0.0
      %v1494 = vsel %vm1430, %v1054, 0.0
      %v1495 = vsel %vm1431, %v1213, 0.0
      %v1496 = vsel %vm1432, %v1215, 0.0
      %v1497 = vsel %vm1433, %v1058, 0.0
      %v1498 = vsel %vm1434, %v1060, 0.0
      %v1499 = vsel %vm1435, %v1219, 0.0
      %v1500 = vsel %vm1436, %v1221, 0.0
      %v1501 = vld [vmem:[%s3] sm:$0xff]
      %v1502 = vld [vmem:[%s3 + $0x8] sm:$0xff]
      %v1503 = vld [vmem:[%s3 + $0x10] sm:$0xff]
      %v1504 = vld [vmem:[%s3 + $0x18] sm:$0xff]
      %v1505 = vld [vmem:[%s3 + $0x20] sm:$0xff]
      %v1506 = vld [vmem:[%s3 + $0x28] sm:$0xff]
      %v1507 = vld [vmem:[%s3 + $0x30] sm:$0xff]
      %v1508 = vld [vmem:[%s3 + $0x38] sm:$0xff]
      %v1509 = vld [vmem:[%s3 + $0x40] sm:$0xff]
      %v1510 = vld [vmem:[%s3 + $0x48] sm:$0xff]
      %v1511 = vld [vmem:[%s3 + $0x50] sm:$0xff]
      %v1512 = vld [vmem:[%s3 + $0x58] sm:$0xff]
      %v1513 = vld [vmem:[%s3 + $0x60] sm:$0xff]
      %v1514 = vld [vmem:[%s3 + $0x68] sm:$0xff]
      %v1515 = vld [vmem:[%s3 + $0x70] sm:$0xff]
      %v1516 = vld [vmem:[%s3 + $0x78] sm:$0xff]
      %v1517 = vld [vmem:[%s3 + $0x80] sm:$0xff]
      %v1518 = vld [vmem:[%s3 + $0x88] sm:$0xff]
      %v1519 = vld [vmem:[%s3 + $0x90] sm:$0xff]
      %v1520 = vld [vmem:[%s3 + $0x98] sm:$0xff]
      %v1521 = vld [vmem:[%s3 + $0xa0] sm:$0xff]
      %v1522 = vld [vmem:[%s3 + $0xa8] sm:$0xff]
      %v1523 = vld [vmem:[%s3 + $0xb0] sm:$0xff]
      %v1524 = vld [vmem:[%s3 + $0xb8] sm:$0xff]
      %v1525 = vld [vmem:[%s3 + $0xc0] sm:$0xff]
      %v1526 = vld [vmem:[%s3 + $0xc8] sm:$0xff]
      %v1527 = vld [vmem:[%s3 + $0xd0] sm:$0xff]
      %v1528 = vld [vmem:[%s3 + $0xd8] sm:$0xff]
      %v1529 = vld [vmem:[%s3 + $0xe0] sm:$0xff]
      %v1530 = vld [vmem:[%s3 + $0xe8] sm:$0xff]
      %v1531 = vld [vmem:[%s3 + $0xf0] sm:$0xff]
      %v1532 = vld [vmem:[%s3 + $0xf8] sm:$0xff]
      %v1533 = vld [vmem:[%s3 + $0x100] sm:$0xff]
      %v1534 = vld [vmem:[%s3 + $0x108] sm:$0xff]
      %v1535 = vld [vmem:[%s3 + $0x110] sm:$0xff]
      %v1536 = vld [vmem:[%s3 + $0x118] sm:$0xff]
      %v1537 = vld [vmem:[%s3 + $0x120] sm:$0xff]
      %v1538 = vld [vmem:[%s3 + $0x128] sm:$0xff]
      %v1539 = vld [vmem:[%s3 + $0x130] sm:$0xff]
      %v1540 = vld [vmem:[%s3 + $0x138] sm:$0xff]
      %v1541 = vld [vmem:[%s3 + $0x140] sm:$0xff]
      %v1542 = vld [vmem:[%s3 + $0x148] sm:$0xff]
      %v1543 = vld [vmem:[%s3 + $0x150] sm:$0xff]
      %v1544 = vld [vmem:[%s3 + $0x158] sm:$0xff]
      %v1545 = vld [vmem:[%s3 + $0x160] sm:$0xff]
      %v1546 = vld [vmem:[%s3 + $0x168] sm:$0xff]
      %v1547 = vld [vmem:[%s3 + $0x170] sm:$0xff]
      %v1548 = vld [vmem:[%s3 + $0x178] sm:$0xff]
      %v1549 = vld [vmem:[%s3 + $0x180] sm:$0xff]
      %v1550 = vld [vmem:[%s3 + $0x188] sm:$0xff]
      %v1551 = vld [vmem:[%s3 + $0x190] sm:$0xff]
      %v1552 = vld [vmem:[%s3 + $0x198] sm:$0xff]
      %v1553 = vld [vmem:[%s3 + $0x1a0] sm:$0xff]
      %v1554 = vld [vmem:[%s3 + $0x1a8] sm:$0xff]
      %v1555 = vld [vmem:[%s3 + $0x1b0] sm:$0xff]
      %v1556 = vld [vmem:[%s3 + $0x1b8] sm:$0xff]
      %v1557 = vld [vmem:[%s3 + $0x1c0] sm:$0xff]
      %v1558 = vld [vmem:[%s3 + $0x1c8] sm:$0xff]
      %v1559 = vld [vmem:[%s3 + $0x1d0] sm:$0xff]
      %v1560 = vld [vmem:[%s3 + $0x1d8] sm:$0xff]
      %v1561 = vld [vmem:[%s3 + $0x1e0] sm:$0xff]
      %v1562 = vld [vmem:[%s3 + $0x1e8] sm:$0xff]
      %v1563 = vld [vmem:[%s3 + $0x1f0] sm:$0xff]
      %v1564 = vld [vmem:[%s3 + $0x1f8] sm:$0xff]
      %1565 = vmatprep.subr.mxu0 0.0
      %1566 = vmatpush1.msra.mxu0 %v1501
      %1567 = vmatprep.subr.mxu0 0.0
      %1568 = vmatpush1.msra.mxu0 %v1502
      %1569 = vmatprep.subr.mxu0 0.0
      %1570 = vmatpush1.msra.mxu0 %v1503
      %1571 = vmatprep.subr.mxu0 0.0
      %1572 = vmatpush1.msra.mxu0 %v1504
      %1573 = vmatprep.subr.mxu0 0.0
      %1574 = vmatpush1.msra.mxu0 %v1505
      %1575 = vmatprep.subr.mxu0 0.0
      %1576 = vmatpush1.msra.mxu0 %v1506
      %1577 = vmatprep.subr.mxu0 0.0
      %1578 = vmatpush1.msra.mxu0 %v1507
      %1579 = vmatprep.subr.mxu0 0.0
      %1580 = vmatpush1.msra.mxu0 %v1508
      %1581 = vmatprep.subr.mxu0 0.0
      %1582 = vmatpush1.msra.mxu0 %v1509
      %1583 = vmatprep.subr.mxu0 0.0
      %1584 = vmatpush1.msra.mxu0 %v1510
      %1585 = vmatprep.subr.mxu0 0.0
      %1586 = vmatpush1.msra.mxu0 %v1511
      %1587 = vmatprep.subr.mxu0 0.0
      %1588 = vmatpush1.msra.mxu0 %v1512
      %1589 = vmatprep.subr.mxu0 0.0
      %1590 = vmatpush1.msra.mxu0 %v1513
      %1591 = vmatprep.subr.mxu0 0.0
      %1592 = vmatpush1.msra.mxu0 %v1514
      %1593 = vmatprep.subr.mxu0 0.0
      %1594 = vmatpush1.msra.mxu0 %v1515
      %1595 = vmatprep.subr.mxu0 0.0
      %1596 = vmatpush1.msra.mxu0 %v1516
      %1597 = vmatprep.subr.mxu0 0.0
      %1598 = vmatpush1.msra.mxu0 %v1517
      %1599 = vmatprep.subr.mxu0 0.0
      %1600 = vmatpush1.msra.mxu0 %v1518
      %1601 = vmatprep.subr.mxu0 0.0
      %1602 = vmatpush1.msra.mxu0 %v1519
      %1603 = vmatprep.subr.mxu0 0.0
      %1604 = vmatpush1.msra.mxu0 %v1520
      %1605 = vmatprep.subr.mxu0 0.0
      %1606 = vmatpush1.msra.mxu0 %v1521
      %1607 = vmatprep.subr.mxu0 0.0
      %1608 = vmatpush1.msra.mxu0 %v1522
      %1609 = vmatprep.subr.mxu0 0.0
      %1610 = vmatpush1.msra.mxu0 %v1523
      %1611 = vmatprep.subr.mxu0 0.0
      %1612 = vmatpush1.msra.mxu0 %v1524
      %1613 = vmatprep.subr.mxu0 0.0
      %1614 = vmatpush1.msra.mxu0 %v1525
      %1615 = vmatprep.subr.mxu0 0.0
      %1616 = vmatpush1.msra.mxu0 %v1526
      %1617 = vmatprep.subr.mxu0 0.0
      %1618 = vmatpush1.msra.mxu0 %v1527
      %1619 = vmatprep.subr.mxu0 0.0
      %1620 = vmatpush1.msra.mxu0 %v1528
      %1621 = vmatprep.subr.mxu0 0.0
      %1622 = vmatpush1.msra.mxu0 %v1529
      %1623 = vmatprep.subr.mxu0 0.0
      %1624 = vmatpush1.msra.mxu0 %v1530
      %1625 = vmatprep.subr.mxu0 0.0
      %1626 = vmatpush1.msra.mxu0 %v1531
      %1627 = vmatprep.subr.mxu0 0.0
      %1628 = vmatpush1.msra.mxu0 %v1532
      %1629 = vmatprep.mubr.f32.mxu0 %v1438
      %1630 = vmatmul.mubr.f32.gmra.mrb[0].mxu0 %v1437
      %v1631 = vpop.f32.mrb[0].mxu0
      %v1632 = vadd.f32 0.0, %v1631
      %v1633 = vpop.f32.mrb[0].mxu0
      %1634 = vmatprep.mubr.f32.mxu0 %v1442
      %1635 = vmatmul.mubr.f32.gmra.mrb[0].mxu0 %v1441
      %v1636 = vpop.f32.mrb[0].mxu0
      %v1637 = vadd.f32 0.0, %v1636
      %v1638 = vpop.f32.mrb[0].mxu0
      %1639 = vmatprep.mubr.f32.mxu0 %v1446
      %1640 = vmatmul.mubr.f32.gmra.mrb[0].mxu0 %v1445
      %v1641 = vpop.f32.mrb[0].mxu0
      %v1642 = vadd.f32 0.0, %v1641
      %v1643 = vpop.f32.mrb[0].mxu0
      %1644 = vmatprep.mubr.f32.mxu0 %v1450
      %1645 = vmatmul.mubr.f32.gmra.mrb[0].mxu0 %v1449
      %v1646 = vpop.f32.mrb[0].mxu0
      %v1647 = vadd.f32 0.0, %v1646
      %v1648 = vpop.f32.mrb[0].mxu0
      %1649 = vmatprep.mubr.f32.mxu0 %v1454
      %1650 = vmatmul.mubr.f32.gmra.mrb[0].mxu0 %v1453
      %v1651 = vpop.f32.mrb[0].mxu0
      %v1652 = vadd.f32 0.0, %v1651
      %v1653 = vpop.f32.mrb[0].mxu0
      %1654 = vmatprep.mubr.f32.mxu0 %v1458
      %1655 = vmatmul.mubr.f32.gmra.mrb[0].mxu0 %v1457
      %v1656 = vpop.f32.mrb[0].mxu0
      %v1657 = vadd.f32 0.0, %v1656
      %v1658 = vpop.f32.mrb[0].mxu0
      %1659 = vmatprep.mubr.f32.mxu0 %v1462
      %1660 = vmatmul.mubr.f32.gmra.mrb[0].mxu0 %v1461
      %v1661 = vpop.f32.mrb[0].mxu0
      %v1662 = vadd.f32 0.0, %v1661
      %v1663 = vpop.f32.mrb[0].mxu0
      %1664 = vmatprep.mubr.f32.mxu0 %v1466
      %1665 = vmatmul.mubr.f32.gmra.mrb[0].mxu0 %v1465
      %v1666 = vpop.f32.mrb[0].mxu0
      %v1667 = vadd.f32 0.0, %v1666
      %v1668 = vpop.f32.mrb[0].mxu0
      %1669 = vmatprep.mubr.f32.mxu0 %v1470
      %1670 = vmatmul.mubr.f32.gmra.mrb[0].mxu0 %v1469
      %v1671 = vpop.f32.mrb[0].mxu0
      %v1672 = vadd.f32 0.0, %v1671
      %v1673 = vpop.f32.mrb[0].mxu0
      %1674 = vmatprep.mubr.f32.mxu0 %v1474
      %1675 = vmatmul.mubr.f32.gmra.mrb[0].mxu0 %v1473
      %v1676 = vpop.f32.mrb[0].mxu0
      %v1677 = vadd.f32 0.0, %v1676
      %v1678 = vpop.f32.mrb[0].mxu0
      %1679 = vmatprep.mubr.f32.mxu0 %v1478
      %1680 = vmatmul.mubr.f32.gmra.mrb[0].mxu0 %v1477
      %v1681 = vpop.f32.mrb[0].mxu0
      %v1682 = vadd.f32 0.0, %v1681
      %v1683 = vpop.f32.mrb[0].mxu0
      %1684 = vmatprep.mubr.f32.mxu0 %v1482
      %1685 = vmatmul.mubr.f32.gmra.mrb[0].mxu0 %v1481
      %v1686 = vpop.f32.mrb[0].mxu0
      %v1687 = vadd.f32 0.0, %v1686
      %v1688 = vpop.f32.mrb[0].mxu0
      %1689 = vmatprep.mubr.f32.mxu0 %v1486
      %1690 = vmatmul.mubr.f32.gmra.mrb[0].mxu0 %v1485
      %v1691 = vpop.f32.mrb[0].mxu0
      %v1692 = vadd.f32 0.0, %v1691
      %v1693 = vpop.f32.mrb[0].mxu0
      %1694 = vmatprep.mubr.f32.mxu0 %v1490
      %1695 = vmatmul.mubr.f32.gmra.mrb[0].mxu0 %v1489
      %v1696 = vpop.f32.mrb[0].mxu0
      %v1697 = vadd.f32 0.0, %v1696
      %v1698 = vpop.f32.mrb[0].mxu0
      %1699 = vmatprep.mubr.f32.mxu0 %v1494
      %1700 = vmatmul.mubr.f32.gmra.mrb[0].mxu0 %v1493
      %v1701 = vpop.f32.mrb[0].mxu0
      %v1702 = vadd.f32 0.0, %v1701
      %v1703 = vpop.f32.mrb[0].mxu0
      %1704 = vmatprep.mubr.f32.mxu0 %v1498
      %1705 = vmatmul.mubr.f32.gmra.mrb[0].mxu0 %v1497
      %v1706 = vpop.f32.mrb[0].mxu0
      %v1707 = vadd.f32 0.0, %v1706
      %v1708 = vpop.f32.mrb[0].mxu0
      %1709 = vdwg.mxu0
      %1710 = vmatprep.subr.mxu0 0.0
      %1711 = vmatpush1.msra.mxu0 %v1533
      %1712 = vmatprep.subr.mxu0 0.0
      %1713 = vmatpush1.msra.mxu0 %v1534
      %1714 = vmatprep.subr.mxu0 0.0
      %1715 = vmatpush1.msra.mxu0 %v1535
      %1716 = vmatprep.subr.mxu0 0.0
      %1717 = vmatpush1.msra.mxu0 %v1536
      %1718 = vmatprep.subr.mxu0 0.0
      %1719 = vmatpush1.msra.mxu0 %v1537
      %1720 = vmatprep.subr.mxu0 0.0
      %1721 = vmatpush1.msra.mxu0 %v1538
      %1722 = vmatprep.subr.mxu0 0.0
      %1723 = vmatpush1.msra.mxu0 %v1539
      %1724 = vmatprep.subr.mxu0 0.0
      %1725 = vmatpush1.msra.mxu0 %v1540
      %1726 = vmatprep.subr.mxu0 0.0
      %1727 = vmatpush1.msra.mxu0 %v1541
      %1728 = vmatprep.subr.mxu0 0.0
      %1729 = vmatpush1.msra.mxu0 %v1542
      %1730 = vmatprep.subr.mxu0 0.0
      %1731 = vmatpush1.msra.mxu0 %v1543
      %1732 = vmatprep.subr.mxu0 0.0
      %1733 = vmatpush1.msra.mxu0 %v1544
      %1734 = vmatprep.subr.mxu0 0.0
      %1735 = vmatpush1.msra.mxu0 %v1545
      %1736 = vmatprep.subr.mxu0 0.0
      %1737 = vmatpush1.msra.mxu0 %v1546
      %1738 = vmatprep.subr.mxu0 0.0
      %1739 = vmatpush1.msra.mxu0 %v1547
      %1740 = vmatprep.subr.mxu0 0.0
      %1741 = vmatpush1.msra.mxu0 %v1548
      %1742 = vmatprep.subr.mxu0 0.0
      %1743 = vmatpush1.msra.mxu0 %v1549
      %1744 = vmatprep.subr.mxu0 0.0
      %1745 = vmatpush1.msra.mxu0 %v1550
      %1746 = vmatprep.subr.mxu0 0.0
      %1747 = vmatpush1.msra.mxu0 %v1551
      %1748 = vmatprep.subr.mxu0 0.0
      %1749 = vmatpush1.msra.mxu0 %v1552
      %1750 = vmatprep.subr.mxu0 0.0
      %1751 = vmatpush1.msra.mxu0 %v1553
      %1752 = vmatprep.subr.mxu0 0.0
      %1753 = vmatpush1.msra.mxu0 %v1554
      %1754 = vmatprep.subr.mxu0 0.0
      %1755 = vmatpush1.msra.mxu0 %v1555
      %1756 = vmatprep.subr.mxu0 0.0
      %1757 = vmatpush1.msra.mxu0 %v1556
      %1758 = vmatprep.subr.mxu0 0.0
      %1759 = vmatpush1.msra.mxu0 %v1557
      %1760 = vmatprep.subr.mxu0 0.0
      %1761 = vmatpush1.msra.mxu0 %v1558
      %1762 = vmatprep.subr.mxu0 0.0
      %1763 = vmatpush1.msra.mxu0 %v1559
      %1764 = vmatprep.subr.mxu0 0.0
      %1765 = vmatpush1.msra.mxu0 %v1560
      %1766 = vmatprep.subr.mxu0 0.0
      %1767 = vmatpush1.msra.mxu0 %v1561
      %1768 = vmatprep.subr.mxu0 0.0
      %1769 = vmatpush1.msra.mxu0 %v1562
      %1770 = vmatprep.subr.mxu0 0.0
      %1771 = vmatpush1.msra.mxu0 %v1563
      %1772 = vmatprep.subr.mxu0 0.0
      %1773 = vmatpush1.msra.mxu0 %v1564
      %1774 = vmatprep.mubr.f32.mxu0 %v1440
      %1775 = vmatmul.mubr.f32.gmra.mrb[0].mxu0 %v1439
      %v1776 = vpop.f32.mrb[0].mxu0
      %v1777 = vadd.f32 %v1632, %v1776
      %v1778 = vpop.f32.mrb[0].mxu0
      %1779 = vmatprep.mubr.f32.mxu0 %v1444
      %1780 = vmatmul.mubr.f32.gmra.mrb[0].mxu0 %v1443
      %v1781 = vpop.f32.mrb[0].mxu0
      %v1782 = vadd.f32 %v1637, %v1781
      %v1783 = vpop.f32.mrb[0].mxu0
      %1784 = vmatprep.mubr.f32.mxu0 %v1448
      %1785 = vmatmul.mubr.f32.gmra.mrb[0].mxu0 %v1447
      %v1786 = vpop.f32.mrb[0].mxu0
      %v1787 = vadd.f32 %v1642, %v1786
      %v1788 = vpop.f32.mrb[0].mxu0
      %1789 = vmatprep.mubr.f32.mxu0 %v1452
      %1790 = vmatmul.mubr.f32.gmra.mrb[0].mxu0 %v1451
      %v1791 = vpop.f32.mrb[0].mxu0
      %v1792 = vadd.f32 %v1647, %v1791
      %v1793 = vpop.f32.mrb[0].mxu0
      %1794 = vmatprep.mubr.f32.mxu0 %v1456
      %1795 = vmatmul.mubr.f32.gmra.mrb[0].mxu0 %v1455
      %v1796 = vpop.f32.mrb[0].mxu0
      %v1797 = vadd.f32 %v1652, %v1796
      %v1798 = vpop.f32.mrb[0].mxu0
      %1799 = vmatprep.mubr.f32.mxu0 %v1460
      %1800 = vmatmul.mubr.f32.gmra.mrb[0].mxu0 %v1459
      %v1801 = vpop.f32.mrb[0].mxu0
      %v1802 = vadd.f32 %v1657, %v1801
      %v1803 = vpop.f32.mrb[0].mxu0
      %1804 = vmatprep.mubr.f32.mxu0 %v1464
      %1805 = vmatmul.mubr.f32.gmra.mrb[0].mxu0 %v1463
      %v1806 = vpop.f32.mrb[0].mxu0
      %v1807 = vadd.f32 %v1662, %v1806
      %v1808 = vpop.f32.mrb[0].mxu0
      %1809 = vmatprep.mubr.f32.mxu0 %v1468
      %1810 = vmatmul.mubr.f32.gmra.mrb[0].mxu0 %v1467
      %v1811 = vpop.f32.mrb[0].mxu0
      %v1812 = vadd.f32 %v1667, %v1811
      %v1813 = vpop.f32.mrb[0].mxu0
      %1814 = vmatprep.mubr.f32.mxu0 %v1472
      %1815 = vmatmul.mubr.f32.gmra.mrb[0].mxu0 %v1471
      %v1816 = vpop.f32.mrb[0].mxu0
      %v1817 = vadd.f32 %v1672, %v1816
      %v1818 = vpop.f32.mrb[0].mxu0
      %1819 = vmatprep.mubr.f32.mxu0 %v1476
      %1820 = vmatmul.mubr.f32.gmra.mrb[0].mxu0 %v1475
      %v1821 = vpop.f32.mrb[0].mxu0
      %v1822 = vadd.f32 %v1677, %v1821
      %v1823 = vpop.f32.mrb[0].mxu0
      %1824 = vmatprep.mubr.f32.mxu0 %v1480
      %1825 = vmatmul.mubr.f32.gmra.mrb[0].mxu0 %v1479
      %v1826 = vpop.f32.mrb[0].mxu0
      %v1827 = vadd.f32 %v1682, %v1826
      %v1828 = vpop.f32.mrb[0].mxu0
      %1829 = vmatprep.mubr.f32.mxu0 %v1484
      %1830 = vmatmul.mubr.f32.gmra.mrb[0].mxu0 %v1483
      %v1831 = vpop.f32.mrb[0].mxu0
      %v1832 = vadd.f32 %v1687, %v1831
      %v1833 = vpop.f32.mrb[0].mxu0
      %1834 = vmatprep.mubr.f32.mxu0 %v1488
      %1835 = vmatmul.mubr.f32.gmra.mrb[0].mxu0 %v1487
      %v1836 = vpop.f32.mrb[0].mxu0
      %v1837 = vadd.f32 %v1692, %v1836
      %v1838 = vpop.f32.mrb[0].mxu0
      %1839 = vmatprep.mubr.f32.mxu0 %v1492
      %1840 = vmatmul.mubr.f32.gmra.mrb[0].mxu0 %v1491
      %v1841 = vpop.f32.mrb[0].mxu0
      %v1842 = vadd.f32 %v1697, %v1841
      %v1843 = vpop.f32.mrb[0].mxu0
      %1844 = vmatprep.mubr.f32.mxu0 %v1496
      %1845 = vmatmul.mubr.f32.gmra.mrb[0].mxu0 %v1495
      %v1846 = vpop.f32.mrb[0].mxu0
      %v1847 = vadd.f32 %v1702, %v1846
      %v1848 = vpop.f32.mrb[0].mxu0
      %1849 = vmatprep.mubr.f32.mxu0 %v1500
      %1850 = vmatmul.mubr.f32.gmra.mrb[0].mxu0 %v1499
      %v1851 = vpop.f32.mrb[0].mxu0
      %v1852 = vadd.f32 %v1707, %v1851
      %v1853 = vpop.f32.mrb[0].mxu0
      %1854 = vdwg.mxu0
      %v1855 = vmul.f32 %v1777, %v1777
      %v1856 = vmul.f32 %v1782, %v1782
      %v1857 = vmul.f32 %v1787, %v1787
      %v1858 = vmul.f32 %v1792, %v1792
      %v1859 = vmul.f32 %v1797, %v1797
      %v1860 = vmul.f32 %v1802, %v1802
      %v1861 = vmul.f32 %v1807, %v1807
      %v1862 = vmul.f32 %v1812, %v1812
      %v1863 = vmul.f32 %v1817, %v1817
      %v1864 = vmul.f32 %v1822, %v1822
      %v1865 = vmul.f32 %v1827, %v1827
      %v1866 = vmul.f32 %v1832, %v1832
      %v1867 = vmul.f32 %v1837, %v1837
      %v1868 = vmul.f32 %v1842, %v1842
      %v1869 = vmul.f32 %v1847, %v1847
      %v1870 = vmul.f32 %v1852, %v1852
      %v1871 = vld [vmem:[%s4] sm:$0xff]
      %v1872 = vld [vmem:[%s4 + $0x8] sm:$0xff]
      %v1873 = vld [vmem:[%s4 + $0x10] sm:$0xff]
      %v1874 = vld [vmem:[%s4 + $0x18] sm:$0xff]
      %v1875 = vld [vmem:[%s4 + $0x20] sm:$0xff]
      %v1876 = vld [vmem:[%s4 + $0x28] sm:$0xff]
      %v1877 = vld [vmem:[%s4 + $0x30] sm:$0xff]
      %v1878 = vld [vmem:[%s4 + $0x38] sm:$0xff]
      %vm1879 = vcmask 523264
      %v1881 = vsel %vm1879, %v1855, 0
      %v1884 = vsel %vm1879, %v1856, 0
      %v1887 = vsel %vm1879, %v1857, 0
      %v1890 = vsel %vm1879, %v1858, 0
      %v1893 = vsel %vm1879, %v1859, 0
      %v1896 = vsel %vm1879, %v1860, 0
      %v1899 = vsel %vm1879, %v1861, 0
      %v1902 = vsel %vm1879, %v1862, 0
      %v1905 = vsel %vm1879, %v1863, 0
      %v1908 = vsel %vm1879, %v1864, 0
      %v1911 = vsel %vm1879, %v1865, 0
      %v1914 = vsel %vm1879, %v1866, 0
      %v1917 = vsel %vm1879, %v1867, 0
      %v1920 = vsel %vm1879, %v1868, 0
      %v1923 = vsel %vm1879, %v1869, 0
      %v1926 = vsel %vm1879, %v1870, 0
      %1928 = vmatprep.subr.mxu0 0.0
      %1929 = vmatpush1.msra.mxu0 %v1871
      %1930 = vmatprep.subr.mxu0 0.0
      %1931 = vmatpush1.msra.mxu0 %v1872
      %1932 = vmatprep.subr.mxu0 0.0
      %1933 = vmatpush1.msra.mxu0 %v1873
      %1934 = vmatprep.subr.mxu0 0.0
      %1935 = vmatpush1.msra.mxu0 %v1874
      %1936 = vmatprep.subr.mxu0 0.0
      %1937 = vmatpush1.msra.mxu0 %v1875
      %1938 = vmatprep.subr.mxu0 0.0
      %1939 = vmatpush1.msra.mxu0 %v1876
      %1940 = vmatprep.subr.mxu0 0.0
      %1941 = vmatpush1.msra.mxu0 %v1877
      %1942 = vmatprep.subr.mxu0 0.0
      %1943 = vmatpush1.msra.mxu0 %v1878
      %1944 = vmatprep.subr.mxu0 0.0
      %1945 = vmatpush1.msra.mxu0 0.0
      %1946 = vmatprep.subr.mxu0 0.0
      %1947 = vmatpush1.msra.mxu0 0.0
      %1948 = vmatprep.subr.mxu0 0.0
      %1949 = vmatpush1.msra.mxu0 0.0
      %1950 = vmatprep.subr.mxu0 0.0
      %1951 = vmatpush1.msra.mxu0 0.0
      %1952 = vmatprep.subr.mxu0 0.0
      %1953 = vmatpush1.msra.mxu0 0.0
      %1954 = vmatprep.subr.mxu0 0.0
      %1955 = vmatpush1.msra.mxu0 0.0
      %1956 = vmatprep.subr.mxu0 0.0
      %1957 = vmatpush1.msra.mxu0 0.0
      %1958 = vmatprep.subr.mxu0 0.0
      %1959 = vmatpush1.msra.mxu0 0.0
      %1960 = vmatprep.subr.mxu0 0.0
      %1961 = vmatpush1.msra.mxu0 0.0
      %1962 = vmatprep.subr.mxu0 0.0
      %1963 = vmatpush1.msra.mxu0 0.0
      %1964 = vmatprep.subr.mxu0 0.0
      %1965 = vmatpush1.msra.mxu0 0.0
      %1966 = vmatprep.subr.mxu0 0.0
      %1967 = vmatpush1.msra.mxu0 0.0
      %1968 = vmatprep.subr.mxu0 0.0
      %1969 = vmatpush1.msra.mxu0 0.0
      %1970 = vmatprep.subr.mxu0 0.0
      %1971 = vmatpush1.msra.mxu0 0.0
      %1972 = vmatprep.subr.mxu0 0.0
      %1973 = vmatpush1.msra.mxu0 0.0
      %1974 = vmatprep.subr.mxu0 0.0
      %1975 = vmatpush1.msra.mxu0 0.0
      %1976 = vmatprep.subr.mxu0 0.0
      %1977 = vmatpush1.msra.mxu0 0.0
      %1978 = vmatprep.subr.mxu0 0.0
      %1979 = vmatpush1.msra.mxu0 0.0
      %1980 = vmatprep.subr.mxu0 0.0
      %1981 = vmatpush1.msra.mxu0 0.0
      %1982 = vmatprep.subr.mxu0 0.0
      %1983 = vmatpush1.msra.mxu0 0.0
      %1984 = vmatprep.subr.mxu0 0.0
      %1985 = vmatpush1.msra.mxu0 0.0
      %1986 = vmatprep.subr.mxu0 0.0
      %1987 = vmatpush1.msra.mxu0 0.0
      %1988 = vmatprep.subr.mxu0 0.0
      %1989 = vmatpush1.msra.mxu0 0.0
      %1990 = vmatprep.subr.mxu0 0.0
      %1991 = vmatpush1.msra.mxu0 0.0
      %1992 = vmatprep.mubr.f32.mxu0 0.0
      %1993 = vmatmul.mubr.f32.gmra.mrb[0].mxu0 %v1881
      %v1994 = vpop.f32.mrb[0].mxu0
      %v1995 = vadd.f32 0.0, %v1994
      %v1996 = vpop.f32.mrb[0].mxu0
      %1997 = vmatprep.mubr.f32.mxu0 0.0
      %1998 = vmatmul.mubr.f32.gmra.mrb[0].mxu0 %v1884
      %v1999 = vpop.f32.mrb[0].mxu0
      %v2000 = vadd.f32 0.0, %v1999
      %v2001 = vpop.f32.mrb[0].mxu0
      %2002 = vmatprep.mubr.f32.mxu0 0.0
      %2003 = vmatmul.mubr.f32.gmra.mrb[0].mxu0 %v1887
      %v2004 = vpop.f32.mrb[0].mxu0
      %v2005 = vadd.f32 0.0, %v2004
      %v2006 = vpop.f32.mrb[0].mxu0
      %2007 = vmatprep.mubr.f32.mxu0 0.0
      %2008 = vmatmul.mubr.f32.gmra.mrb[0].mxu0 %v1890
      %v2009 = vpop.f32.mrb[0].mxu0
      %v2010 = vadd.f32 0.0, %v2009
      %v2011 = vpop.f32.mrb[0].mxu0
      %2012 = vmatprep.mubr.f32.mxu0 0.0
      %2013 = vmatmul.mubr.f32.gmra.mrb[0].mxu0 %v1893
      %v2014 = vpop.f32.mrb[0].mxu0
      %v2015 = vadd.f32 0.0, %v2014
      %v2016 = vpop.f32.mrb[0].mxu0
      %2017 = vmatprep.mubr.f32.mxu0 0.0
      %2018 = vmatmul.mubr.f32.gmra.mrb[0].mxu0 %v1896
      %v2019 = vpop.f32.mrb[0].mxu0
      %v2020 = vadd.f32 0.0, %v2019
      %v2021 = vpop.f32.mrb[0].mxu0
      %2022 = vmatprep.mubr.f32.mxu0 0.0
      %2023 = vmatmul.mubr.f32.gmra.mrb[0].mxu0 %v1899
      %v2024 = vpop.f32.mrb[0].mxu0
      %v2025 = vadd.f32 0.0, %v2024
      %v2026 = vpop.f32.mrb[0].mxu0
      %2027 = vmatprep.mubr.f32.mxu0 0.0
      %2028 = vmatmul.mubr.f32.gmra.mrb[0].mxu0 %v1902
      %v2029 = vpop.f32.mrb[0].mxu0
      %v2030 = vadd.f32 0.0, %v2029
      %v2031 = vpop.f32.mrb[0].mxu0
      %2032 = vmatprep.mubr.f32.mxu0 0.0
      %2033 = vmatmul.mubr.f32.gmra.mrb[0].mxu0 %v1905
      %v2034 = vpop.f32.mrb[0].mxu0
      %v2035 = vadd.f32 0.0, %v2034
      %v2036 = vpop.f32.mrb[0].mxu0
      %2037 = vmatprep.mubr.f32.mxu0 0.0
      %2038 = vmatmul.mubr.f32.gmra.mrb[0].mxu0 %v1908
      %v2039 = vpop.f32.mrb[0].mxu0
      %v2040 = vadd.f32 0.0, %v2039
      %v2041 = vpop.f32.mrb[0].mxu0
      %2042 = vmatprep.mubr.f32.mxu0 0.0
      %2043 = vmatmul.mubr.f32.gmra.mrb[0].mxu0 %v1911
      %v2044 = vpop.f32.mrb[0].mxu0
      %v2045 = vadd.f32 0.0, %v2044
      %v2046 = vpop.f32.mrb[0].mxu0
      %2047 = vmatprep.mubr.f32.mxu0 0.0
      %2048 = vmatmul.mubr.f32.gmra.mrb[0].mxu0 %v1914
      %v2049 = vpop.f32.mrb[0].mxu0
      %v2050 = vadd.f32 0.0, %v2049
      %v2051 = vpop.f32.mrb[0].mxu0
      %2052 = vmatprep.mubr.f32.mxu0 0.0
      %2053 = vmatmul.mubr.f32.gmra.mrb[0].mxu0 %v1917
      %v2054 = vpop.f32.mrb[0].mxu0
      %v2055 = vadd.f32 0.0, %v2054
      %v2056 = vpop.f32.mrb[0].mxu0
      %2057 = vmatprep.mubr.f32.mxu0 0.0
      %2058 = vmatmul.mubr.f32.gmra.mrb[0].mxu0 %v1920
      %v2059 = vpop.f32.mrb[0].mxu0
      %v2060 = vadd.f32 0.0, %v2059
      %v2061 = vpop.f32.mrb[0].mxu0
      %2062 = vmatprep.mubr.f32.mxu0 0.0
      %2063 = vmatmul.mubr.f32.gmra.mrb[0].mxu0 %v1923
      %v2064 = vpop.f32.mrb[0].mxu0
      %v2065 = vadd.f32 0.0, %v2064
      %v2066 = vpop.f32.mrb[0].mxu0
      %2067 = vmatprep.mubr.f32.mxu0 0.0
      %2068 = vmatmul.mubr.f32.gmra.mrb[0].mxu0 %v1926
      %v2069 = vpop.f32.mrb[0].mxu0
      %v2070 = vadd.f32 0.0, %v2069
      %v2071 = vpop.f32.mrb[0].mxu0
      %2072 = vdwg.mxu0
      %2089 = vrot.lane.b32.xlu0 %v1995, 72
      %v2090 = vpop.permute.xlu0 %2089
      %2091 = vrot.lane.b32.xlu0 %v2000, 72
      %v2092 = vpop.permute.xlu0 %2091
      %2093 = vrot.lane.b32.xlu0 %v2005, 72
      %v2094 = vpop.permute.xlu0 %2093
      %2095 = vrot.lane.b32.xlu0 %v2010, 72
      %v2096 = vpop.permute.xlu0 %2095
      %2097 = vrot.lane.b32.xlu0 %v2015, 72
      %v2098 = vpop.permute.xlu0 %2097
      %2099 = vrot.lane.b32.xlu0 %v2020, 72
      %v2100 = vpop.permute.xlu0 %2099
      %2101 = vrot.lane.b32.xlu0 %v2025, 72
      %v2102 = vpop.permute.xlu0 %2101
      %2103 = vrot.lane.b32.xlu0 %v2030, 72
      %v2104 = vpop.permute.xlu0 %2103
      %2105 = vrot.lane.b32.xlu0 %v2035, 72
      %v2106 = vpop.permute.xlu0 %2105
      %2107 = vrot.lane.b32.xlu0 %v2040, 72
      %v2108 = vpop.permute.xlu0 %2107
      %2109 = vrot.lane.b32.xlu0 %v2045, 72
      %v2110 = vpop.permute.xlu0 %2109
      %2111 = vrot.lane.b32.xlu0 %v2050, 72
      %v2112 = vpop.permute.xlu0 %2111
      %2113 = vrot.lane.b32.xlu0 %v2055, 72
      %v2114 = vpop.permute.xlu0 %2113
      %2115 = vrot.lane.b32.xlu0 %v2060, 72
      %v2116 = vpop.permute.xlu0 %2115
      %2117 = vrot.lane.b32.xlu0 %v2065, 72
      %v2118 = vpop.permute.xlu0 %2117
      %2119 = vrot.lane.b32.xlu0 %v2070, 72
      %v2120 = vpop.permute.xlu0 %2119
      %v2137 = vsub.f32 %v1855, %v2090
      %v2138 = vsub.f32 %v1856, %v2092
      %v2139 = vsub.f32 %v1857, %v2094
      %v2140 = vsub.f32 %v1858, %v2096
      %v2141 = vsub.f32 %v1859, %v2098
      %v2142 = vsub.f32 %v1860, %v2100
      %v2143 = vsub.f32 %v1861, %v2102
      %v2144 = vsub.f32 %v1862, %v2104
      %v2145 = vsub.f32 %v1863, %v2106
      %v2146 = vsub.f32 %v1864, %v2108
      %v2147 = vsub.f32 %v1865, %v2110
      %v2148 = vsub.f32 %v1866, %v2112
      %v2149 = vsub.f32 %v1867, %v2114
      %v2150 = vsub.f32 %v1868, %v2116
      %v2151 = vsub.f32 %v1869, %v2118
      %v2152 = vsub.f32 %v1870, %v2120
      %v2153 = vmul.f32 %v2137, 0.5
      %v2154 = vmul.f32 %v2138, 0.5
      %v2155 = vmul.f32 %v2139, 0.5
      %v2156 = vmul.f32 %v2140, 0.5
      %v2157 = vmul.f32 %v2141, 0.5
      %v2158 = vmul.f32 %v2142, 0.5
      %v2159 = vmul.f32 %v2143, 0.5
      %v2160 = vmul.f32 %v2144, 0.5
      %v2161 = vmul.f32 %v2145, 0.5
      %v2162 = vmul.f32 %v2146, 0.5
      %v2163 = vmul.f32 %v2147, 0.5
      %v2164 = vmul.f32 %v2148, 0.5
      %v2165 = vmul.f32 %v2149, 0.5
      %v2166 = vmul.f32 %v2150, 0.5
      %v2167 = vmul.f32 %v2151, 0.5
      %v2168 = vmul.f32 %v2152, 0.5
      %v2169 = vld [vmem:[%s5] sm:$0xff]
      %v2170 = vld [vmem:[%s5 + $0x8] sm:$0xff]
      %v2171 = vld [vmem:[%s5 + $0x10] sm:$0xff]
      %v2172 = vld [vmem:[%s5 + $0x18] sm:$0xff]
      %v2173 = vld [vmem:[%s5 + $0x20] sm:$0xff]
      %v2174 = vld [vmem:[%s5 + $0x28] sm:$0xff]
      %v2175 = vld [vmem:[%s5 + $0x30] sm:$0xff]
      %v2176 = vld [vmem:[%s5 + $0x38] sm:$0xff]
      %v2177 = vld [vmem:[%s6] sm:$0x1]
      %v2179 = vlaneseq
      %v2180 = vshrl.u32 %v2179, 7
      %v2181 = vsub.s32 0, %v2180
      %v2182 = vrot.slane %v2177, %v2181
      %v2185 = vsel %vm1879, %v1777, 0
      %v2188 = vsel %vm1879, %v1782, 0
      %v2191 = vsel %vm1879, %v1787, 0
      %v2194 = vsel %vm1879, %v1792, 0
      %v2197 = vsel %vm1879, %v1797, 0
      %v2200 = vsel %vm1879, %v1802, 0
      %v2203 = vsel %vm1879, %v1807, 0
      %v2206 = vsel %vm1879, %v1812, 0
      %v2209 = vsel %vm1879, %v1817, 0
      %v2212 = vsel %vm1879, %v1822, 0
      %v2215 = vsel %vm1879, %v1827, 0
      %v2218 = vsel %vm1879, %v1832, 0
      %v2221 = vsel %vm1879, %v1837, 0
      %v2224 = vsel %vm1879, %v1842, 0
      %v2227 = vsel %vm1879, %v1847, 0
      %v2230 = vsel %vm1879, %v1852, 0
      %2232 = vmatprep.subr.mxu0 0.0
      %2233 = vmatpush1.msra.mxu0 %v2169
      %2234 = vmatprep.subr.mxu0 0.0
      %2235 = vmatpush1.msra.mxu0 %v2170
      %2236 = vmatprep.subr.mxu0 0.0
      %2237 = vmatpush1.msra.mxu0 %v2171
      %2238 = vmatprep.subr.mxu0 0.0
      %2239 = vmatpush1.msra.mxu0 %v2172
      %2240 = vmatprep.subr.mxu0 0.0
      %2241 = vmatpush1.msra.mxu0 %v2173
      %2242 = vmatprep.subr.mxu0 0.0
      %2243 = vmatpush1.msra.mxu0 %v2174
      %2244 = vmatprep.subr.mxu0 0.0
      %2245 = vmatpush1.msra.mxu0 %v2175
      %2246 = vmatprep.subr.mxu0 0.0
      %2247 = vmatpush1.msra.mxu0 %v2176
      %2248 = vmatprep.subr.mxu0 0.0
      %2249 = vmatpush1.msra.mxu0 0.0
      %2250 = vmatprep.subr.mxu0 0.0
      %2251 = vmatpush1.msra.mxu0 0.0
      %2252 = vmatprep.subr.mxu0 0.0
      %2253 = vmatpush1.msra.mxu0 0.0
      %2254 = vmatprep.subr.mxu0 0.0
      %2255 = vmatpush1.msra.mxu0 0.0
      %2256 = vmatprep.subr.mxu0 0.0
      %2257 = vmatpush1.msra.mxu0 0.0
      %2258 = vmatprep.subr.mxu0 0.0
      %2259 = vmatpush1.msra.mxu0 0.0
      %2260 = vmatprep.subr.mxu0 0.0
      %2261 = vmatpush1.msra.mxu0 0.0
      %2262 = vmatprep.subr.mxu0 0.0
      %2263 = vmatpush1.msra.mxu0 0.0
      %2264 = vmatprep.subr.mxu0 0.0
      %2265 = vmatpush1.msra.mxu0 0.0
      %2266 = vmatprep.subr.mxu0 0.0
      %2267 = vmatpush1.msra.mxu0 0.0
      %2268 = vmatprep.subr.mxu0 0.0
      %2269 = vmatpush1.msra.mxu0 0.0
      %2270 = vmatprep.subr.mxu0 0.0
      %2271 = vmatpush1.msra.mxu0 0.0
      %2272 = vmatprep.subr.mxu0 0.0
      %2273 = vmatpush1.msra.mxu0 0.0
      %2274 = vmatprep.subr.mxu0 0.0
      %2275 = vmatpush1.msra.mxu0 0.0
      %2276 = vmatprep.subr.mxu0 0.0
      %2277 = vmatpush1.msra.mxu0 0.0
      %2278 = vmatprep.subr.mxu0 0.0
      %2279 = vmatpush1.msra.mxu0 0.0
      %2280 = vmatprep.subr.mxu0 0.0
      %2281 = vmatpush1.msra.mxu0 0.0
      %2282 = vmatprep.subr.mxu0 0.0
      %2283 = vmatpush1.msra.mxu0 0.0
      %2284 = vmatprep.subr.mxu0 0.0
      %2285 = vmatpush1.msra.mxu0 0.0
      %2286 = vmatprep.subr.mxu0 0.0
      %2287 = vmatpush1.msra.mxu0 0.0
      %2288 = vmatprep.subr.mxu0 0.0
      %2289 = vmatpush1.msra.mxu0 0.0
      %2290 = vmatprep.subr.mxu0 0.0
      %2291 = vmatpush1.msra.mxu0 0.0
      %2292 = vmatprep.subr.mxu0 0.0
      %2293 = vmatpush1.msra.mxu0 0.0
      %2294 = vmatprep.subr.mxu0 0.0
      %2295 = vmatpush1.msra.mxu0 0.0
      %2296 = vmatprep.mubr.f32.mxu0 0.0
      %2297 = vmatmul.mubr.f32.gmra.mrb[0].mxu0 %v2185
      %v2298 = vpop.f32.mrb[0].mxu0
      %v2299 = vadd.f32 %v2182, %v2298
      %v2300 = vpop.f32.mrb[0].mxu0
      %2301 = vmatprep.mubr.f32.mxu0 0.0
      %2302 = vmatmul.mubr.f32.gmra.mrb[0].mxu0 %v2188
      %v2303 = vpop.f32.mrb[0].mxu0
      %v2304 = vadd.f32 %v2182, %v2303
      %v2305 = vpop.f32.mrb[0].mxu0
      %2306 = vmatprep.mubr.f32.mxu0 0.0
      %2307 = vmatmul.mubr.f32.gmra.mrb[0].mxu0 %v2191
      %v2308 = vpop.f32.mrb[0].mxu0
      %v2309 = vadd.f32 %v2182, %v2308
      %v2310 = vpop.f32.mrb[0].mxu0
      %2311 = vmatprep.mubr.f32.mxu0 0.0
      %2312 = vmatmul.mubr.f32.gmra.mrb[0].mxu0 %v2194
      %v2313 = vpop.f32.mrb[0].mxu0
      %v2314 = vadd.f32 %v2182, %v2313
      %v2315 = vpop.f32.mrb[0].mxu0
      %2316 = vmatprep.mubr.f32.mxu0 0.0
      %2317 = vmatmul.mubr.f32.gmra.mrb[0].mxu0 %v2197
      %v2318 = vpop.f32.mrb[0].mxu0
      %v2319 = vadd.f32 %v2182, %v2318
      %v2320 = vpop.f32.mrb[0].mxu0
      %2321 = vmatprep.mubr.f32.mxu0 0.0
      %2322 = vmatmul.mubr.f32.gmra.mrb[0].mxu0 %v2200
      %v2323 = vpop.f32.mrb[0].mxu0
      %v2324 = vadd.f32 %v2182, %v2323
      %v2325 = vpop.f32.mrb[0].mxu0
      %2326 = vmatprep.mubr.f32.mxu0 0.0
      %2327 = vmatmul.mubr.f32.gmra.mrb[0].mxu0 %v2203
      %v2328 = vpop.f32.mrb[0].mxu0
      %v2329 = vadd.f32 %v2182, %v2328
      %v2330 = vpop.f32.mrb[0].mxu0
      %2331 = vmatprep.mubr.f32.mxu0 0.0
      %2332 = vmatmul.mubr.f32.gmra.mrb[0].mxu0 %v2206
      %v2333 = vpop.f32.mrb[0].mxu0
      %v2334 = vadd.f32 %v2182, %v2333
      %v2335 = vpop.f32.mrb[0].mxu0
      %2336 = vmatprep.mubr.f32.mxu0 0.0
      %2337 = vmatmul.mubr.f32.gmra.mrb[0].mxu0 %v2209
      %v2338 = vpop.f32.mrb[0].mxu0
      %v2339 = vadd.f32 %v2182, %v2338
      %v2340 = vpop.f32.mrb[0].mxu0
      %2341 = vmatprep.mubr.f32.mxu0 0.0
      %2342 = vmatmul.mubr.f32.gmra.mrb[0].mxu0 %v2212
      %v2343 = vpop.f32.mrb[0].mxu0
      %v2344 = vadd.f32 %v2182, %v2343
      %v2345 = vpop.f32.mrb[0].mxu0
      %2346 = vmatprep.mubr.f32.mxu0 0.0
      %2347 = vmatmul.mubr.f32.gmra.mrb[0].mxu0 %v2215
      %v2348 = vpop.f32.mrb[0].mxu0
      %v2349 = vadd.f32 %v2182, %v2348
      %v2350 = vpop.f32.mrb[0].mxu0
      %2351 = vmatprep.mubr.f32.mxu0 0.0
      %2352 = vmatmul.mubr.f32.gmra.mrb[0].mxu0 %v2218
      %v2353 = vpop.f32.mrb[0].mxu0
      %v2354 = vadd.f32 %v2182, %v2353
      %v2355 = vpop.f32.mrb[0].mxu0
      %2356 = vmatprep.mubr.f32.mxu0 0.0
      %2357 = vmatmul.mubr.f32.gmra.mrb[0].mxu0 %v2221
      %v2358 = vpop.f32.mrb[0].mxu0
      %v2359 = vadd.f32 %v2182, %v2358
      %v2360 = vpop.f32.mrb[0].mxu0
      %2361 = vmatprep.mubr.f32.mxu0 0.0
      %2362 = vmatmul.mubr.f32.gmra.mrb[0].mxu0 %v2224
      %v2363 = vpop.f32.mrb[0].mxu0
      %v2364 = vadd.f32 %v2182, %v2363
      %v2365 = vpop.f32.mrb[0].mxu0
      %2366 = vmatprep.mubr.f32.mxu0 0.0
      %2367 = vmatmul.mubr.f32.gmra.mrb[0].mxu0 %v2227
      %v2368 = vpop.f32.mrb[0].mxu0
      %v2369 = vadd.f32 %v2182, %v2368
      %v2370 = vpop.f32.mrb[0].mxu0
      %2371 = vmatprep.mubr.f32.mxu0 0.0
      %2372 = vmatmul.mubr.f32.gmra.mrb[0].mxu0 %v2230
      %v2373 = vpop.f32.mrb[0].mxu0
      %v2374 = vadd.f32 %v2182, %v2373
      %v2375 = vpop.f32.mrb[0].mxu0
      %2376 = vdwg.mxu0
      %v2377 = vmax.f32 %v2299, 0.0
      %v2378 = vmax.f32 %v2304, 0.0
      %v2379 = vmax.f32 %v2309, 0.0
      %v2380 = vmax.f32 %v2314, 0.0
      %v2381 = vmax.f32 %v2319, 0.0
      %v2382 = vmax.f32 %v2324, 0.0
      %v2383 = vmax.f32 %v2329, 0.0
      %v2384 = vmax.f32 %v2334, 0.0
      %v2385 = vmax.f32 %v2339, 0.0
      %v2386 = vmax.f32 %v2344, 0.0
      %v2387 = vmax.f32 %v2349, 0.0
      %v2388 = vmax.f32 %v2354, 0.0
      %v2389 = vmax.f32 %v2359, 0.0
      %v2390 = vmax.f32 %v2364, 0.0
      %v2391 = vmax.f32 %v2369, 0.0
      %v2392 = vmax.f32 %v2374, 0.0
      %v2393 = vld [vmem:[%s7] sm:$0xff]
      %v2394 = vld [vmem:[%s7 + $0x8] sm:$0xff]
      %v2395 = vld [vmem:[%s7 + $0x10] sm:$0xff]
      %v2396 = vld [vmem:[%s7 + $0x18] sm:$0xff]
      %v2397 = vld [vmem:[%s8] sm:$0x1]
      %v2399 = vlaneseq
      %v2400 = vshrl.u32 %v2399, 7
      %v2401 = vsub.s32 0, %v2400
      %v2402 = vrot.slane %v2397, %v2401
      %vm2404 = vcmask 261120
      %v2406 = vsel %vm2404, %v2377, 0
      %v2409 = vsel %vm2404, %v2378, 0
      %v2412 = vsel %vm2404, %v2379, 0
      %v2415 = vsel %vm2404, %v2380, 0
      %v2418 = vsel %vm2404, %v2381, 0
      %v2421 = vsel %vm2404, %v2382, 0
      %v2424 = vsel %vm2404, %v2383, 0
      %v2427 = vsel %vm2404, %v2384, 0
      %v2430 = vsel %vm2404, %v2385, 0
      %v2433 = vsel %vm2404, %v2386, 0
      %v2436 = vsel %vm2404, %v2387, 0
      %v2439 = vsel %vm2404, %v2388, 0
      %v2442 = vsel %vm2404, %v2389, 0
      %v2445 = vsel %vm2404, %v2390, 0
      %v2448 = vsel %vm2404, %v2391, 0
      %v2451 = vsel %vm2404, %v2392, 0
      %2453 = vmatprep.subr.mxu0 0.0
      %2454 = vmatpush1.msra.mxu0 %v2393
      %2455 = vmatprep.subr.mxu0 0.0
      %2456 = vmatpush1.msra.mxu0 %v2394
      %2457 = vmatprep.subr.mxu0 0.0
      %2458 = vmatpush1.msra.mxu0 %v2395
      %2459 = vmatprep.subr.mxu0 0.0
      %2460 = vmatpush1.msra.mxu0 %v2396
      %2461 = vmatprep.subr.mxu0 0.0
      %2462 = vmatpush1.msra.mxu0 0.0
      %2463 = vmatprep.subr.mxu0 0.0
      %2464 = vmatpush1.msra.mxu0 0.0
      %2465 = vmatprep.subr.mxu0 0.0
      %2466 = vmatpush1.msra.mxu0 0.0
      %2467 = vmatprep.subr.mxu0 0.0
      %2468 = vmatpush1.msra.mxu0 0.0
      %2469 = vmatprep.subr.mxu0 0.0
      %2470 = vmatpush1.msra.mxu0 0.0
      %2471 = vmatprep.subr.mxu0 0.0
      %2472 = vmatpush1.msra.mxu0 0.0
      %2473 = vmatprep.subr.mxu0 0.0
      %2474 = vmatpush1.msra.mxu0 0.0
      %2475 = vmatprep.subr.mxu0 0.0
      %2476 = vmatpush1.msra.mxu0 0.0
      %2477 = vmatprep.subr.mxu0 0.0
      %2478 = vmatpush1.msra.mxu0 0.0
      %2479 = vmatprep.subr.mxu0 0.0
      %2480 = vmatpush1.msra.mxu0 0.0
      %2481 = vmatprep.subr.mxu0 0.0
      %2482 = vmatpush1.msra.mxu0 0.0
      %2483 = vmatprep.subr.mxu0 0.0
      %2484 = vmatpush1.msra.mxu0 0.0
      %2485 = vmatprep.subr.mxu0 0.0
      %2486 = vmatpush1.msra.mxu0 0.0
      %2487 = vmatprep.subr.mxu0 0.0
      %2488 = vmatpush1.msra.mxu0 0.0
      %2489 = vmatprep.subr.mxu0 0.0
      %2490 = vmatpush1.msra.mxu0 0.0
      %2491 = vmatprep.subr.mxu0 0.0
      %2492 = vmatpush1.msra.mxu0 0.0
      %2493 = vmatprep.subr.mxu0 0.0
      %2494 = vmatpush1.msra.mxu0 0.0
      %2495 = vmatprep.subr.mxu0 0.0
      %2496 = vmatpush1.msra.mxu0 0.0
      %2497 = vmatprep.subr.mxu0 0.0
      %2498 = vmatpush1.msra.mxu0 0.0
      %2499 = vmatprep.subr.mxu0 0.0
      %2500 = vmatpush1.msra.mxu0 0.0
      %2501 = vmatprep.subr.mxu0 0.0
      %2502 = vmatpush1.msra.mxu0 0.0
      %2503 = vmatprep.subr.mxu0 0.0
      %2504 = vmatpush1.msra.mxu0 0.0
      %2505 = vmatprep.subr.mxu0 0.0
      %2506 = vmatpush1.msra.mxu0 0.0
      %2507 = vmatprep.subr.mxu0 0.0
      %2508 = vmatpush1.msra.mxu0 0.0
      %2509 = vmatprep.subr.mxu0 0.0
      %2510 = vmatpush1.msra.mxu0 0.0
      %2511 = vmatprep.subr.mxu0 0.0
      %2512 = vmatpush1.msra.mxu0 0.0
      %2513 = vmatprep.subr.mxu0 0.0
      %2514 = vmatpush1.msra.mxu0 0.0
      %2515 = vmatprep.subr.mxu0 0.0
      %2516 = vmatpush1.msra.mxu0 0.0
      %2517 = vmatprep.mubr.f32.mxu0 0.0
      %2518 = vmatmul.mubr.f32.gmra.mrb[0].mxu0 %v2406
      %v2519 = vpop.f32.mrb[0].mxu0
      %v2520 = vadd.f32 %v2402, %v2519
      %v2521 = vpop.f32.mrb[0].mxu0
      %2522 = vmatprep.mubr.f32.mxu0 0.0
      %2523 = vmatmul.mubr.f32.gmra.mrb[0].mxu0 %v2409
      %v2524 = vpop.f32.mrb[0].mxu0
      %v2525 = vadd.f32 %v2402, %v2524
      %v2526 = vpop.f32.mrb[0].mxu0
      %2527 = vmatprep.mubr.f32.mxu0 0.0
      %2528 = vmatmul.mubr.f32.gmra.mrb[0].mxu0 %v2412
      %v2529 = vpop.f32.mrb[0].mxu0
      %v2530 = vadd.f32 %v2402, %v2529
      %v2531 = vpop.f32.mrb[0].mxu0
      %2532 = vmatprep.mubr.f32.mxu0 0.0
      %2533 = vmatmul.mubr.f32.gmra.mrb[0].mxu0 %v2415
      %v2534 = vpop.f32.mrb[0].mxu0
      %v2535 = vadd.f32 %v2402, %v2534
      %v2536 = vpop.f32.mrb[0].mxu0
      %2537 = vmatprep.mubr.f32.mxu0 0.0
      %2538 = vmatmul.mubr.f32.gmra.mrb[0].mxu0 %v2418
      %v2539 = vpop.f32.mrb[0].mxu0
      %v2540 = vadd.f32 %v2402, %v2539
      %v2541 = vpop.f32.mrb[0].mxu0
      %2542 = vmatprep.mubr.f32.mxu0 0.0
      %2543 = vmatmul.mubr.f32.gmra.mrb[0].mxu0 %v2421
      %v2544 = vpop.f32.mrb[0].mxu0
      %v2545 = vadd.f32 %v2402, %v2544
      %v2546 = vpop.f32.mrb[0].mxu0
      %2547 = vmatprep.mubr.f32.mxu0 0.0
      %2548 = vmatmul.mubr.f32.gmra.mrb[0].mxu0 %v2424
      %v2549 = vpop.f32.mrb[0].mxu0
      %v2550 = vadd.f32 %v2402, %v2549
      %v2551 = vpop.f32.mrb[0].mxu0
      %2552 = vmatprep.mubr.f32.mxu0 0.0
      %2553 = vmatmul.mubr.f32.gmra.mrb[0].mxu0 %v2427
      %v2554 = vpop.f32.mrb[0].mxu0
      %v2555 = vadd.f32 %v2402, %v2554
      %v2556 = vpop.f32.mrb[0].mxu0
      %2557 = vmatprep.mubr.f32.mxu0 0.0
      %2558 = vmatmul.mubr.f32.gmra.mrb[0].mxu0 %v2430
      %v2559 = vpop.f32.mrb[0].mxu0
      %v2560 = vadd.f32 %v2402, %v2559
      %v2561 = vpop.f32.mrb[0].mxu0
      %2562 = vmatprep.mubr.f32.mxu0 0.0
      %2563 = vmatmul.mubr.f32.gmra.mrb[0].mxu0 %v2433
      %v2564 = vpop.f32.mrb[0].mxu0
      %v2565 = vadd.f32 %v2402, %v2564
      %v2566 = vpop.f32.mrb[0].mxu0
      %2567 = vmatprep.mubr.f32.mxu0 0.0
      %2568 = vmatmul.mubr.f32.gmra.mrb[0].mxu0 %v2436
      %v2569 = vpop.f32.mrb[0].mxu0
      %v2570 = vadd.f32 %v2402, %v2569
      %v2571 = vpop.f32.mrb[0].mxu0
      %2572 = vmatprep.mubr.f32.mxu0 0.0
      %2573 = vmatmul.mubr.f32.gmra.mrb[0].mxu0 %v2439
      %v2574 = vpop.f32.mrb[0].mxu0
      %v2575 = vadd.f32 %v2402, %v2574
      %v2576 = vpop.f32.mrb[0].mxu0
      %2577 = vmatprep.mubr.f32.mxu0 0.0
      %2578 = vmatmul.mubr.f32.gmra.mrb[0].mxu0 %v2442
      %v2579 = vpop.f32.mrb[0].mxu0
      %v2580 = vadd.f32 %v2402, %v2579
      %v2581 = vpop.f32.mrb[0].mxu0
      %2582 = vmatprep.mubr.f32.mxu0 0.0
      %2583 = vmatmul.mubr.f32.gmra.mrb[0].mxu0 %v2445
      %v2584 = vpop.f32.mrb[0].mxu0
      %v2585 = vadd.f32 %v2402, %v2584
      %v2586 = vpop.f32.mrb[0].mxu0
      %2587 = vmatprep.mubr.f32.mxu0 0.0
      %2588 = vmatmul.mubr.f32.gmra.mrb[0].mxu0 %v2448
      %v2589 = vpop.f32.mrb[0].mxu0
      %v2590 = vadd.f32 %v2402, %v2589
      %v2591 = vpop.f32.mrb[0].mxu0
      %2592 = vmatprep.mubr.f32.mxu0 0.0
      %2593 = vmatmul.mubr.f32.gmra.mrb[0].mxu0 %v2451
      %v2594 = vpop.f32.mrb[0].mxu0
      %v2595 = vadd.f32 %v2402, %v2594
      %v2596 = vpop.f32.mrb[0].mxu0
      %2597 = vdwg.mxu0
      %v2598 = vmax.f32 %v2520, 0.0
      %v2599 = vmax.f32 %v2525, 0.0
      %v2600 = vmax.f32 %v2530, 0.0
      %v2601 = vmax.f32 %v2535, 0.0
      %v2602 = vmax.f32 %v2540, 0.0
      %v2603 = vmax.f32 %v2545, 0.0
      %v2604 = vmax.f32 %v2550, 0.0
      %v2605 = vmax.f32 %v2555, 0.0
      %v2606 = vmax.f32 %v2560, 0.0
      %v2607 = vmax.f32 %v2565, 0.0
      %v2608 = vmax.f32 %v2570, 0.0
      %v2609 = vmax.f32 %v2575, 0.0
      %v2610 = vmax.f32 %v2580, 0.0
      %v2611 = vmax.f32 %v2585, 0.0
      %v2612 = vmax.f32 %v2590, 0.0
      %v2613 = vmax.f32 %v2595, 0.0
      %v2614 = vld [vmem:[%s9] sm:$0x1]
      %v2616 = vlaneseq
      %v2617 = vshrl.u32 %v2616, 7
      %v2618 = vsub.s32 0, %v2617
      %v2619 = vrot.slane %v2614, %v2618
      %2620 = vrot.lane.b32.xlu0 %v2619, 64
      %v2621 = vpop.permute.xlu0 %2620
      %v2623 = vmul.f32 %v1777, %v2621
      %v2624 = vmul.f32 %v1782, %v2621
      %v2625 = vmul.f32 %v1787, %v2621
      %v2626 = vmul.f32 %v1792, %v2621
      %v2627 = vmul.f32 %v1797, %v2621
      %v2628 = vmul.f32 %v1802, %v2621
      %v2629 = vmul.f32 %v1807, %v2621
      %v2630 = vmul.f32 %v1812, %v2621
      %v2631 = vmul.f32 %v1817, %v2621
      %v2632 = vmul.f32 %v1822, %v2621
      %v2633 = vmul.f32 %v1827, %v2621
      %v2634 = vmul.f32 %v1832, %v2621
      %v2635 = vmul.f32 %v1837, %v2621
      %v2636 = vmul.f32 %v1842, %v2621
      %v2637 = vmul.f32 %v1847, %v2621
      %v2638 = vmul.f32 %v1852, %v2621
      %2655 = vrot.lane.b32.xlu0 %v2623, 64
      %v2656 = vpop.permute.xlu0 %2655
      %2657 = vrot.lane.b32.xlu0 %v2624, 64
      %v2658 = vpop.permute.xlu0 %2657
      %2659 = vrot.lane.b32.xlu0 %v2625, 64
      %v2660 = vpop.permute.xlu0 %2659
      %2661 = vrot.lane.b32.xlu0 %v2626, 64
      %v2662 = vpop.permute.xlu0 %2661
      %2663 = vrot.lane.b32.xlu0 %v2627, 64
      %v2664 = vpop.permute.xlu0 %2663
      %2665 = vrot.lane.b32.xlu0 %v2628, 64
      %v2666 = vpop.permute.xlu0 %2665
      %2667 = vrot.lane.b32.xlu0 %v2629, 64
      %v2668 = vpop.permute.xlu0 %2667
      %2669 = vrot.lane.b32.xlu0 %v2630, 64
      %v2670 = vpop.permute.xlu0 %2669
      %2671 = vrot.lane.b32.xlu0 %v2631, 64
      %v2672 = vpop.permute.xlu0 %2671
      %2673 = vrot.lane.b32.xlu0 %v2632, 64
      %v2674 = vpop.permute.xlu0 %2673
      %2675 = vrot.lane.b32.xlu0 %v2633, 64
      %v2676 = vpop.permute.xlu0 %2675
      %2677 = vrot.lane.b32.xlu0 %v2634, 64
      %v2678 = vpop.permute.xlu0 %2677
      %2679 = vrot.lane.b32.xlu0 %v2635, 64
      %v2680 = vpop.permute.xlu0 %2679
      %2681 = vrot.lane.b32.xlu0 %v2636, 64
      %v2682 = vpop.permute.xlu0 %2681
      %2683 = vrot.lane.b32.xlu0 %v2637, 64
      %v2684 = vpop.permute.xlu0 %2683
      %2685 = vrot.lane.b32.xlu0 %v2638, 64
      %v2686 = vpop.permute.xlu0 %2685
      %v2703 = vsel %vm514, %v2656, 0.0
      %2704 = vadd.xlane.f32.xlu0 %v2703
      %v2705 = vpop.xlane.xlu0 %2704
      %v2706 = vsel %vm514, %v2658, 0.0
      %2707 = vadd.xlane.f32.xlu0 %v2706
      %v2708 = vpop.xlane.xlu0 %2707
      %v2709 = vsel %vm514, %v2660, 0.0
      %2710 = vadd.xlane.f32.xlu0 %v2709
      %v2711 = vpop.xlane.xlu0 %2710
      %v2712 = vsel %vm514, %v2662, 0.0
      %2713 = vadd.xlane.f32.xlu0 %v2712
      %v2714 = vpop.xlane.xlu0 %2713
      %v2715 = vsel %vm514, %v2664, 0.0
      %2716 = vadd.xlane.f32.xlu0 %v2715
      %v2717 = vpop.xlane.xlu0 %2716
      %v2718 = vsel %vm514, %v2666, 0.0
      %2719 = vadd.xlane.f32.xlu0 %v2718
      %v2720 = vpop.xlane.xlu0 %2719
      %v2721 = vsel %vm514, %v2668, 0.0
      %2722 = vadd.xlane.f32.xlu0 %v2721
      %v2723 = vpop.xlane.xlu0 %2722
      %v2724 = vsel %vm514, %v2670, 0.0
      %2725 = vadd.xlane.f32.xlu0 %v2724
      %v2726 = vpop.xlane.xlu0 %2725
      %v2727 = vsel %vm514, %v2672, 0.0
      %2728 = vadd.xlane.f32.xlu0 %v2727
      %v2729 = vpop.xlane.xlu0 %2728
      %v2730 = vsel %vm514, %v2674, 0.0
      %2731 = vadd.xlane.f32.xlu0 %v2730
      %v2732 = vpop.xlane.xlu0 %2731
      %v2733 = vsel %vm514, %v2676, 0.0
      %2734 = vadd.xlane.f32.xlu0 %v2733
      %v2735 = vpop.xlane.xlu0 %2734
      %v2736 = vsel %vm514, %v2678, 0.0
      %2737 = vadd.xlane.f32.xlu0 %v2736
      %v2738 = vpop.xlane.xlu0 %2737
      %v2739 = vsel %vm514, %v2680, 0.0
      %2740 = vadd.xlane.f32.xlu0 %v2739
      %v2741 = vpop.xlane.xlu0 %2740
      %v2742 = vsel %vm514, %v2682, 0.0
      %2743 = vadd.xlane.f32.xlu0 %v2742
      %v2744 = vpop.xlane.xlu0 %2743
      %v2745 = vsel %vm514, %v2684, 0.0
      %2746 = vadd.xlane.f32.xlu0 %v2745
      %v2747 = vpop.xlane.xlu0 %2746
      %v2748 = vsel %vm514, %v2686, 0.0
      %2749 = vadd.xlane.f32.xlu0 %v2748
      %v2750 = vpop.xlane.xlu0 %2749
      %v2751 = vld [vmem:[%s10] sm:$0x1]
      %v2753 = vlaneseq
      %v2754 = vshrl.u32 %v2753, 7
      %v2755 = vsub.s32 0, %v2754
      %v2756 = vrot.slane %v2751, %v2755
      %2757 = vrot.lane.b32.xlu0 %v2756, 72
      %v2758 = vpop.permute.xlu0 %2757
      %v2760 = vmul.f32 %v2153, %v2758
      %v2761 = vmul.f32 %v2154, %v2758
      %v2762 = vmul.f32 %v2155, %v2758
      %v2763 = vmul.f32 %v2156, %v2758
      %v2764 = vmul.f32 %v2157, %v2758
      %v2765 = vmul.f32 %v2158, %v2758
      %v2766 = vmul.f32 %v2159, %v2758
      %v2767 = vmul.f32 %v2160, %v2758
      %v2768 = vmul.f32 %v2161, %v2758
      %v2769 = vmul.f32 %v2162, %v2758
      %v2770 = vmul.f32 %v2163, %v2758
      %v2771 = vmul.f32 %v2164, %v2758
      %v2772 = vmul.f32 %v2165, %v2758
      %v2773 = vmul.f32 %v2166, %v2758
      %v2774 = vmul.f32 %v2167, %v2758
      %v2775 = vmul.f32 %v2168, %v2758
      %2792 = vrot.lane.b32.xlu0 %v2760, 56
      %v2793 = vpop.permute.xlu0 %2792
      %2794 = vrot.lane.b32.xlu0 %v2761, 56
      %v2795 = vpop.permute.xlu0 %2794
      %2796 = vrot.lane.b32.xlu0 %v2762, 56
      %v2797 = vpop.permute.xlu0 %2796
      %2798 = vrot.lane.b32.xlu0 %v2763, 56
      %v2799 = vpop.permute.xlu0 %2798
      %2800 = vrot.lane.b32.xlu0 %v2764, 56
      %v2801 = vpop.permute.xlu0 %2800
      %2802 = vrot.lane.b32.xlu0 %v2765, 56
      %v2803 = vpop.permute.xlu0 %2802
      %2804 = vrot.lane.b32.xlu0 %v2766, 56
      %v2805 = vpop.permute.xlu0 %2804
      %2806 = vrot.lane.b32.xlu0 %v2767, 56
      %v2807 = vpop.permute.xlu0 %2806
      %2808 = vrot.lane.b32.xlu0 %v2768, 56
      %v2809 = vpop.permute.xlu0 %2808
      %2810 = vrot.lane.b32.xlu0 %v2769, 56
      %v2811 = vpop.permute.xlu0 %2810
      %2812 = vrot.lane.b32.xlu0 %v2770, 56
      %v2813 = vpop.permute.xlu0 %2812
      %2814 = vrot.lane.b32.xlu0 %v2771, 56
      %v2815 = vpop.permute.xlu0 %2814
      %2816 = vrot.lane.b32.xlu0 %v2772, 56
      %v2817 = vpop.permute.xlu0 %2816
      %2818 = vrot.lane.b32.xlu0 %v2773, 56
      %v2819 = vpop.permute.xlu0 %2818
      %2820 = vrot.lane.b32.xlu0 %v2774, 56
      %v2821 = vpop.permute.xlu0 %2820
      %2822 = vrot.lane.b32.xlu0 %v2775, 56
      %v2823 = vpop.permute.xlu0 %2822
      %v2840 = vsel %vm514, %v2793, 0.0
      %2841 = vadd.xlane.f32.xlu0 %v2840
      %v2842 = vpop.xlane.xlu0 %2841
      %v2843 = vsel %vm514, %v2795, 0.0
      %2844 = vadd.xlane.f32.xlu0 %v2843
      %v2845 = vpop.xlane.xlu0 %2844
      %v2846 = vsel %vm514, %v2797, 0.0
      %2847 = vadd.xlane.f32.xlu0 %v2846
      %v2848 = vpop.xlane.xlu0 %2847
      %v2849 = vsel %vm514, %v2799, 0.0
      %2850 = vadd.xlane.f32.xlu0 %v2849
      %v2851 = vpop.xlane.xlu0 %2850
      %v2852 = vsel %vm514, %v2801, 0.0
      %2853 = vadd.xlane.f32.xlu0 %v2852
      %v2854 = vpop.xlane.xlu0 %2853
      %v2855 = vsel %vm514, %v2803, 0.0
      %2856 = vadd.xlane.f32.xlu0 %v2855
      %v2857 = vpop.xlane.xlu0 %2856
      %v2858 = vsel %vm514, %v2805, 0.0
      %2859 = vadd.xlane.f32.xlu0 %v2858
      %v2860 = vpop.xlane.xlu0 %2859
      %v2861 = vsel %vm514, %v2807, 0.0
      %2862 = vadd.xlane.f32.xlu0 %v2861
      %v2863 = vpop.xlane.xlu0 %2862
      %v2864 = vsel %vm514, %v2809, 0.0
      %2865 = vadd.xlane.f32.xlu0 %v2864
      %v2866 = vpop.xlane.xlu0 %2865
      %v2867 = vsel %vm514, %v2811, 0.0
      %2868 = vadd.xlane.f32.xlu0 %v2867
      %v2869 = vpop.xlane.xlu0 %2868
      %v2870 = vsel %vm514, %v2813, 0.0
      %2871 = vadd.xlane.f32.xlu0 %v2870
      %v2872 = vpop.xlane.xlu0 %2871
      %v2873 = vsel %vm514, %v2815, 0.0
      %2874 = vadd.xlane.f32.xlu0 %v2873
      %v2875 = vpop.xlane.xlu0 %2874
      %v2876 = vsel %vm514, %v2817, 0.0
      %2877 = vadd.xlane.f32.xlu0 %v2876
      %v2878 = vpop.xlane.xlu0 %2877
      %v2879 = vsel %vm514, %v2819, 0.0
      %2880 = vadd.xlane.f32.xlu0 %v2879
      %v2881 = vpop.xlane.xlu0 %2880
      %v2882 = vsel %vm514, %v2821, 0.0
      %2883 = vadd.xlane.f32.xlu0 %v2882
      %v2884 = vpop.xlane.xlu0 %2883
      %v2885 = vsel %vm514, %v2823, 0.0
      %2886 = vadd.xlane.f32.xlu0 %v2885
      %v2887 = vpop.xlane.xlu0 %2886
      %v2888 = vadd.f32 %v2705, %v2842
      %v2889 = vadd.f32 %v2708, %v2845
      %v2890 = vadd.f32 %v2711, %v2848
      %v2891 = vadd.f32 %v2714, %v2851
      %v2892 = vadd.f32 %v2717, %v2854
      %v2893 = vadd.f32 %v2720, %v2857
      %v2894 = vadd.f32 %v2723, %v2860
      %v2895 = vadd.f32 %v2726, %v2863
      %v2896 = vadd.f32 %v2729, %v2866
      %v2897 = vadd.f32 %v2732, %v2869
      %v2898 = vadd.f32 %v2735, %v2872
      %v2899 = vadd.f32 %v2738, %v2875
      %v2900 = vadd.f32 %v2741, %v2878
      %v2901 = vadd.f32 %v2744, %v2881
      %v2902 = vadd.f32 %v2747, %v2884
      %v2903 = vadd.f32 %v2750, %v2887
      %v2904 = vld [vmem:[%s11] sm:$0x1]
      %v2906 = vlaneseq
      %v2907 = vshrl.u32 %v2906, 7
      %v2908 = vsub.s32 0, %v2907
      %v2909 = vrot.slane %v2904, %v2908
      %v2911 = vmul.f32 %v2598, %v2909
      %v2912 = vmul.f32 %v2599, %v2909
      %v2913 = vmul.f32 %v2600, %v2909
      %v2914 = vmul.f32 %v2601, %v2909
      %v2915 = vmul.f32 %v2602, %v2909
      %v2916 = vmul.f32 %v2603, %v2909
      %v2917 = vmul.f32 %v2604, %v2909
      %v2918 = vmul.f32 %v2605, %v2909
      %v2919 = vmul.f32 %v2606, %v2909
      %v2920 = vmul.f32 %v2607, %v2909
      %v2921 = vmul.f32 %v2608, %v2909
      %v2922 = vmul.f32 %v2609, %v2909
      %v2923 = vmul.f32 %v2610, %v2909
      %v2924 = vmul.f32 %v2611, %v2909
      %v2925 = vmul.f32 %v2612, %v2909
      %v2926 = vmul.f32 %v2613, %v2909
      %vm2927 = vcmask 130048
      %v2928 = vsel %vm2927, %v2911, 0.0
      %2929 = vadd.xlane.f32.xlu0 %v2928
      %v2930 = vpop.xlane.xlu0 %2929
      %v2931 = vsel %vm2927, %v2912, 0.0
      %2932 = vadd.xlane.f32.xlu0 %v2931
      %v2933 = vpop.xlane.xlu0 %2932
      %v2934 = vsel %vm2927, %v2913, 0.0
      %2935 = vadd.xlane.f32.xlu0 %v2934
      %v2936 = vpop.xlane.xlu0 %2935
      %v2937 = vsel %vm2927, %v2914, 0.0
      %2938 = vadd.xlane.f32.xlu0 %v2937
      %v2939 = vpop.xlane.xlu0 %2938
      %v2940 = vsel %vm2927, %v2915, 0.0
      %2941 = vadd.xlane.f32.xlu0 %v2940
      %v2942 = vpop.xlane.xlu0 %2941
      %v2943 = vsel %vm2927, %v2916, 0.0
      %2944 = vadd.xlane.f32.xlu0 %v2943
      %v2945 = vpop.xlane.xlu0 %2944
      %v2946 = vsel %vm2927, %v2917, 0.0
      %2947 = vadd.xlane.f32.xlu0 %v2946
      %v2948 = vpop.xlane.xlu0 %2947
      %v2949 = vsel %vm2927, %v2918, 0.0
      %2950 = vadd.xlane.f32.xlu0 %v2949
      %v2951 = vpop.xlane.xlu0 %2950
      %v2952 = vsel %vm2927, %v2919, 0.0
      %2953 = vadd.xlane.f32.xlu0 %v2952
      %v2954 = vpop.xlane.xlu0 %2953
      %v2955 = vsel %vm2927, %v2920, 0.0
      %2956 = vadd.xlane.f32.xlu0 %v2955
      %v2957 = vpop.xlane.xlu0 %2956
      %v2958 = vsel %vm2927, %v2921, 0.0
      %2959 = vadd.xlane.f32.xlu0 %v2958
      %v2960 = vpop.xlane.xlu0 %2959
      %v2961 = vsel %vm2927, %v2922, 0.0
      %2962 = vadd.xlane.f32.xlu0 %v2961
      %v2963 = vpop.xlane.xlu0 %2962
      %v2964 = vsel %vm2927, %v2923, 0.0
      %2965 = vadd.xlane.f32.xlu0 %v2964
      %v2966 = vpop.xlane.xlu0 %2965
      %v2967 = vsel %vm2927, %v2924, 0.0
      %2968 = vadd.xlane.f32.xlu0 %v2967
      %v2969 = vpop.xlane.xlu0 %2968
      %v2970 = vsel %vm2927, %v2925, 0.0
      %2971 = vadd.xlane.f32.xlu0 %v2970
      %v2972 = vpop.xlane.xlu0 %2971
      %v2973 = vsel %vm2927, %v2926, 0.0
      %2974 = vadd.xlane.f32.xlu0 %v2973
      %v2975 = vpop.xlane.xlu0 %2974
      %v2976 = vadd.f32 %v2888, %v2930
      %v2977 = vadd.f32 %v2889, %v2933
      %v2978 = vadd.f32 %v2890, %v2936
      %v2979 = vadd.f32 %v2891, %v2939
      %v2980 = vadd.f32 %v2892, %v2942
      %v2981 = vadd.f32 %v2893, %v2945
      %v2982 = vadd.f32 %v2894, %v2948
      %v2983 = vadd.f32 %v2895, %v2951
      %v2984 = vadd.f32 %v2896, %v2954
      %v2985 = vadd.f32 %v2897, %v2957
      %v2986 = vadd.f32 %v2898, %v2960
      %v2987 = vadd.f32 %v2899, %v2963
      %v2988 = vadd.f32 %v2900, %v2966
      %v2989 = vadd.f32 %v2901, %v2969
      %v2990 = vadd.f32 %v2902, %v2972
      %v2991 = vadd.f32 %v2903, %v2975
      %v2992 = vld [vmem:[#allocation2] sm:$0x1]
      %v2994 = vlaneseq
      %v2995 = vshrl.u32 %v2994, 7
      %v2996 = vsub.s32 0, %v2995
      %v2997 = vrot.slane %v2992, %v2996
      %v2999 = vadd.f32 %v2976, %v2997
      %v3000 = vadd.f32 %v2977, %v2997
      %v3001 = vadd.f32 %v2978, %v2997
      %v3002 = vadd.f32 %v2979, %v2997
      %v3003 = vadd.f32 %v2980, %v2997
      %v3004 = vadd.f32 %v2981, %v2997
      %v3005 = vadd.f32 %v2982, %v2997
      %v3006 = vadd.f32 %v2983, %v2997
      %v3007 = vadd.f32 %v2984, %v2997
      %v3008 = vadd.f32 %v2985, %v2997
      %v3009 = vadd.f32 %v2986, %v2997
      %v3010 = vadd.f32 %v2987, %v2997
      %v3011 = vadd.f32 %v2988, %v2997
      %v3012 = vadd.f32 %v2989, %v2997
      %v3013 = vadd.f32 %v2990, %v2997
      %v3014 = vadd.f32 %v2991, %v2997
      %vm3015 = vcmask 7168
      %3016 = vst.msk [vmem:[%s444] sm:$0xff] %vm3015, %v2999
      %3017 = vst.msk [vmem:[%s444 + $0x8] sm:$0xff] %vm3015, %v3000
      %3018 = vst.msk [vmem:[%s444 + $0x10] sm:$0xff] %vm3015, %v3001
      %3019 = vst.msk [vmem:[%s444 + $0x18] sm:$0xff] %vm3015, %v3002
      %3020 = vst.msk [vmem:[%s444 + $0x20] sm:$0xff] %vm3015, %v3003
      %3021 = vst.msk [vmem:[%s444 + $0x28] sm:$0xff] %vm3015, %v3004
      %3022 = vst.msk [vmem:[%s444 + $0x30] sm:$0xff] %vm3015, %v3005
      %3023 = vst.msk [vmem:[%s444 + $0x38] sm:$0xff] %vm3015, %v3006
      %3024 = vst.msk [vmem:[%s444 + $0x40] sm:$0xff] %vm3015, %v3007
      %3025 = vst.msk [vmem:[%s444 + $0x48] sm:$0xff] %vm3015, %v3008
      %3026 = vst.msk [vmem:[%s444 + $0x50] sm:$0xff] %vm3015, %v3009
      %3027 = vst.msk [vmem:[%s444 + $0x58] sm:$0xff] %vm3015, %v3010
      %3028 = vst.msk [vmem:[%s444 + $0x60] sm:$0xff] %vm3015, %v3011
      %3029 = vst.msk [vmem:[%s444 + $0x68] sm:$0xff] %vm3015, %v3012
      %3030 = vst.msk [vmem:[%s444 + $0x70] sm:$0xff] %vm3015, %v3013
      %3031 = vst.msk [vmem:[%s444 + $0x78] sm:$0xff] %vm3015, %v3014
      %s3032 = smul.u32 16, %s26
      %p3033 = scmp.lt.s32.totalorder %s3032, 31
      %s3034 = scalar_select %p3033, %s3032, 31
      %s3035 = smul.addr %s3034, 8
      %s3036 = scalar_lea.vmem %s13, %s3035
      // Predicated region
      $region73: #{deepfm_forward.1} parent=71 // pred_check
        %p3037 = pneg %p322
      $region74: #{deepfm_forward.1} parent=71 // pred_check_branch
        %3039 = sbr.rel (%p3037) target = $region76
      $region75: #{deepfm_forward.1} parent=71 // pred_region
        %s3040 = smul.u32 16, %s26
      $region76: #{deepfm_forward.1} parent=71 // pred_fallthru
        _
    $region72: #{deepfm_forward.1} parent=5 // pred_fallthru
      _
    %p3041 = scmp.le.s32.totalorder 2, %s21
    // Predicated region
    $region77: #{deepfm_forward.1} parent=5 // pred_check
      %p3042 = pneg %p3041
    $region78: #{deepfm_forward.1} parent=5 // pred_check_branch
      %3044 = sbr.rel (%p3042) target = $region80
    $region79: #{deepfm_forward.1} parent=5 // pred_region
      %s3045 = ssub.s32 %s21, 2
      // Predicated region
      $region81: #{deepfm_forward.1} parent=79 // pred_check
        %p3046 = pneg %p328
      $region82: #{deepfm_forward.1} parent=79 // pred_check_branch
        %3048 = sbr.rel (%p3046) target = $region84
      $region83: #{deepfm_forward.1} parent=79 // pred_region
        %s3049 = smul.u32 16, %s27
        %p3050 = scmp.lt.s32.totalorder %s3049, 31
        %s3051 = scalar_select %p3050, %s3049, 31
        %s3052 = smul.addr %s3051, 8
        %s3053 = scalar_lea.vmem %s13, %s3052
      $region84: #{deepfm_forward.1} parent=79 // pred_fallthru
        _
    $region80: #{deepfm_forward.1} parent=5 // pred_fallthru
      _
  $region6: #{deepfm_forward.1} parent=0 // loop_footer
    %s25 = sadd.s32 1, %s21
  $region7: #{deepfm_forward.1} parent=0 // loop_footer_branch
    %20 = sbr.rel target = $region3
  $region8: #{deepfm_forward.1} parent=0 // loop_exit
    _

</llo_original>
